<compile_context>
chip_gen: v7x
topology: tpu7x:2x2x1
jax: 0.10.0
libtpu: 0.0.40
codegen_flags: <defaults>
</compile_context>

<pallas_src>
import functools

import jax
import jax.numpy as jnp
from jax.experimental import pallas as pl
from jax.experimental.pallas import tpu as pltpu


def stn3d_conv_pool_kernel(x_ref, w1_ref, b1_ref, w2_ref, b2_ref, w3_ref,
                           o_ref, *, n_points, tn):
    """conv1-3 (BN folded) + running max-pool for one (batch, point-tile).

    Channel-major (C, points) layout throughout -- matches the NCW input.

    x_ref : (3, tn)      f32  raw NCW point tile
    w1    : (64, 3)      f32  b1: (64, 1)  f32
    w2    : (128, 64)    bf16 b2: (128, 1) f32
    w3    : (1024, 128)  bf16
    o_ref : (1024, 1)    f32  running max of the *raw* conv3 output
                              (bn3 bias + ReLU applied later in the fc kernel:
                               exact because the bias is column-constant, ReLU
                               is monotone and masked lanes use -inf fill).
    """
    k = pl.program_id(1)

    @pl.when(k == 0)
    def _():
        o_ref[...] = jnp.full(o_ref.shape, -jnp.inf, dtype=o_ref.dtype)

    x = x_ref[...]                                               # (3, tn)  f32
    w1 = w1_ref[...]                                             # (64, 3)  f32

    # conv1 (3 -> 64) + bn1 + relu: K=3 contraction as VPU broadcast FMAs
    # (avoids a lane-sparse K=3 MXU matmul).
    h = (w1[:, 0:1] * x[0:1, :]
         + w1[:, 1:2] * x[1:2, :]
         + w1[:, 2:3] * x[2:3, :]
         + b1_ref[...])
    h = jnp.maximum(h, 0.0)                                      # (64, tn)  f32

    # conv2 (64 -> 128) + bn2 + relu: bf16 MXU, f32 accumulation.
    h = jnp.dot(w2_ref[...], h.astype(jnp.bfloat16),
                preferred_element_type=jnp.float32) + b2_ref[...]
    h = jnp.maximum(h, 0.0)                                      # (128, tn) f32

    # conv3 (128 -> 1024), *raw*: bn3 bias + ReLU deferred past the max-pool.
    h = jnp.dot(w3_ref[...], h.astype(jnp.bfloat16),
                preferred_element_type=jnp.float32)              # (1024, tn) f32

    def _accumulate(ht):
        o_ref[...] = jnp.maximum(o_ref[...],
                                 jnp.max(ht, axis=1, keepdims=True))

    rem = n_points % tn
    if rem == 0:
        # All tiles are full: no masking pass at all (static decision).
        _accumulate(h)
    else:
        last = pl.num_programs(1) - 1

        @pl.when(k != last)
        def _():
            _accumulate(h)

        @pl.when(k == last)
        def _():
            # Only the single partial tile pays for the mask.  -inf fill keeps
            # the deferred bias/ReLU exact.
            col = jax.lax.broadcasted_iota(jnp.int32, (1, tn), 1)
            _accumulate(jnp.where(col < rem, h, -jnp.inf))


def stn3d_fc_kernel(g_ref, b3_ref, w4_ref, b4_ref, w5_ref, b5_ref, w6_ref,
                    b6_ref, o_ref):
    """Deferred bn3 bias + ReLU, then fc1-3 (BN folded) + ReLU + identity,
    batched over all B rows at once.

    g_ref : (B, 1024) f32  raw pooled conv3 features
    b3    : (1, 1024) f32  deferred bn3 bias
    w4: (1024, 512) bf16   b4: (1, 512) f32
    w5: (512, 256)  bf16   b5: (1, 256) f32
    w6: (256, 128)  bf16   b6: (1, 128) f32 (padded to 128 lanes, +identity folded)
    o_ref : (B, 128) f32   first 9 lanes hold the flattened 3x3 transform
    """
    g = jnp.maximum(g_ref[...] + b3_ref[...], 0.0)               # (B, 1024)
    f = jnp.dot(g.astype(jnp.bfloat16), w4_ref[...],
                preferred_element_type=jnp.float32) + b4_ref[...]
    f = jnp.maximum(f, 0.0)                                      # (B, 512)
    f = jnp.dot(f.astype(jnp.bfloat16), w5_ref[...],
                preferred_element_type=jnp.float32) + b5_ref[...]
    f = jnp.maximum(f, 0.0)                                      # (B, 256)
    o_ref[...] = jnp.dot(f.astype(jnp.bfloat16), w6_ref[...],
                         preferred_element_type=jnp.float32) + b6_ref[...]


def stn3d_forward(x_ncw, p, *, tn=None):
    """x_ncw: (B, 3, N) float32, PyTorch NCW layout.  Returns (B, 3, 3)."""
    B, C, N = x_ncw.shape
    assert C == 3
    x = x_ncw.astype(jnp.float32)

    if tn is None:
        # 2048 amortizes the ~0.35us per-grid-step overhead; the conv3 f32 tile
        # is then (1024, 2048) = 8 MiB, ~13 MiB live total, which fits the
        # 32 MiB VMEM limit requested below on v5e/v6e/v7x alike.
        tn = N if N <= 2048 else 2048
    assert tn == N or tn % 128 == 0, "tn must be a multiple of 128 (or equal N)"
    n_tiles = pl.cdiv(N, tn)

    const = lambda a: pl.BlockSpec(a.shape, lambda b, k: (0,) * a.ndim)

    pooled = pl.pallas_call(
        functools.partial(stn3d_conv_pool_kernel, n_points=N, tn=tn),
        out_shape=jax.ShapeDtypeStruct((B, 1024, 1), jnp.float32),
        grid_spec=pltpu.PrefetchScalarGridSpec(
            num_scalar_prefetch=0,
            grid=(B, n_tiles),
            in_specs=[
                pl.BlockSpec((None, 3, tn), lambda b, k: (b, 0, k)),  # NCW tile
                const(p["w1"]), const(p["b1"]),
                const(p["w2"]), const(p["b2"]),
                const(p["w3"]),
            ],
            out_specs=pl.BlockSpec((None, 1024, 1), lambda b, k: (b, 0, 0)),
        ),
        compiler_params=pltpu.CompilerParams(
            dimension_semantics=("parallel", "arbitrary"),
            vmem_limit_bytes=32 * 1024 * 1024),
    )(x, p["w1"], p["b1"], p["w2"], p["b2"], p["w3"])

    g = pooled.reshape(B, 1024)     # free: drops the trailing singleton dim

    out = pl.pallas_call(
        stn3d_fc_kernel,
        out_shape=jax.ShapeDtypeStruct((B, 128), jnp.float32),
    )(g, p["b3"], p["w4"], p["b4"], p["w5"], p["b5"], p["w6"], p["b6"])

    return out[:, :9].reshape(B, 3, 3)


def make_prepared_params(key):
    """Deterministic synthetic STN3d parameters, pre-folded (eval-mode BN),
    pre-cast (bf16 MXU weights) and pre-padded into kernel-ready form.
    Runs once at init, outside the forward path."""
    def layer(k, d_in, d_out, has_bn):
        kw, kb, kg, kbeta, km, kv = jax.random.split(k, 6)
        w = 0.1 * jax.random.normal(kw, (d_out, d_in), jnp.float32)
        b = 0.1 * jax.random.normal(kb, (d_out,), jnp.float32)
        if has_bn:   # fold eval-mode BatchNorm1d into the preceding linear map
            gamma = 1.0 + 0.1 * jax.random.normal(kg, (d_out,), jnp.float32)
            beta = 0.1 * jax.random.normal(kbeta, (d_out,), jnp.float32)
            mean = 0.1 * jax.random.normal(km, (d_out,), jnp.float32)
            var = 0.5 + jnp.abs(jax.random.normal(kv, (d_out,), jnp.float32))
            s = gamma * jax.lax.rsqrt(var + 1e-5)
            w = w * s[:, None]
            b = (b - mean) * s + beta
        return w, b                                   # (out, in), (out,)

    ks = [jax.random.fold_in(key, i) for i in range(6)]
    w1, b1 = layer(ks[0], 3, 64, True)
    w2, b2 = layer(ks[1], 64, 128, True)
    w3, b3 = layer(ks[2], 128, 1024, True)
    w4, b4 = layer(ks[3], 1024, 512, True)
    w5, b5 = layer(ks[4], 512, 256, True)
    w6, b6 = layer(ks[5], 256, 9, False)              # no BN after fc3

    # fc3: pad 9 outputs to 128 lanes (lane-dense store), fold +identity in.
    iden = jnp.eye(3, dtype=jnp.float32).reshape(9)
    w6p = jnp.zeros((256, 128), jnp.float32).at[:, :9].set(w6.T)
    b6p = jnp.zeros((1, 128), jnp.float32).at[:, :9].set(b6 + iden)

    return {
        # conv stack: channel-major (out, in) weights, (out, 1) biases
        "w1": w1, "b1": b1[:, None],
        "w2": w2.astype(jnp.bfloat16), "b2": b2[:, None],
        "w3": w3.astype(jnp.bfloat16), "b3": b3[None, :],   # deferred bn3 bias
        # fc stack: (in, out) weights, (1, out) biases
        "w4": w4.T.astype(jnp.bfloat16), "b4": b4[None, :],
        "w5": w5.T.astype(jnp.bfloat16), "b5": b5[None, :],
        "w6": w6p.astype(jnp.bfloat16), "b6": b6p,
    }


def stn3d_reference(x_ncw, p):
    """Pure-JAX reference in the original PyTorch op order (bias + ReLU before
    the max), validating the kernel's deferred-epilogue rewrite.  MXU-stage
    weights are bf16-roundtripped so the comparison measures only the kernel's
    bf16 activation rounding."""
    f32 = jnp.float32
    x = jnp.transpose(x_ncw, (0, 2, 1)).astype(f32)              # (B, N, 3)
    h = jnp.maximum(x @ p["w1"].T + p["b1"][:, 0], 0.0)
    h = jnp.maximum(h @ p["w2"].astype(f32).T + p["b2"][:, 0], 0.0)
    h = jnp.maximum(h @ p["w3"].astype(f32).T + p["b3"][0], 0.0)
    g = jnp.max(h, axis=1)                                       # (B, 1024)
    f = jnp.maximum(g @ p["w4"].astype(f32) + p["b4"], 0.0)
    f = jnp.maximum(f @ p["w5"].astype(f32) + p["b5"], 0.0)
    o = f @ p["w6"].astype(f32) + p["b6"]                        # identity folded
    return o[:, :9].reshape(-1, 3, 3)


if __name__ == "__main__":
    key = jax.random.PRNGKey(0)
    kx, kp = jax.random.split(key)

    B, N = 2, 200                                      # small demo shapes
    x = jax.random.normal(kx, (B, 3, N), jnp.float32)  # PyTorch NCW input
    params = make_prepared_params(kp)
    ref = stn3d_reference(x, params)

    # tn=128: exercises the tiled point axis, the running-max accumulator and
    # the masked (ragged) last tile.  Production default is tn = min(N, 2048).
    out = jax.jit(functools.partial(stn3d_forward, tn=128))(x, params)
    out = jax.block_until_ready(out)
    assert out.shape == (B, 3, 3)
    assert jnp.allclose(out, ref, atol=3e-2, rtol=3e-2), "tiled path mismatch"

    # Default tile size: single full tile, no masking pass.
    out2 = jax.block_until_ready(jax.jit(stn3d_forward)(x, params))
    assert jnp.allclose(out2, ref, atol=3e-2, rtol=3e-2), "full-tile path mismatch"

    print("KERNEL_OK")
</pallas_src>

<mosaic_0001>
module attributes {stable_mosaic.version = 11 : i64} {
  func.func @stn3d_fc_kernel(%arg0: memref<2x1024xf32, #tpu.memory_space<vmem>>, %arg1: memref<1x1024xf32, #tpu.memory_space<vmem>>, %arg2: memref<1024x512xbf16, #tpu.memory_space<vmem>>, %arg3: memref<1x512xf32, #tpu.memory_space<vmem>>, %arg4: memref<512x256xbf16, #tpu.memory_space<vmem>>, %arg5: memref<1x256xf32, #tpu.memory_space<vmem>>, %arg6: memref<256x128xbf16, #tpu.memory_space<vmem>>, %arg7: memref<1x128xf32, #tpu.memory_space<vmem>>, %arg8: memref<2x128xf32, #tpu.memory_space<vmem>>) attributes {dimension_semantics = [], scalar_prefetch = 0 : i64, scratch_operands = 0 : i64, tpu.core_type = #tpu.core_type<tc>} {
    %c0 = arith.constant 0 : index
    %c0_0 = arith.constant 0 : index
    %0 = vector.load %arg0[%c0, %c0_0] : memref<2x1024xf32, #tpu.memory_space<vmem>>, vector<2x1024xf32>
    %c0_1 = arith.constant 0 : index
    %c0_2 = arith.constant 0 : index
    %1 = vector.load %arg1[%c0_1, %c0_2] : memref<1x1024xf32, #tpu.memory_space<vmem>>, vector<1x1024xf32>
    %2 = vector.broadcast %1 : vector<1x1024xf32> to vector<2x1024xf32>
    %3 = arith.addf %0, %2 : vector<2x1024xf32>
    %cst = arith.constant 0.000000e+00 : f32
    %4 = vector.broadcast %cst : f32 to vector<2x1024xf32>
    %5 = arith.maximumf %3, %4 : vector<2x1024xf32>
    %6 = arith.truncf %5 : vector<2x1024xf32> to vector<2x1024xbf16>
    %c0_3 = arith.constant 0 : index
    %c0_4 = arith.constant 0 : index
    %7 = vector.load %arg2[%c0_3, %c0_4] : memref<1024x512xbf16, #tpu.memory_space<vmem>>, vector<1024x512xbf16>
    %cst_5 = arith.constant dense<0.000000e+00> : vector<2x512xf32>
    %8 = tpu.matmul %6, %7, %cst_5 {dimension_numbers = #tpu.dot_dimension_numbers<[1], [0], [0], [1], [0, 0, 1, 1], [], []>} : vector<2x1024xbf16>, vector<1024x512xbf16>, vector<2x512xf32> -> vector<2x512xf32>
    %c0_6 = arith.constant 0 : index
    %c0_7 = arith.constant 0 : index
    %9 = vector.load %arg3[%c0_6, %c0_7] : memref<1x512xf32, #tpu.memory_space<vmem>>, vector<1x512xf32>
    %10 = vector.broadcast %9 : vector<1x512xf32> to vector<2x512xf32>
    %11 = arith.addf %8, %10 : vector<2x512xf32>
    %cst_8 = arith.constant 0.000000e+00 : f32
    %12 = vector.broadcast %cst_8 : f32 to vector<2x512xf32>
    %13 = arith.maximumf %11, %12 : vector<2x512xf32>
    %14 = arith.truncf %13 : vector<2x512xf32> to vector<2x512xbf16>
    %c0_9 = arith.constant 0 : index
    %c0_10 = arith.constant 0 : index
    %15 = vector.load %arg4[%c0_9, %c0_10] : memref<512x256xbf16, #tpu.memory_space<vmem>>, vector<512x256xbf16>
    %cst_11 = arith.constant dense<0.000000e+00> : vector<2x256xf32>
    %16 = tpu.matmul %14, %15, %cst_11 {dimension_numbers = #tpu.dot_dimension_numbers<[1], [0], [0], [1], [0, 0, 1, 1], [], []>} : vector<2x512xbf16>, vector<512x256xbf16>, vector<2x256xf32> -> vector<2x256xf32>
    %c0_12 = arith.constant 0 : index
    %c0_13 = arith.constant 0 : index
    %17 = vector.load %arg5[%c0_12, %c0_13] : memref<1x256xf32, #tpu.memory_space<vmem>>, vector<1x256xf32>
    %18 = vector.broadcast %17 : vector<1x256xf32> to vector<2x256xf32>
    %19 = arith.addf %16, %18 : vector<2x256xf32>
    %cst_14 = arith.constant 0.000000e+00 : f32
    %20 = vector.broadcast %cst_14 : f32 to vector<2x256xf32>
    %21 = arith.maximumf %19, %20 : vector<2x256xf32>
    %22 = arith.truncf %21 : vector<2x256xf32> to vector<2x256xbf16>
    %c0_15 = arith.constant 0 : index
    %c0_16 = arith.constant 0 : index
    %23 = vector.load %arg6[%c0_15, %c0_16] : memref<256x128xbf16, #tpu.memory_space<vmem>>, vector<256x128xbf16>
    %cst_17 = arith.constant dense<0.000000e+00> : vector<2x128xf32>
    %24 = tpu.matmul %22, %23, %cst_17 {dimension_numbers = #tpu.dot_dimension_numbers<[1], [0], [0], [1], [0, 0, 1, 1], [], []>} : vector<2x256xbf16>, vector<256x128xbf16>, vector<2x128xf32> -> vector<2x128xf32>
    %c0_18 = arith.constant 0 : index
    %c0_19 = arith.constant 0 : index
    %25 = vector.load %arg7[%c0_18, %c0_19] : memref<1x128xf32, #tpu.memory_space<vmem>>, vector<1x128xf32>
    %26 = vector.broadcast %25 : vector<1x128xf32> to vector<2x128xf32>
    %27 = arith.addf %24, %26 : vector<2x128xf32>
    %c0_20 = arith.constant 0 : index
    %c0_21 = arith.constant 0 : index
    %28 = vector.load %arg8[%c0_20, %c0_21] : memref<2x128xf32, #tpu.memory_space<vmem>>, vector<2x128xf32>
    tpu.vector_store %arg8[%c0_20, %c0_21], %27 {strides = array<i32>} : memref<2x128xf32, #tpu.memory_space<vmem>>, vector<2x128xf32>,
    return
  }
}

module attributes {stable_mosaic.version = 11 : i64} {
  func.func @stn3d_conv_pool_kernel(%arg0: i32, %arg1: i32, %arg2: memref<1x3x128xf32, #tpu.memory_space<vmem>>, %arg3: memref<64x3xf32, #tpu.memory_space<vmem>>, %arg4: memref<64x1xf32, #tpu.memory_space<vmem>>, %arg5: memref<128x64xbf16, #tpu.memory_space<vmem>>, %arg6: memref<128x1xf32, #tpu.memory_space<vmem>>, %arg7: memref<1024x128xbf16, #tpu.memory_space<vmem>>, %arg8: memref<1x1024x1xf32, #tpu.memory_space<vmem>>) attributes {dimension_semantics = [#tpu.dimension_semantics<parallel>, #tpu.dimension_semantics<arbitrary>], iteration_bounds = array<i64: 2, 2>, scalar_prefetch = 0 : i64, scratch_operands = 0 : i64, tpu.core_type = #tpu.core_type<tc>, window_params = [{transform_indices = @transform_0, window_bounds = array<i64: 1, 3, 128>}, {pipeline_mode = #tpu.pipeline_mode<synchronous>, transform_indices = @transform_1, window_bounds = array<i64: 64, 3>}, {pipeline_mode = #tpu.pipeline_mode<synchronous>, transform_indices = @transform_2, window_bounds = array<i64: 64, 1>}, {pipeline_mode = #tpu.pipeline_mode<synchronous>, transform_indices = @transform_3, window_bounds = array<i64: 128, 64>}, {pipeline_mode = #tpu.pipeline_mode<synchronous>, transform_indices = @transform_4, window_bounds = array<i64: 128, 1>}, {pipeline_mode = #tpu.pipeline_mode<synchronous>, transform_indices = @transform_5, window_bounds = array<i64: 1024, 128>}, {transform_indices = @transform_6, window_bounds = array<i64: 1, 1024, 1>}]} {
    %c0_i32 = arith.constant 0 : i32
    %0 = arith.cmpi eq, %arg1, %c0_i32 : i32
    %1 = arith.extui %0 : i1 to i32
    %c0_i32_0 = arith.constant 0 : i32
    %2 = arith.cmpi ne, %1, %c0_i32_0 : i32
    scf.if %2 {
      %cst_19 = arith.constant 0xFF800000 : f32
      %45 = vector.broadcast %cst_19 : f32 to vector<1024x1xf32>
      %c0_20 = arith.constant 0 : index
      %c0_21 = arith.constant 0 : index
      %c0_22 = arith.constant 0 : index
      %46 = vector.load %arg8[%c0_20, %c0_21, %c0_22] : memref<1x1024x1xf32, #tpu.memory_space<vmem>>, vector<1x1024x1xf32>
      %47 = vector.shape_cast %46 : vector<1x1024x1xf32> to vector<1024x1xf32>
      %48 = vector.shape_cast %45 : vector<1024x1xf32> to vector<1x1024x1xf32>
      tpu.vector_store %arg8[%c0_20, %c0_21, %c0_22], %48 {strides = array<i32>} : memref<1x1024x1xf32, #tpu.memory_space<vmem>>, vector<1x1024x1xf32>,
    } else {
    }
    %c0 = arith.constant 0 : index
    %c0_1 = arith.constant 0 : index
    %c0_2 = arith.constant 0 : index
    %3 = vector.load %arg2[%c0, %c0_1, %c0_2] : memref<1x3x128xf32, #tpu.memory_space<vmem>>, vector<1x3x128xf32>
    %4 = vector.shape_cast %3 : vector<1x3x128xf32> to vector<3x128xf32>
    %c0_3 = arith.constant 0 : index
    %c0_4 = arith.constant 0 : index
    %5 = vector.load %arg3[%c0_3, %c0_4] : memref<64x3xf32, #tpu.memory_space<vmem>>, vector<64x3xf32>
    %6 = vector.extract_strided_slice %5 {offsets = [0, 0], sizes = [64, 1], strides = [1, 1]} : vector<64x3xf32> to vector<64x1xf32>
    %7 = vector.extract_strided_slice %4 {offsets = [0, 0], sizes = [1, 128], strides = [1, 1]} : vector<3x128xf32> to vector<1x128xf32>
    %8 = vector.broadcast %6 : vector<64x1xf32> to vector<64x128xf32>
    %9 = vector.broadcast %7 : vector<1x128xf32> to vector<64x128xf32>
    %10 = arith.mulf %8, %9 : vector<64x128xf32>
    %11 = vector.extract_strided_slice %5 {offsets = [0, 1], sizes = [64, 1], strides = [1, 1]} : vector<64x3xf32> to vector<64x1xf32>
    %12 = vector.extract_strided_slice %4 {offsets = [1, 0], sizes = [1, 128], strides = [1, 1]} : vector<3x128xf32> to vector<1x128xf32>
    %13 = vector.broadcast %11 : vector<64x1xf32> to vector<64x128xf32>
    %14 = vector.broadcast %12 : vector<1x128xf32> to vector<64x128xf32>
    %15 = arith.mulf %13, %14 : vector<64x128xf32>
    %16 = arith.addf %10, %15 : vector<64x128xf32>
    %17 = vector.extract_strided_slice %5 {offsets = [0, 2], sizes = [64, 1], strides = [1, 1]} : vector<64x3xf32> to vector<64x1xf32>
    %18 = vector.extract_strided_slice %4 {offsets = [2, 0], sizes = [1, 128], strides = [1, 1]} : vector<3x128xf32> to vector<1x128xf32>
    %19 = vector.broadcast %17 : vector<64x1xf32> to vector<64x128xf32>
    %20 = vector.broadcast %18 : vector<1x128xf32> to vector<64x128xf32>
    %21 = arith.mulf %19, %20 : vector<64x128xf32>
    %22 = arith.addf %16, %21 : vector<64x128xf32>
    %c0_5 = arith.constant 0 : index
    %c0_6 = arith.constant 0 : index
    %23 = vector.load %arg4[%c0_5, %c0_6] : memref<64x1xf32, #tpu.memory_space<vmem>>, vector<64x1xf32>
    %24 = vector.broadcast %23 : vector<64x1xf32> to vector<64x128xf32>
    %25 = arith.addf %22, %24 : vector<64x128xf32>
    %cst = arith.constant 0.000000e+00 : f32
    %26 = vector.broadcast %cst : f32 to vector<64x128xf32>
    %27 = arith.maximumf %25, %26 : vector<64x128xf32>
    %c0_7 = arith.constant 0 : index
    %c0_8 = arith.constant 0 : index
    %28 = vector.load %arg5[%c0_7, %c0_8] : memref<128x64xbf16, #tpu.memory_space<vmem>>, vector<128x64xbf16>
    %29 = arith.truncf %27 : vector<64x128xf32> to vector<64x128xbf16>
    %cst_9 = arith.constant dense<0.000000e+00> : vector<128x128xf32>
    %30 = tpu.matmul %28, %29, %cst_9 {dimension_numbers = #tpu.dot_dimension_numbers<[1], [0], [0], [1], [0, 0, 1, 1], [], []>} : vector<128x64xbf16>, vector<64x128xbf16>, vector<128x128xf32> -> vector<128x128xf32>
    %c0_10 = arith.constant 0 : index
    %c0_11 = arith.constant 0 : index
    %31 = vector.load %arg6[%c0_10, %c0_11] : memref<128x1xf32, #tpu.memory_space<vmem>>, vector<128x1xf32>
    %32 = vector.broadcast %31 : vector<128x1xf32> to vector<128x128xf32>
    %33 = arith.addf %30, %32 : vector<128x128xf32>
    %cst_12 = arith.constant 0.000000e+00 : f32
    %34 = vector.broadcast %cst_12 : f32 to vector<128x128xf32>
    %35 = arith.maximumf %33, %34 : vector<128x128xf32>
    %c0_13 = arith.constant 0 : index
    %c0_14 = arith.constant 0 : index
    %36 = vector.load %arg7[%c0_13, %c0_14] : memref<1024x128xbf16, #tpu.memory_space<vmem>>, vector<1024x128xbf16>
    %37 = arith.truncf %35 : vector<128x128xf32> to vector<128x128xbf16>
    %cst_15 = arith.constant dense<0.000000e+00> : vector<1024x128xf32>
    %38 = tpu.matmul %36, %37, %cst_15 {dimension_numbers = #tpu.dot_dimension_numbers<[1], [0], [0], [1], [0, 0, 1, 1], [], []>} : vector<1024x128xbf16>, vector<128x128xbf16>, vector<1024x128xf32> -> vector<1024x128xf32>
    %c1_i32 = arith.constant 1 : i32
    %39 = arith.cmpi ne, %arg1, %c1_i32 : i32
    %40 = arith.extui %39 : i1 to i32
    %c0_i32_16 = arith.constant 0 : i32
    %41 = arith.cmpi ne, %40, %c0_i32_16 : i32
    scf.if %41 {
      %c0_19 = arith.constant 0 : index
      %c0_20 = arith.constant 0 : index
      %c0_21 = arith.constant 0 : index
      %45 = vector.load %arg8[%c0_19, %c0_20, %c0_21] : memref<1x1024x1xf32, #tpu.memory_space<vmem>>, vector<1x1024x1xf32>
      %46 = vector.shape_cast %45 : vector<1x1024x1xf32> to vector<1024x1xf32>
      %cst_22 = arith.constant dense<0xFF800000> : vector<1024xf32>
      %47 = vector.multi_reduction <maximumf>, %38, %cst_22 [1] : vector<1024x128xf32> to vector<1024xf32>
      %48 = vector.shape_cast %47 : vector<1024xf32> to vector<1024x1xf32>
      %49 = arith.maximumf %46, %48 : vector<1024x1xf32>
      %c0_23 = arith.constant 0 : index
      %c0_24 = arith.constant 0 : index
      %c0_25 = arith.constant 0 : index
      %50 = vector.load %arg8[%c0_23, %c0_24, %c0_25] : memref<1x1024x1xf32, #tpu.memory_space<vmem>>, vector<1x1024x1xf32>
      %51 = vector.shape_cast %50 : vector<1x1024x1xf32> to vector<1024x1xf32>
      %52 = vector.shape_cast %49 : vector<1024x1xf32> to vector<1x1024x1xf32>
      tpu.vector_store %arg8[%c0_23, %c0_24, %c0_25], %52 {strides = array<i32>} : memref<1x1024x1xf32, #tpu.memory_space<vmem>>, vector<1x1024x1xf32>,
    } else {
    }
    %c1_i32_17 = arith.constant 1 : i32
    %42 = arith.cmpi eq, %arg1, %c1_i32_17 : i32
    %43 = arith.extui %42 : i1 to i32
    %c0_i32_18 = arith.constant 0 : i32
    %44 = arith.cmpi ne, %43, %c0_i32_18 : i32
    scf.if %44 {
      %45 = tpu.iota {dimensions = array<i32: 1>} : vector<1x128xi32>
      %c72_i32 = arith.constant 72 : i32
      %46 = vector.broadcast %c72_i32 : i32 to vector<1x128xi32>
      %47 = arith.cmpi slt, %45, %46 : vector<1x128xi32>
      %cst_19 = arith.constant 0xFF800000 : f32
      %48 = vector.shape_cast %47 : vector<1x128xi1> to vector<1x128xi1>
      %49 = vector.broadcast %48 : vector<1x128xi1> to vector<1024x128xi1>
      %50 = vector.broadcast %cst_19 : f32 to vector<1024x128xf32>
      %51 = arith.select %49, %38, %50 : vector<1024x128xi1>, vector<1024x128xf32>
      %c0_20 = arith.constant 0 : index
      %c0_21 = arith.constant 0 : index
      %c0_22 = arith.constant 0 : index
      %52 = vector.load %arg8[%c0_20, %c0_21, %c0_22] : memref<1x1024x1xf32, #tpu.memory_space<vmem>>, vector<1x1024x1xf32>
      %53 = vector.shape_cast %52 : vector<1x1024x1xf32> to vector<1024x1xf32>
      %cst_23 = arith.constant dense<0xFF800000> : vector<1024xf32>
      %54 = vector.multi_reduction <maximumf>, %51, %cst_23 [1] : vector<1024x128xf32> to vector<1024xf32>
      %55 = vector.shape_cast %54 : vector<1024xf32> to vector<1024x1xf32>
      %56 = arith.maximumf %53, %55 : vector<1024x1xf32>
      %c0_24 = arith.constant 0 : index
      %c0_25 = arith.constant 0 : index
      %c0_26 = arith.constant 0 : index
      %57 = vector.load %arg8[%c0_24, %c0_25, %c0_26] : memref<1x1024x1xf32, #tpu.memory_space<vmem>>, vector<1x1024x1xf32>
      %58 = vector.shape_cast %57 : vector<1x1024x1xf32> to vector<1024x1xf32>
      %59 = vector.shape_cast %56 : vector<1024x1xf32> to vector<1x1024x1xf32>
      tpu.vector_store %arg8[%c0_24, %c0_25, %c0_26], %59 {strides = array<i32>} : memref<1x1024x1xf32, #tpu.memory_space<vmem>>, vector<1x1024x1xf32>,
    } else {
    }
    return
  }
  func.func @transform_0(%arg0: i32, %arg1: i32) -> (i32, i32, i32) {
    %c0_i32 = arith.constant 0 : i32
    %c0_i32_0 = arith.constant 0 : i32
    return %arg0, %c0_i32, %arg1 : i32, i32, i32
  }
  func.func @transform_1(%arg0: i32, %arg1: i32) -> (i32, i32) {
    %c0_i32 = arith.constant 0 : i32
    %c0_i32_0 = arith.constant 0 : i32
    %c0_i32_1 = arith.constant 0 : i32
    return %c0_i32, %c0_i32_0 : i32, i32
  }
  func.func @transform_2(%arg0: i32, %arg1: i32) -> (i32, i32) {
    %c0_i32 = arith.constant 0 : i32
    %c0_i32_0 = arith.constant 0 : i32
    %c0_i32_1 = arith.constant 0 : i32
    return %c0_i32, %c0_i32_0 : i32, i32
  }
  func.func @transform_3(%arg0: i32, %arg1: i32) -> (i32, i32) {
    %c0_i32 = arith.constant 0 : i32
    %c0_i32_0 = arith.constant 0 : i32
    %c0_i32_1 = arith.constant 0 : i32
    return %c0_i32, %c0_i32_0 : i32, i32
  }
  func.func @transform_4(%arg0: i32, %arg1: i32) -> (i32, i32) {
    %c0_i32 = arith.constant 0 : i32
    %c0_i32_0 = arith.constant 0 : i32
    %c0_i32_1 = arith.constant 0 : i32
    return %c0_i32, %c0_i32_0 : i32, i32
  }
  func.func @transform_5(%arg0: i32, %arg1: i32) -> (i32, i32) {
    %c0_i32 = arith.constant 0 : i32
    %c0_i32_0 = arith.constant 0 : i32
    %c0_i32_1 = arith.constant 0 : i32
    return %c0_i32, %c0_i32_0 : i32, i32
  }
  func.func @transform_6(%arg0: i32, %arg1: i32) -> (i32, i32, i32) {
    %c0_i32 = arith.constant 0 : i32
    %c0_i32_0 = arith.constant 0 : i32
    %c0_i32_1 = arith.constant 0 : i32
    return %arg0, %c0_i32, %c0_i32_0 : i32, i32, i32
  }
}

</mosaic_0001>

<llo_original>
// kernel: stn3d_forward.3
$region0: #{stn3d_forward.3}
  #allocation0 [shape = 'u32[]', space=smem, size = 0x4, offset = 0x4, fixed_abs, tag = 'smem constant byte address 0x4 - core index']
  #allocation1 [shape = 'u32[144,128]{1,0:T(1,128)}', space=vmem, size = 0x12000, scoped, tag = 'internal scratch']
  %s0 = inlined_call_operand.vmem [shape: f32[2,1024], index: 0, kind: input, shape index: {}]
  %s1 = inlined_call_operand.vmem [shape: f32[1,1024], index: 1, kind: input, shape index: {}]
  %s2 = inlined_call_operand.vmem [shape: bf16[1024,512], index: 2, kind: input, shape index: {}]
  %s3 = inlined_call_operand.vmem [shape: f32[1,512], index: 3, kind: input, shape index: {}]
  %s4 = inlined_call_operand.vmem [shape: bf16[512,256], index: 4, kind: input, shape index: {}]
  %s5 = inlined_call_operand.vmem [shape: f32[1,256], index: 5, kind: input, shape index: {}]
  %s6 = inlined_call_operand.vmem [shape: bf16[256,128], index: 6, kind: input, shape index: {}]
  %s7 = inlined_call_operand.vmem [shape: f32[1,128], index: 7, kind: input, shape index: {}]
  %s8 = inlined_call_operand.vmem [shape: f32[2,128], index: 8, kind: output, shape index: {}]
  %s9 = sld [smem:[#allocation0]]
  $region42: #{stn3d_forward.3} parent=0
    _
  %s11 = ssub.s32 1, %s9
  %s12 = scalar_select 0, %s11, %s9
  // Predicated region
  $region2: #{stn3d_forward.3} parent=0 // pred_check
    _
  $region3: #{stn3d_forward.3} parent=0 // pred_check_branch
    %14 = sbr.rel (0) target = $region5
  $region4: #{stn3d_forward.3} parent=0 // pred_region
    _
  $region5: #{stn3d_forward.3} parent=0 // pred_fallthru
    _
  // Predicated region
  $region6: #{stn3d_forward.3} parent=0 // pred_check
    _
  $region7: #{stn3d_forward.3} parent=0 // pred_check_branch
    %16 = sbr.rel (0) target = $region9
  $region8: #{stn3d_forward.3} parent=0 // pred_region
    _
  $region9: #{stn3d_forward.3} parent=0 // pred_fallthru
    _
  // Predicated region
  $region10: #{stn3d_forward.3} parent=0 // pred_check
    _
  $region11: #{stn3d_forward.3} parent=0 // pred_check_branch
    %18 = sbr.rel (0) target = $region13
  $region12: #{stn3d_forward.3} parent=0 // pred_region
    _
  $region13: #{stn3d_forward.3} parent=0 // pred_fallthru
    _
  // Predicated region
  $region14: #{stn3d_forward.3} parent=0 // pred_check
    _
  $region15: #{stn3d_forward.3} parent=0 // pred_check_branch
    %20 = sbr.rel (0) target = $region17
  $region16: #{stn3d_forward.3} parent=0 // pred_region
    _
  $region17: #{stn3d_forward.3} parent=0 // pred_fallthru
    _
  // Predicated region
  $region18: #{stn3d_forward.3} parent=0 // pred_check
    _
  $region19: #{stn3d_forward.3} parent=0 // pred_check_branch
    %22 = sbr.rel (0) target = $region21
  $region20: #{stn3d_forward.3} parent=0 // pred_region
    _
  $region21: #{stn3d_forward.3} parent=0 // pred_fallthru
    _
  // Predicated region
  $region22: #{stn3d_forward.3} parent=0 // pred_check
    _
  $region23: #{stn3d_forward.3} parent=0 // pred_check_branch
    %24 = sbr.rel (0) target = $region25
  $region24: #{stn3d_forward.3} parent=0 // pred_region
    _
  $region25: #{stn3d_forward.3} parent=0 // pred_fallthru
    _
  // Predicated region
  $region26: #{stn3d_forward.3} parent=0 // pred_check
    _
  $region27: #{stn3d_forward.3} parent=0 // pred_check_branch
    %26 = sbr.rel (0) target = $region29
  $region28: #{stn3d_forward.3} parent=0 // pred_region
    _
  $region29: #{stn3d_forward.3} parent=0 // pred_fallthru
    _
  // Predicated region
  $region30: #{stn3d_forward.3} parent=0 // pred_check
    _
  $region31: #{stn3d_forward.3} parent=0 // pred_check_branch
    %28 = sbr.rel (0) target = $region33
  $region32: #{stn3d_forward.3} parent=0 // pred_region
    _
  $region33: #{stn3d_forward.3} parent=0 // pred_fallthru
    _
  %v30 = vld [vmem:[%s0] sm:$0xff]
  %v31 = vld [vmem:[%s0 + $0x8] sm:$0xff]
  %v32 = vld [vmem:[%s1] sm:$0xff]
  %v34 = vlaneseq
  %v35 = vshrl.u32 %v34, 7
  %v36 = vsub.s32 0, %v35
  %v37 = vrot.slane %v32, %v36
  %v38 = vlaneseq
  %v39 = vshrl.u32 %v38, 7
  %v40 = vsub.s32 1, %v39
  %v41 = vrot.slane %v32, %v40
  %v42 = vlaneseq
  %v43 = vshrl.u32 %v42, 7
  %v44 = vsub.s32 2, %v43
  %v45 = vrot.slane %v32, %v44
  %v46 = vlaneseq
  %v47 = vshrl.u32 %v46, 7
  %v48 = vsub.s32 3, %v47
  %v49 = vrot.slane %v32, %v48
  %v50 = vlaneseq
  %v51 = vshrl.u32 %v50, 7
  %v52 = vsub.s32 4, %v51
  %v53 = vrot.slane %v32, %v52
  %v54 = vlaneseq
  %v55 = vshrl.u32 %v54, 7
  %v56 = vsub.s32 5, %v55
  %v57 = vrot.slane %v32, %v56
  %v58 = vlaneseq
  %v59 = vshrl.u32 %v58, 7
  %v60 = vsub.s32 6, %v59
  %v61 = vrot.slane %v32, %v60
  %v62 = vlaneseq
  %v63 = vshrl.u32 %v62, 7
  %v64 = vsub.s32 7, %v63
  %v65 = vrot.slane %v32, %v64
  %v66 = vcombine.low %v37, %v41
  %v67 = vcombine.low %v45, %v49
  %v69 = vunpack.c.l.s4 1983009808
  %v70 = vunpack.c.0.s8 %v69
  %v71 = vlaneseq
  %v72 = vshrl.u32 %v71, 7
  %v73 = vsub.s32 %v70, %v72
  %v74 = vrot.slane %v66, %v73
  %v76 = vunpack.c.l.s4 1983009808
  %v77 = vunpack.c.0.s8 %v76
  %v78 = vlaneseq
  %v79 = vshrl.u32 %v78, 7
  %v80 = vsub.s32 %v77, %v79
  %v81 = vrot.slane %v67, %v80
  %v82 = vcombine.low %v74, %v81
  %v83 = vcombine.low %v53, %v57
  %v84 = vcombine.low %v61, %v65
  %v86 = vunpack.c.l.s4 1983009808
  %v87 = vunpack.c.0.s8 %v86
  %v88 = vlaneseq
  %v89 = vshrl.u32 %v88, 7
  %v90 = vsub.s32 %v87, %v89
  %v91 = vrot.slane %v83, %v90
  %v93 = vunpack.c.l.s4 1983009808
  %v94 = vunpack.c.0.s8 %v93
  %v95 = vlaneseq
  %v96 = vshrl.u32 %v95, 7
  %v97 = vsub.s32 %v94, %v96
  %v98 = vrot.slane %v84, %v97
  %v99 = vcombine.low %v91, %v98
  %v102 = vadd.f32 %v30, %v82
  %v103 = vadd.f32 %v31, %v99
  %v104 = vmax.f32 %v102, 0.0
  %v105 = vmax.f32 %v103, 0.0
  %v108 = vcombine.high %v104, %v104
  %v110 = vunpack.c.l.s4 1983009808
  %v111 = vunpack.c.0.s8 %v110
  %v112 = vlaneseq
  %v113 = vshrl.u32 %v112, 7
  %v114 = vsub.s32 %v111, %v113
  %v115 = vrot.slane %v104, %v114
  %v117 = vunpack.c.l.s4 1983009808
  %v118 = vunpack.c.0.s8 %v117
  %v119 = vlaneseq
  %v120 = vshrl.u32 %v119, 7
  %v121 = vsub.s32 %v118, %v120
  %v122 = vrot.slane %v108, %v121
  %v123 = vcombine.high %v115, %v115
  %v124 = vcombine.high %v122, %v122
  %v125 = vcombine.high %v105, %v105
  %v127 = vunpack.c.l.s4 1983009808
  %v128 = vunpack.c.0.s8 %v127
  %v129 = vlaneseq
  %v130 = vshrl.u32 %v129, 7
  %v131 = vsub.s32 %v128, %v130
  %v132 = vrot.slane %v105, %v131
  %v134 = vunpack.c.l.s4 1983009808
  %v135 = vunpack.c.0.s8 %v134
  %v136 = vlaneseq
  %v137 = vshrl.u32 %v136, 7
  %v138 = vsub.s32 %v135, %v137
  %v139 = vrot.slane %v125, %v138
  %v140 = vcombine.high %v132, %v132
  %v141 = vcombine.high %v139, %v139
  %v150 = vpack.c.bf16 %v115, %v115
  %v151 = vpack.c.bf16 %v123, %v123
  %v152 = vpack.c.bf16 %v122, %v122
  %v153 = vpack.c.bf16 %v124, %v124
  %v154 = vpack.c.bf16 %v132, %v132
  %v155 = vpack.c.bf16 %v140, %v140
  %v156 = vpack.c.bf16 %v139, %v139
  %v157 = vpack.c.bf16 %v141, %v141
  %v158 = vld [vmem:[%s2] sm:$0xff]
  %v159 = vld [vmem:[%s2 + $0x8] sm:$0xff]
  %v160 = vld [vmem:[%s2 + $0x10] sm:$0xff]
  %v161 = vld [vmem:[%s2 + $0x18] sm:$0xff]
  %v162 = vld [vmem:[%s2 + $0x20] sm:$0xff]
  %v163 = vld [vmem:[%s2 + $0x28] sm:$0xff]
  %v164 = vld [vmem:[%s2 + $0x30] sm:$0xff]
  %v165 = vld [vmem:[%s2 + $0x38] sm:$0xff]
  %v166 = vld [vmem:[%s2 + $0x40] sm:$0xff]
  %v167 = vld [vmem:[%s2 + $0x48] sm:$0xff]
  %v168 = vld [vmem:[%s2 + $0x50] sm:$0xff]
  %v169 = vld [vmem:[%s2 + $0x58] sm:$0xff]
  %v170 = vld [vmem:[%s2 + $0x60] sm:$0xff]
  %v171 = vld [vmem:[%s2 + $0x68] sm:$0xff]
  %v172 = vld [vmem:[%s2 + $0x70] sm:$0xff]
  %v173 = vld [vmem:[%s2 + $0x78] sm:$0xff]
  %v174 = vld [vmem:[%s2 + $0x80] sm:$0xff]
  %v175 = vld [vmem:[%s2 + $0x88] sm:$0xff]
  %v176 = vld [vmem:[%s2 + $0x90] sm:$0xff]
  %v177 = vld [vmem:[%s2 + $0x98] sm:$0xff]
  %v178 = vld [vmem:[%s2 + $0xa0] sm:$0xff]
  %v179 = vld [vmem:[%s2 + $0xa8] sm:$0xff]
  %v180 = vld [vmem:[%s2 + $0xb0] sm:$0xff]
  %v181 = vld [vmem:[%s2 + $0xb8] sm:$0xff]
  %v182 = vld [vmem:[%s2 + $0xc0] sm:$0xff]
  %v183 = vld [vmem:[%s2 + $0xc8] sm:$0xff]
  %v184 = vld [vmem:[%s2 + $0xd0] sm:$0xff]
  %v185 = vld [vmem:[%s2 + $0xd8] sm:$0xff]
  %v186 = vld [vmem:[%s2 + $0xe0] sm:$0xff]
  %v187 = vld [vmem:[%s2 + $0xe8] sm:$0xff]
  %v188 = vld [vmem:[%s2 + $0xf0] sm:$0xff]
  %v189 = vld [vmem:[%s2 + $0xf8] sm:$0xff]
  %v190 = vld [vmem:[%s2 + $0x100] sm:$0xff]
  %v191 = vld [vmem:[%s2 + $0x108] sm:$0xff]
  %v192 = vld [vmem:[%s2 + $0x110] sm:$0xff]
  %v193 = vld [vmem:[%s2 + $0x118] sm:$0xff]
  %v194 = vld [vmem:[%s2 + $0x120] sm:$0xff]
  %v195 = vld [vmem:[%s2 + $0x128] sm:$0xff]
  %v196 = vld [vmem:[%s2 + $0x130] sm:$0xff]
  %v197 = vld [vmem:[%s2 + $0x138] sm:$0xff]
  %v198 = vld [vmem:[%s2 + $0x140] sm:$0xff]
  %v199 = vld [vmem:[%s2 + $0x148] sm:$0xff]
  %v200 = vld [vmem:[%s2 + $0x150] sm:$0xff]
  %v201 = vld [vmem:[%s2 + $0x158] sm:$0xff]
  %v202 = vld [vmem:[%s2 + $0x160] sm:$0xff]
  %v203 = vld [vmem:[%s2 + $0x168] sm:$0xff]
  %v204 = vld [vmem:[%s2 + $0x170] sm:$0xff]
  %v205 = vld [vmem:[%s2 + $0x178] sm:$0xff]
  %v206 = vld [vmem:[%s2 + $0x180] sm:$0xff]
  %v207 = vld [vmem:[%s2 + $0x188] sm:$0xff]
  %v208 = vld [vmem:[%s2 + $0x190] sm:$0xff]
  %v209 = vld [vmem:[%s2 + $0x198] sm:$0xff]
  %v210 = vld [vmem:[%s2 + $0x1a0] sm:$0xff]
  %v211 = vld [vmem:[%s2 + $0x1a8] sm:$0xff]
  %v212 = vld [vmem:[%s2 + $0x1b0] sm:$0xff]
  %v213 = vld [vmem:[%s2 + $0x1b8] sm:$0xff]
  %v214 = vld [vmem:[%s2 + $0x1c0] sm:$0xff]
  %v215 = vld [vmem:[%s2 + $0x1c8] sm:$0xff]
  %v216 = vld [vmem:[%s2 + $0x1d0] sm:$0xff]
  %v217 = vld [vmem:[%s2 + $0x1d8] sm:$0xff]
  %v218 = vld [vmem:[%s2 + $0x1e0] sm:$0xff]
  %v219 = vld [vmem:[%s2 + $0x1e8] sm:$0xff]
  %v220 = vld [vmem:[%s2 + $0x1f0] sm:$0xff]
  %v221 = vld [vmem:[%s2 + $0x1f8] sm:$0xff]
  %v222 = vld [vmem:[%s2 + $0x200] sm:$0xff]
  %v223 = vld [vmem:[%s2 + $0x208] sm:$0xff]
  %v224 = vld [vmem:[%s2 + $0x210] sm:$0xff]
  %v225 = vld [vmem:[%s2 + $0x218] sm:$0xff]
  %v226 = vld [vmem:[%s2 + $0x220] sm:$0xff]
  %v227 = vld [vmem:[%s2 + $0x228] sm:$0xff]
  %v228 = vld [vmem:[%s2 + $0x230] sm:$0xff]
  %v229 = vld [vmem:[%s2 + $0x238] sm:$0xff]
  %v230 = vld [vmem:[%s2 + $0x240] sm:$0xff]
  %v231 = vld [vmem:[%s2 + $0x248] sm:$0xff]
  %v232 = vld [vmem:[%s2 + $0x250] sm:$0xff]
  %v233 = vld [vmem:[%s2 + $0x258] sm:$0xff]
  %v234 = vld [vmem:[%s2 + $0x260] sm:$0xff]
  %v235 = vld [vmem:[%s2 + $0x268] sm:$0xff]
  %v236 = vld [vmem:[%s2 + $0x270] sm:$0xff]
  %v237 = vld [vmem:[%s2 + $0x278] sm:$0xff]
  %v238 = vld [vmem:[%s2 + $0x280] sm:$0xff]
  %v239 = vld [vmem:[%s2 + $0x288] sm:$0xff]
  %v240 = vld [vmem:[%s2 + $0x290] sm:$0xff]
  %v241 = vld [vmem:[%s2 + $0x298] sm:$0xff]
  %v242 = vld [vmem:[%s2 + $0x2a0] sm:$0xff]
  %v243 = vld [vmem:[%s2 + $0x2a8] sm:$0xff]
  %v244 = vld [vmem:[%s2 + $0x2b0] sm:$0xff]
  %v245 = vld [vmem:[%s2 + $0x2b8] sm:$0xff]
  %v246 = vld [vmem:[%s2 + $0x2c0] sm:$0xff]
  %v247 = vld [vmem:[%s2 + $0x2c8] sm:$0xff]
  %v248 = vld [vmem:[%s2 + $0x2d0] sm:$0xff]
  %v249 = vld [vmem:[%s2 + $0x2d8] sm:$0xff]
  %v250 = vld [vmem:[%s2 + $0x2e0] sm:$0xff]
  %v251 = vld [vmem:[%s2 + $0x2e8] sm:$0xff]
  %v252 = vld [vmem:[%s2 + $0x2f0] sm:$0xff]
  %v253 = vld [vmem:[%s2 + $0x2f8] sm:$0xff]
  %v254 = vld [vmem:[%s2 + $0x300] sm:$0xff]
  %v255 = vld [vmem:[%s2 + $0x308] sm:$0xff]
  %v256 = vld [vmem:[%s2 + $0x310] sm:$0xff]
  %v257 = vld [vmem:[%s2 + $0x318] sm:$0xff]
  %v258 = vld [vmem:[%s2 + $0x320] sm:$0xff]
  %v259 = vld [vmem:[%s2 + $0x328] sm:$0xff]
  %v260 = vld [vmem:[%s2 + $0x330] sm:$0xff]
  %v261 = vld [vmem:[%s2 + $0x338] sm:$0xff]
  %v262 = vld [vmem:[%s2 + $0x340] sm:$0xff]
  %v263 = vld [vmem:[%s2 + $0x348] sm:$0xff]
  %v264 = vld [vmem:[%s2 + $0x350] sm:$0xff]
  %v265 = vld [vmem:[%s2 + $0x358] sm:$0xff]
  %v266 = vld [vmem:[%s2 + $0x360] sm:$0xff]
  %v267 = vld [vmem:[%s2 + $0x368] sm:$0xff]
  %v268 = vld [vmem:[%s2 + $0x370] sm:$0xff]
  %v269 = vld [vmem:[%s2 + $0x378] sm:$0xff]
  %v270 = vld [vmem:[%s2 + $0x380] sm:$0xff]
  %v271 = vld [vmem:[%s2 + $0x388] sm:$0xff]
  %v272 = vld [vmem:[%s2 + $0x390] sm:$0xff]
  %v273 = vld [vmem:[%s2 + $0x398] sm:$0xff]
  %v274 = vld [vmem:[%s2 + $0x3a0] sm:$0xff]
  %v275 = vld [vmem:[%s2 + $0x3a8] sm:$0xff]
  %v276 = vld [vmem:[%s2 + $0x3b0] sm:$0xff]
  %v277 = vld [vmem:[%s2 + $0x3b8] sm:$0xff]
  %v278 = vld [vmem:[%s2 + $0x3c0] sm:$0xff]
  %v279 = vld [vmem:[%s2 + $0x3c8] sm:$0xff]
  %v280 = vld [vmem:[%s2 + $0x3d0] sm:$0xff]
  %v281 = vld [vmem:[%s2 + $0x3d8] sm:$0xff]
  %v282 = vld [vmem:[%s2 + $0x3e0] sm:$0xff]
  %v283 = vld [vmem:[%s2 + $0x3e8] sm:$0xff]
  %v284 = vld [vmem:[%s2 + $0x3f0] sm:$0xff]
  %v285 = vld [vmem:[%s2 + $0x3f8] sm:$0xff]
  %v286 = vld [vmem:[%s2 + $0x400] sm:$0xff]
  %v287 = vld [vmem:[%s2 + $0x408] sm:$0xff]
  %v288 = vld [vmem:[%s2 + $0x410] sm:$0xff]
  %v289 = vld [vmem:[%s2 + $0x418] sm:$0xff]
  %v290 = vld [vmem:[%s2 + $0x420] sm:$0xff]
  %v291 = vld [vmem:[%s2 + $0x428] sm:$0xff]
  %v292 = vld [vmem:[%s2 + $0x430] sm:$0xff]
  %v293 = vld [vmem:[%s2 + $0x438] sm:$0xff]
  %v294 = vld [vmem:[%s2 + $0x440] sm:$0xff]
  %v295 = vld [vmem:[%s2 + $0x448] sm:$0xff]
  %v296 = vld [vmem:[%s2 + $0x450] sm:$0xff]
  %v297 = vld [vmem:[%s2 + $0x458] sm:$0xff]
  %v298 = vld [vmem:[%s2 + $0x460] sm:$0xff]
  %v299 = vld [vmem:[%s2 + $0x468] sm:$0xff]
  %v300 = vld [vmem:[%s2 + $0x470] sm:$0xff]
  %v301 = vld [vmem:[%s2 + $0x478] sm:$0xff]
  %v302 = vld [vmem:[%s2 + $0x480] sm:$0xff]
  %v303 = vld [vmem:[%s2 + $0x488] sm:$0xff]
  %v304 = vld [vmem:[%s2 + $0x490] sm:$0xff]
  %v305 = vld [vmem:[%s2 + $0x498] sm:$0xff]
  %v306 = vld [vmem:[%s2 + $0x4a0] sm:$0xff]
  %v307 = vld [vmem:[%s2 + $0x4a8] sm:$0xff]
  %v308 = vld [vmem:[%s2 + $0x4b0] sm:$0xff]
  %v309 = vld [vmem:[%s2 + $0x4b8] sm:$0xff]
  %v310 = vld [vmem:[%s2 + $0x4c0] sm:$0xff]
  %v311 = vld [vmem:[%s2 + $0x4c8] sm:$0xff]
  %v312 = vld [vmem:[%s2 + $0x4d0] sm:$0xff]
  %v313 = vld [vmem:[%s2 + $0x4d8] sm:$0xff]
  %v314 = vld [vmem:[%s2 + $0x4e0] sm:$0xff]
  %v315 = vld [vmem:[%s2 + $0x4e8] sm:$0xff]
  %v316 = vld [vmem:[%s2 + $0x4f0] sm:$0xff]
  %v317 = vld [vmem:[%s2 + $0x4f8] sm:$0xff]
  %v318 = vld [vmem:[%s2 + $0x500] sm:$0xff]
  %v319 = vld [vmem:[%s2 + $0x508] sm:$0xff]
  %v320 = vld [vmem:[%s2 + $0x510] sm:$0xff]
  %v321 = vld [vmem:[%s2 + $0x518] sm:$0xff]
  %v322 = vld [vmem:[%s2 + $0x520] sm:$0xff]
  %v323 = vld [vmem:[%s2 + $0x528] sm:$0xff]
  %v324 = vld [vmem:[%s2 + $0x530] sm:$0xff]
  %v325 = vld [vmem:[%s2 + $0x538] sm:$0xff]
  %v326 = vld [vmem:[%s2 + $0x540] sm:$0xff]
  %v327 = vld [vmem:[%s2 + $0x548] sm:$0xff]
  %v328 = vld [vmem:[%s2 + $0x550] sm:$0xff]
  %v329 = vld [vmem:[%s2 + $0x558] sm:$0xff]
  %v330 = vld [vmem:[%s2 + $0x560] sm:$0xff]
  %v331 = vld [vmem:[%s2 + $0x568] sm:$0xff]
  %v332 = vld [vmem:[%s2 + $0x570] sm:$0xff]
  %v333 = vld [vmem:[%s2 + $0x578] sm:$0xff]
  %v334 = vld [vmem:[%s2 + $0x580] sm:$0xff]
  %v335 = vld [vmem:[%s2 + $0x588] sm:$0xff]
  %v336 = vld [vmem:[%s2 + $0x590] sm:$0xff]
  %v337 = vld [vmem:[%s2 + $0x598] sm:$0xff]
  %v338 = vld [vmem:[%s2 + $0x5a0] sm:$0xff]
  %v339 = vld [vmem:[%s2 + $0x5a8] sm:$0xff]
  %v340 = vld [vmem:[%s2 + $0x5b0] sm:$0xff]
  %v341 = vld [vmem:[%s2 + $0x5b8] sm:$0xff]
  %v342 = vld [vmem:[%s2 + $0x5c0] sm:$0xff]
  %v343 = vld [vmem:[%s2 + $0x5c8] sm:$0xff]
  %v344 = vld [vmem:[%s2 + $0x5d0] sm:$0xff]
  %v345 = vld [vmem:[%s2 + $0x5d8] sm:$0xff]
  %v346 = vld [vmem:[%s2 + $0x5e0] sm:$0xff]
  %v347 = vld [vmem:[%s2 + $0x5e8] sm:$0xff]
  %v348 = vld [vmem:[%s2 + $0x5f0] sm:$0xff]
  %v349 = vld [vmem:[%s2 + $0x5f8] sm:$0xff]
  %v350 = vld [vmem:[%s2 + $0x600] sm:$0xff]
  %v351 = vld [vmem:[%s2 + $0x608] sm:$0xff]
  %v352 = vld [vmem:[%s2 + $0x610] sm:$0xff]
  %v353 = vld [vmem:[%s2 + $0x618] sm:$0xff]
  %v354 = vld [vmem:[%s2 + $0x620] sm:$0xff]
  %v355 = vld [vmem:[%s2 + $0x628] sm:$0xff]
  %v356 = vld [vmem:[%s2 + $0x630] sm:$0xff]
  %v357 = vld [vmem:[%s2 + $0x638] sm:$0xff]
  %v358 = vld [vmem:[%s2 + $0x640] sm:$0xff]
  %v359 = vld [vmem:[%s2 + $0x648] sm:$0xff]
  %v360 = vld [vmem:[%s2 + $0x650] sm:$0xff]
  %v361 = vld [vmem:[%s2 + $0x658] sm:$0xff]
  %v362 = vld [vmem:[%s2 + $0x660] sm:$0xff]
  %v363 = vld [vmem:[%s2 + $0x668] sm:$0xff]
  %v364 = vld [vmem:[%s2 + $0x670] sm:$0xff]
  %v365 = vld [vmem:[%s2 + $0x678] sm:$0xff]
  %v366 = vld [vmem:[%s2 + $0x680] sm:$0xff]
  %v367 = vld [vmem:[%s2 + $0x688] sm:$0xff]
  %v368 = vld [vmem:[%s2 + $0x690] sm:$0xff]
  %v369 = vld [vmem:[%s2 + $0x698] sm:$0xff]
  %v370 = vld [vmem:[%s2 + $0x6a0] sm:$0xff]
  %v371 = vld [vmem:[%s2 + $0x6a8] sm:$0xff]
  %v372 = vld [vmem:[%s2 + $0x6b0] sm:$0xff]
  %v373 = vld [vmem:[%s2 + $0x6b8] sm:$0xff]
  %v374 = vld [vmem:[%s2 + $0x6c0] sm:$0xff]
  %v375 = vld [vmem:[%s2 + $0x6c8] sm:$0xff]
  %v376 = vld [vmem:[%s2 + $0x6d0] sm:$0xff]
  %v377 = vld [vmem:[%s2 + $0x6d8] sm:$0xff]
  %v378 = vld [vmem:[%s2 + $0x6e0] sm:$0xff]
  %v379 = vld [vmem:[%s2 + $0x6e8] sm:$0xff]
  %v380 = vld [vmem:[%s2 + $0x6f0] sm:$0xff]
  %v381 = vld [vmem:[%s2 + $0x6f8] sm:$0xff]
  %v382 = vld [vmem:[%s2 + $0x700] sm:$0xff]
  %v383 = vld [vmem:[%s2 + $0x708] sm:$0xff]
  %v384 = vld [vmem:[%s2 + $0x710] sm:$0xff]
  %v385 = vld [vmem:[%s2 + $0x718] sm:$0xff]
  %v386 = vld [vmem:[%s2 + $0x720] sm:$0xff]
  %v387 = vld [vmem:[%s2 + $0x728] sm:$0xff]
  %v388 = vld [vmem:[%s2 + $0x730] sm:$0xff]
  %v389 = vld [vmem:[%s2 + $0x738] sm:$0xff]
  %v390 = vld [vmem:[%s2 + $0x740] sm:$0xff]
  %v391 = vld [vmem:[%s2 + $0x748] sm:$0xff]
  %v392 = vld [vmem:[%s2 + $0x750] sm:$0xff]
  %v393 = vld [vmem:[%s2 + $0x758] sm:$0xff]
  %v394 = vld [vmem:[%s2 + $0x760] sm:$0xff]
  %v395 = vld [vmem:[%s2 + $0x768] sm:$0xff]
  %v396 = vld [vmem:[%s2 + $0x770] sm:$0xff]
  %v397 = vld [vmem:[%s2 + $0x778] sm:$0xff]
  %v398 = vld [vmem:[%s2 + $0x780] sm:$0xff]
  %v399 = vld [vmem:[%s2 + $0x788] sm:$0xff]
  %v400 = vld [vmem:[%s2 + $0x790] sm:$0xff]
  %v401 = vld [vmem:[%s2 + $0x798] sm:$0xff]
  %v402 = vld [vmem:[%s2 + $0x7a0] sm:$0xff]
  %v403 = vld [vmem:[%s2 + $0x7a8] sm:$0xff]
  %v404 = vld [vmem:[%s2 + $0x7b0] sm:$0xff]
  %v405 = vld [vmem:[%s2 + $0x7b8] sm:$0xff]
  %v406 = vld [vmem:[%s2 + $0x7c0] sm:$0xff]
  %v407 = vld [vmem:[%s2 + $0x7c8] sm:$0xff]
  %v408 = vld [vmem:[%s2 + $0x7d0] sm:$0xff]
  %v409 = vld [vmem:[%s2 + $0x7d8] sm:$0xff]
  %v410 = vld [vmem:[%s2 + $0x7e0] sm:$0xff]
  %v411 = vld [vmem:[%s2 + $0x7e8] sm:$0xff]
  %v412 = vld [vmem:[%s2 + $0x7f0] sm:$0xff]
  %v413 = vld [vmem:[%s2 + $0x7f8] sm:$0xff]
  %v414 = vld [vmem:[%s3] sm:$0xf]
  %v416 = vlaneseq
  %v417 = vshrl.u32 %v416, 7
  %v418 = vsub.s32 0, %v417
  %v419 = vrot.slane %v414, %v418
  %v420 = vlaneseq
  %v421 = vshrl.u32 %v420, 7
  %v422 = vsub.s32 1, %v421
  %v423 = vrot.slane %v414, %v422
  %v424 = vlaneseq
  %v425 = vshrl.u32 %v424, 7
  %v426 = vsub.s32 2, %v425
  %v427 = vrot.slane %v414, %v426
  %v428 = vlaneseq
  %v429 = vshrl.u32 %v428, 7
  %v430 = vsub.s32 3, %v429
  %v431 = vrot.slane %v414, %v430
  %v692 = vunpack.c.l.b16 %v158
  %v693 = vunpack.c.h.b16 %v158
  %v694 = vunpack.c.l.b16 %v159
  %v695 = vunpack.c.h.b16 %v159
  %v696 = vunpack.c.l.b16 %v160
  %v697 = vunpack.c.h.b16 %v160
  %v698 = vunpack.c.l.b16 %v161
  %v699 = vunpack.c.h.b16 %v161
  %v700 = vunpack.c.l.b16 %v162
  %v701 = vunpack.c.h.b16 %v162
  %v702 = vunpack.c.l.b16 %v163
  %v703 = vunpack.c.h.b16 %v163
  %v704 = vunpack.c.l.b16 %v164
  %v705 = vunpack.c.h.b16 %v164
  %v706 = vunpack.c.l.b16 %v165
  %v707 = vunpack.c.h.b16 %v165
  %v708 = vunpack.c.l.b16 %v166
  %v709 = vunpack.c.h.b16 %v166
  %v710 = vunpack.c.l.b16 %v167
  %v711 = vunpack.c.h.b16 %v167
  %v712 = vunpack.c.l.b16 %v168
  %v713 = vunpack.c.h.b16 %v168
  %v714 = vunpack.c.l.b16 %v169
  %v715 = vunpack.c.h.b16 %v169
  %v716 = vunpack.c.l.b16 %v170
  %v717 = vunpack.c.h.b16 %v170
  %v718 = vunpack.c.l.b16 %v171
  %v719 = vunpack.c.h.b16 %v171
  %v720 = vunpack.c.l.b16 %v172
  %v721 = vunpack.c.h.b16 %v172
  %v722 = vunpack.c.l.b16 %v173
  %v723 = vunpack.c.h.b16 %v173
  %v724 = vunpack.c.l.b16 %v174
  %v725 = vunpack.c.h.b16 %v174
  %v726 = vunpack.c.l.b16 %v175
  %v727 = vunpack.c.h.b16 %v175
  %v728 = vunpack.c.l.b16 %v176
  %v729 = vunpack.c.h.b16 %v176
  %v730 = vunpack.c.l.b16 %v177
  %v731 = vunpack.c.h.b16 %v177
  %v732 = vunpack.c.l.b16 %v178
  %v733 = vunpack.c.h.b16 %v178
  %v734 = vunpack.c.l.b16 %v179
  %v735 = vunpack.c.h.b16 %v179
  %v736 = vunpack.c.l.b16 %v180
  %v737 = vunpack.c.h.b16 %v180
  %v738 = vunpack.c.l.b16 %v181
  %v739 = vunpack.c.h.b16 %v181
  %v740 = vunpack.c.l.b16 %v182
  %v741 = vunpack.c.h.b16 %v182
  %v742 = vunpack.c.l.b16 %v183
  %v743 = vunpack.c.h.b16 %v183
  %v744 = vunpack.c.l.b16 %v184
  %v745 = vunpack.c.h.b16 %v184
  %v746 = vunpack.c.l.b16 %v185
  %v747 = vunpack.c.h.b16 %v185
  %v748 = vunpack.c.l.b16 %v186
  %v749 = vunpack.c.h.b16 %v186
  %v750 = vunpack.c.l.b16 %v187
  %v751 = vunpack.c.h.b16 %v187
  %v752 = vunpack.c.l.b16 %v188
  %v753 = vunpack.c.h.b16 %v188
  %v754 = vunpack.c.l.b16 %v189
  %v755 = vunpack.c.h.b16 %v189
  %v756 = vunpack.c.l.b16 %v190
  %v757 = vunpack.c.h.b16 %v190
  %v758 = vunpack.c.l.b16 %v191
  %v759 = vunpack.c.h.b16 %v191
  %v760 = vunpack.c.l.b16 %v192
  %v761 = vunpack.c.h.b16 %v192
  %v762 = vunpack.c.l.b16 %v193
  %v763 = vunpack.c.h.b16 %v193
  %v764 = vunpack.c.l.b16 %v194
  %v765 = vunpack.c.h.b16 %v194
  %v766 = vunpack.c.l.b16 %v195
  %v767 = vunpack.c.h.b16 %v195
  %v768 = vunpack.c.l.b16 %v196
  %v769 = vunpack.c.h.b16 %v196
  %v770 = vunpack.c.l.b16 %v197
  %v771 = vunpack.c.h.b16 %v197
  %v772 = vunpack.c.l.b16 %v198
  %v773 = vunpack.c.h.b16 %v198
  %v774 = vunpack.c.l.b16 %v199
  %v775 = vunpack.c.h.b16 %v199
  %v776 = vunpack.c.l.b16 %v200
  %v777 = vunpack.c.h.b16 %v200
  %v778 = vunpack.c.l.b16 %v201
  %v779 = vunpack.c.h.b16 %v201
  %v780 = vunpack.c.l.b16 %v202
  %v781 = vunpack.c.h.b16 %v202
  %v782 = vunpack.c.l.b16 %v203
  %v783 = vunpack.c.h.b16 %v203
  %v784 = vunpack.c.l.b16 %v204
  %v785 = vunpack.c.h.b16 %v204
  %v786 = vunpack.c.l.b16 %v205
  %v787 = vunpack.c.h.b16 %v205
  %v788 = vunpack.c.l.b16 %v206
  %v789 = vunpack.c.h.b16 %v206
  %v790 = vunpack.c.l.b16 %v207
  %v791 = vunpack.c.h.b16 %v207
  %v792 = vunpack.c.l.b16 %v208
  %v793 = vunpack.c.h.b16 %v208
  %v794 = vunpack.c.l.b16 %v209
  %v795 = vunpack.c.h.b16 %v209
  %v796 = vunpack.c.l.b16 %v210
  %v797 = vunpack.c.h.b16 %v210
  %v798 = vunpack.c.l.b16 %v211
  %v799 = vunpack.c.h.b16 %v211
  %v800 = vunpack.c.l.b16 %v212
  %v801 = vunpack.c.h.b16 %v212
  %v802 = vunpack.c.l.b16 %v213
  %v803 = vunpack.c.h.b16 %v213
  %v804 = vunpack.c.l.b16 %v214
  %v805 = vunpack.c.h.b16 %v214
  %v806 = vunpack.c.l.b16 %v215
  %v807 = vunpack.c.h.b16 %v215
  %v808 = vunpack.c.l.b16 %v216
  %v809 = vunpack.c.h.b16 %v216
  %v810 = vunpack.c.l.b16 %v217
  %v811 = vunpack.c.h.b16 %v217
  %v812 = vunpack.c.l.b16 %v218
  %v813 = vunpack.c.h.b16 %v218
  %v814 = vunpack.c.l.b16 %v219
  %v815 = vunpack.c.h.b16 %v219
  %v816 = vunpack.c.l.b16 %v220
  %v817 = vunpack.c.h.b16 %v220
  %v818 = vunpack.c.l.b16 %v221
  %v819 = vunpack.c.h.b16 %v221
  %v820 = vunpack.c.l.b16 %v222
  %v821 = vunpack.c.h.b16 %v222
  %v822 = vunpack.c.l.b16 %v223
  %v823 = vunpack.c.h.b16 %v223
  %v824 = vunpack.c.l.b16 %v224
  %v825 = vunpack.c.h.b16 %v224
  %v826 = vunpack.c.l.b16 %v225
  %v827 = vunpack.c.h.b16 %v225
  %v828 = vunpack.c.l.b16 %v226
  %v829 = vunpack.c.h.b16 %v226
  %v830 = vunpack.c.l.b16 %v227
  %v831 = vunpack.c.h.b16 %v227
  %v832 = vunpack.c.l.b16 %v228
  %v833 = vunpack.c.h.b16 %v228
  %v834 = vunpack.c.l.b16 %v229
  %v835 = vunpack.c.h.b16 %v229
  %v836 = vunpack.c.l.b16 %v230
  %v837 = vunpack.c.h.b16 %v230
  %v838 = vunpack.c.l.b16 %v231
  %v839 = vunpack.c.h.b16 %v231
  %v840 = vunpack.c.l.b16 %v232
  %v841 = vunpack.c.h.b16 %v232
  %v842 = vunpack.c.l.b16 %v233
  %v843 = vunpack.c.h.b16 %v233
  %v844 = vunpack.c.l.b16 %v234
  %v845 = vunpack.c.h.b16 %v234
  %v846 = vunpack.c.l.b16 %v235
  %v847 = vunpack.c.h.b16 %v235
  %v848 = vunpack.c.l.b16 %v236
  %v849 = vunpack.c.h.b16 %v236
  %v850 = vunpack.c.l.b16 %v237
  %v851 = vunpack.c.h.b16 %v237
  %v852 = vunpack.c.l.b16 %v238
  %v853 = vunpack.c.h.b16 %v238
  %v854 = vunpack.c.l.b16 %v239
  %v855 = vunpack.c.h.b16 %v239
  %v856 = vunpack.c.l.b16 %v240
  %v857 = vunpack.c.h.b16 %v240
  %v858 = vunpack.c.l.b16 %v241
  %v859 = vunpack.c.h.b16 %v241
  %v860 = vunpack.c.l.b16 %v242
  %v861 = vunpack.c.h.b16 %v242
  %v862 = vunpack.c.l.b16 %v243
  %v863 = vunpack.c.h.b16 %v243
  %v864 = vunpack.c.l.b16 %v244
  %v865 = vunpack.c.h.b16 %v244
  %v866 = vunpack.c.l.b16 %v245
  %v867 = vunpack.c.h.b16 %v245
  %v868 = vunpack.c.l.b16 %v246
  %v869 = vunpack.c.h.b16 %v246
  %v870 = vunpack.c.l.b16 %v247
  %v871 = vunpack.c.h.b16 %v247
  %v872 = vunpack.c.l.b16 %v248
  %v873 = vunpack.c.h.b16 %v248
  %v874 = vunpack.c.l.b16 %v249
  %v875 = vunpack.c.h.b16 %v249
  %v876 = vunpack.c.l.b16 %v250
  %v877 = vunpack.c.h.b16 %v250
  %v878 = vunpack.c.l.b16 %v251
  %v879 = vunpack.c.h.b16 %v251
  %v880 = vunpack.c.l.b16 %v252
  %v881 = vunpack.c.h.b16 %v252
  %v882 = vunpack.c.l.b16 %v253
  %v883 = vunpack.c.h.b16 %v253
  %v884 = vunpack.c.l.b16 %v254
  %v885 = vunpack.c.h.b16 %v254
  %v886 = vunpack.c.l.b16 %v255
  %v887 = vunpack.c.h.b16 %v255
  %v888 = vunpack.c.l.b16 %v256
  %v889 = vunpack.c.h.b16 %v256
  %v890 = vunpack.c.l.b16 %v257
  %v891 = vunpack.c.h.b16 %v257
  %v892 = vunpack.c.l.b16 %v258
  %v893 = vunpack.c.h.b16 %v258
  %v894 = vunpack.c.l.b16 %v259
  %v895 = vunpack.c.h.b16 %v259
  %v896 = vunpack.c.l.b16 %v260
  %v897 = vunpack.c.h.b16 %v260
  %v898 = vunpack.c.l.b16 %v261
  %v899 = vunpack.c.h.b16 %v261
  %v900 = vunpack.c.l.b16 %v262
  %v901 = vunpack.c.h.b16 %v262
  %v902 = vunpack.c.l.b16 %v263
  %v903 = vunpack.c.h.b16 %v263
  %v904 = vunpack.c.l.b16 %v264
  %v905 = vunpack.c.h.b16 %v264
  %v906 = vunpack.c.l.b16 %v265
  %v907 = vunpack.c.h.b16 %v265
  %v908 = vunpack.c.l.b16 %v266
  %v909 = vunpack.c.h.b16 %v266
  %v910 = vunpack.c.l.b16 %v267
  %v911 = vunpack.c.h.b16 %v267
  %v912 = vunpack.c.l.b16 %v268
  %v913 = vunpack.c.h.b16 %v268
  %v914 = vunpack.c.l.b16 %v269
  %v915 = vunpack.c.h.b16 %v269
  %v916 = vunpack.c.l.b16 %v270
  %v917 = vunpack.c.h.b16 %v270
  %v918 = vunpack.c.l.b16 %v271
  %v919 = vunpack.c.h.b16 %v271
  %v920 = vunpack.c.l.b16 %v272
  %v921 = vunpack.c.h.b16 %v272
  %v922 = vunpack.c.l.b16 %v273
  %v923 = vunpack.c.h.b16 %v273
  %v924 = vunpack.c.l.b16 %v274
  %v925 = vunpack.c.h.b16 %v274
  %v926 = vunpack.c.l.b16 %v275
  %v927 = vunpack.c.h.b16 %v275
  %v928 = vunpack.c.l.b16 %v276
  %v929 = vunpack.c.h.b16 %v276
  %v930 = vunpack.c.l.b16 %v277
  %v931 = vunpack.c.h.b16 %v277
  %v932 = vunpack.c.l.b16 %v278
  %v933 = vunpack.c.h.b16 %v278
  %v934 = vunpack.c.l.b16 %v279
  %v935 = vunpack.c.h.b16 %v279
  %v936 = vunpack.c.l.b16 %v280
  %v937 = vunpack.c.h.b16 %v280
  %v938 = vunpack.c.l.b16 %v281
  %v939 = vunpack.c.h.b16 %v281
  %v940 = vunpack.c.l.b16 %v282
  %v941 = vunpack.c.h.b16 %v282
  %v942 = vunpack.c.l.b16 %v283
  %v943 = vunpack.c.h.b16 %v283
  %v944 = vunpack.c.l.b16 %v284
  %v945 = vunpack.c.h.b16 %v284
  %v946 = vunpack.c.l.b16 %v285
  %v947 = vunpack.c.h.b16 %v285
  %v948 = vunpack.c.l.b16 %v286
  %v949 = vunpack.c.h.b16 %v286
  %v950 = vunpack.c.l.b16 %v287
  %v951 = vunpack.c.h.b16 %v287
  %v952 = vunpack.c.l.b16 %v288
  %v953 = vunpack.c.h.b16 %v288
  %v954 = vunpack.c.l.b16 %v289
  %v955 = vunpack.c.h.b16 %v289
  %v956 = vunpack.c.l.b16 %v290
  %v957 = vunpack.c.h.b16 %v290
  %v958 = vunpack.c.l.b16 %v291
  %v959 = vunpack.c.h.b16 %v291
  %v960 = vunpack.c.l.b16 %v292
  %v961 = vunpack.c.h.b16 %v292
  %v962 = vunpack.c.l.b16 %v293
  %v963 = vunpack.c.h.b16 %v293
  %v964 = vunpack.c.l.b16 %v294
  %v965 = vunpack.c.h.b16 %v294
  %v966 = vunpack.c.l.b16 %v295
  %v967 = vunpack.c.h.b16 %v295
  %v968 = vunpack.c.l.b16 %v296
  %v969 = vunpack.c.h.b16 %v296
  %v970 = vunpack.c.l.b16 %v297
  %v971 = vunpack.c.h.b16 %v297
  %v972 = vunpack.c.l.b16 %v298
  %v973 = vunpack.c.h.b16 %v298
  %v974 = vunpack.c.l.b16 %v299
  %v975 = vunpack.c.h.b16 %v299
  %v976 = vunpack.c.l.b16 %v300
  %v977 = vunpack.c.h.b16 %v300
  %v978 = vunpack.c.l.b16 %v301
  %v979 = vunpack.c.h.b16 %v301
  %v980 = vunpack.c.l.b16 %v302
  %v981 = vunpack.c.h.b16 %v302
  %v982 = vunpack.c.l.b16 %v303
  %v983 = vunpack.c.h.b16 %v303
  %v984 = vunpack.c.l.b16 %v304
  %v985 = vunpack.c.h.b16 %v304
  %v986 = vunpack.c.l.b16 %v305
  %v987 = vunpack.c.h.b16 %v305
  %v988 = vunpack.c.l.b16 %v306
  %v989 = vunpack.c.h.b16 %v306
  %v990 = vunpack.c.l.b16 %v307
  %v991 = vunpack.c.h.b16 %v307
  %v992 = vunpack.c.l.b16 %v308
  %v993 = vunpack.c.h.b16 %v308
  %v994 = vunpack.c.l.b16 %v309
  %v995 = vunpack.c.h.b16 %v309
  %v996 = vunpack.c.l.b16 %v310
  %v997 = vunpack.c.h.b16 %v310
  %v998 = vunpack.c.l.b16 %v311
  %v999 = vunpack.c.h.b16 %v311
  %v1000 = vunpack.c.l.b16 %v312
  %v1001 = vunpack.c.h.b16 %v312
  %v1002 = vunpack.c.l.b16 %v313
  %v1003 = vunpack.c.h.b16 %v313
  %v1004 = vunpack.c.l.b16 %v314
  %v1005 = vunpack.c.h.b16 %v314
  %v1006 = vunpack.c.l.b16 %v315
  %v1007 = vunpack.c.h.b16 %v315
  %v1008 = vunpack.c.l.b16 %v316
  %v1009 = vunpack.c.h.b16 %v316
  %v1010 = vunpack.c.l.b16 %v317
  %v1011 = vunpack.c.h.b16 %v317
  %v1012 = vunpack.c.l.b16 %v318
  %v1013 = vunpack.c.h.b16 %v318
  %v1014 = vunpack.c.l.b16 %v319
  %v1015 = vunpack.c.h.b16 %v319
  %v1016 = vunpack.c.l.b16 %v320
  %v1017 = vunpack.c.h.b16 %v320
  %v1018 = vunpack.c.l.b16 %v321
  %v1019 = vunpack.c.h.b16 %v321
  %v1020 = vunpack.c.l.b16 %v322
  %v1021 = vunpack.c.h.b16 %v322
  %v1022 = vunpack.c.l.b16 %v323
  %v1023 = vunpack.c.h.b16 %v323
  %v1024 = vunpack.c.l.b16 %v324
  %v1025 = vunpack.c.h.b16 %v324
  %v1026 = vunpack.c.l.b16 %v325
  %v1027 = vunpack.c.h.b16 %v325
  %v1028 = vunpack.c.l.b16 %v326
  %v1029 = vunpack.c.h.b16 %v326
  %v1030 = vunpack.c.l.b16 %v327
  %v1031 = vunpack.c.h.b16 %v327
  %v1032 = vunpack.c.l.b16 %v328
  %v1033 = vunpack.c.h.b16 %v328
  %v1034 = vunpack.c.l.b16 %v329
  %v1035 = vunpack.c.h.b16 %v329
  %v1036 = vunpack.c.l.b16 %v330
  %v1037 = vunpack.c.h.b16 %v330
  %v1038 = vunpack.c.l.b16 %v331
  %v1039 = vunpack.c.h.b16 %v331
  %v1040 = vunpack.c.l.b16 %v332
  %v1041 = vunpack.c.h.b16 %v332
  %v1042 = vunpack.c.l.b16 %v333
  %v1043 = vunpack.c.h.b16 %v333
  %v1044 = vunpack.c.l.b16 %v334
  %v1045 = vunpack.c.h.b16 %v334
  %v1046 = vunpack.c.l.b16 %v335
  %v1047 = vunpack.c.h.b16 %v335
  %v1048 = vunpack.c.l.b16 %v336
  %v1049 = vunpack.c.h.b16 %v336
  %v1050 = vunpack.c.l.b16 %v337
  %v1051 = vunpack.c.h.b16 %v337
  %v1052 = vunpack.c.l.b16 %v338
  %v1053 = vunpack.c.h.b16 %v338
  %v1054 = vunpack.c.l.b16 %v339
  %v1055 = vunpack.c.h.b16 %v339
  %v1056 = vunpack.c.l.b16 %v340
  %v1057 = vunpack.c.h.b16 %v340
  %v1058 = vunpack.c.l.b16 %v341
  %v1059 = vunpack.c.h.b16 %v341
  %v1060 = vunpack.c.l.b16 %v342
  %v1061 = vunpack.c.h.b16 %v342
  %v1062 = vunpack.c.l.b16 %v343
  %v1063 = vunpack.c.h.b16 %v343
  %v1064 = vunpack.c.l.b16 %v344
  %v1065 = vunpack.c.h.b16 %v344
  %v1066 = vunpack.c.l.b16 %v345
  %v1067 = vunpack.c.h.b16 %v345
  %v1068 = vunpack.c.l.b16 %v346
  %v1069 = vunpack.c.h.b16 %v346
  %v1070 = vunpack.c.l.b16 %v347
  %v1071 = vunpack.c.h.b16 %v347
  %v1072 = vunpack.c.l.b16 %v348
  %v1073 = vunpack.c.h.b16 %v348
  %v1074 = vunpack.c.l.b16 %v349
  %v1075 = vunpack.c.h.b16 %v349
  %v1076 = vunpack.c.l.b16 %v350
  %v1077 = vunpack.c.h.b16 %v350
  %v1078 = vunpack.c.l.b16 %v351
  %v1079 = vunpack.c.h.b16 %v351
  %v1080 = vunpack.c.l.b16 %v352
  %v1081 = vunpack.c.h.b16 %v352
  %v1082 = vunpack.c.l.b16 %v353
  %v1083 = vunpack.c.h.b16 %v353
  %v1084 = vunpack.c.l.b16 %v354
  %v1085 = vunpack.c.h.b16 %v354
  %v1086 = vunpack.c.l.b16 %v355
  %v1087 = vunpack.c.h.b16 %v355
  %v1088 = vunpack.c.l.b16 %v356
  %v1089 = vunpack.c.h.b16 %v356
  %v1090 = vunpack.c.l.b16 %v357
  %v1091 = vunpack.c.h.b16 %v357
  %v1092 = vunpack.c.l.b16 %v358
  %v1093 = vunpack.c.h.b16 %v358
  %v1094 = vunpack.c.l.b16 %v359
  %v1095 = vunpack.c.h.b16 %v359
  %v1096 = vunpack.c.l.b16 %v360
  %v1097 = vunpack.c.h.b16 %v360
  %v1098 = vunpack.c.l.b16 %v361
  %v1099 = vunpack.c.h.b16 %v361
  %v1100 = vunpack.c.l.b16 %v362
  %v1101 = vunpack.c.h.b16 %v362
  %v1102 = vunpack.c.l.b16 %v363
  %v1103 = vunpack.c.h.b16 %v363
  %v1104 = vunpack.c.l.b16 %v364
  %v1105 = vunpack.c.h.b16 %v364
  %v1106 = vunpack.c.l.b16 %v365
  %v1107 = vunpack.c.h.b16 %v365
  %v1108 = vunpack.c.l.b16 %v366
  %v1109 = vunpack.c.h.b16 %v366
  %v1110 = vunpack.c.l.b16 %v367
  %v1111 = vunpack.c.h.b16 %v367
  %v1112 = vunpack.c.l.b16 %v368
  %v1113 = vunpack.c.h.b16 %v368
  %v1114 = vunpack.c.l.b16 %v369
  %v1115 = vunpack.c.h.b16 %v369
  %v1116 = vunpack.c.l.b16 %v370
  %v1117 = vunpack.c.h.b16 %v370
  %v1118 = vunpack.c.l.b16 %v371
  %v1119 = vunpack.c.h.b16 %v371
  %v1120 = vunpack.c.l.b16 %v372
  %v1121 = vunpack.c.h.b16 %v372
  %v1122 = vunpack.c.l.b16 %v373
  %v1123 = vunpack.c.h.b16 %v373
  %v1124 = vunpack.c.l.b16 %v374
  %v1125 = vunpack.c.h.b16 %v374
  %v1126 = vunpack.c.l.b16 %v375
  %v1127 = vunpack.c.h.b16 %v375
  %v1128 = vunpack.c.l.b16 %v376
  %v1129 = vunpack.c.h.b16 %v376
  %v1130 = vunpack.c.l.b16 %v377
  %v1131 = vunpack.c.h.b16 %v377
  %v1132 = vunpack.c.l.b16 %v378
  %v1133 = vunpack.c.h.b16 %v378
  %v1134 = vunpack.c.l.b16 %v379
  %v1135 = vunpack.c.h.b16 %v379
  %v1136 = vunpack.c.l.b16 %v380
  %v1137 = vunpack.c.h.b16 %v380
  %v1138 = vunpack.c.l.b16 %v381
  %v1139 = vunpack.c.h.b16 %v381
  %v1140 = vunpack.c.l.b16 %v382
  %v1141 = vunpack.c.h.b16 %v382
  %v1142 = vunpack.c.l.b16 %v383
  %v1143 = vunpack.c.h.b16 %v383
  %v1144 = vunpack.c.l.b16 %v384
  %v1145 = vunpack.c.h.b16 %v384
  %v1146 = vunpack.c.l.b16 %v385
  %v1147 = vunpack.c.h.b16 %v385
  %v1148 = vunpack.c.l.b16 %v386
  %v1149 = vunpack.c.h.b16 %v386
  %v1150 = vunpack.c.l.b16 %v387
  %v1151 = vunpack.c.h.b16 %v387
  %v1152 = vunpack.c.l.b16 %v388
  %v1153 = vunpack.c.h.b16 %v388
  %v1154 = vunpack.c.l.b16 %v389
  %v1155 = vunpack.c.h.b16 %v389
  %v1156 = vunpack.c.l.b16 %v390
  %v1157 = vunpack.c.h.b16 %v390
  %v1158 = vunpack.c.l.b16 %v391
  %v1159 = vunpack.c.h.b16 %v391
  %v1160 = vunpack.c.l.b16 %v392
  %v1161 = vunpack.c.h.b16 %v392
  %v1162 = vunpack.c.l.b16 %v393
  %v1163 = vunpack.c.h.b16 %v393
  %v1164 = vunpack.c.l.b16 %v394
  %v1165 = vunpack.c.h.b16 %v394
  %v1166 = vunpack.c.l.b16 %v395
  %v1167 = vunpack.c.h.b16 %v395
  %v1168 = vunpack.c.l.b16 %v396
  %v1169 = vunpack.c.h.b16 %v396
  %v1170 = vunpack.c.l.b16 %v397
  %v1171 = vunpack.c.h.b16 %v397
  %v1172 = vunpack.c.l.b16 %v398
  %v1173 = vunpack.c.h.b16 %v398
  %v1174 = vunpack.c.l.b16 %v399
  %v1175 = vunpack.c.h.b16 %v399
  %v1176 = vunpack.c.l.b16 %v400
  %v1177 = vunpack.c.h.b16 %v400
  %v1178 = vunpack.c.l.b16 %v401
  %v1179 = vunpack.c.h.b16 %v401
  %v1180 = vunpack.c.l.b16 %v402
  %v1181 = vunpack.c.h.b16 %v402
  %v1182 = vunpack.c.l.b16 %v403
  %v1183 = vunpack.c.h.b16 %v403
  %v1184 = vunpack.c.l.b16 %v404
  %v1185 = vunpack.c.h.b16 %v404
  %v1186 = vunpack.c.l.b16 %v405
  %v1187 = vunpack.c.h.b16 %v405
  %v1188 = vunpack.c.l.b16 %v406
  %v1189 = vunpack.c.h.b16 %v406
  %v1190 = vunpack.c.l.b16 %v407
  %v1191 = vunpack.c.h.b16 %v407
  %v1192 = vunpack.c.l.b16 %v408
  %v1193 = vunpack.c.h.b16 %v408
  %v1194 = vunpack.c.l.b16 %v409
  %v1195 = vunpack.c.h.b16 %v409
  %v1196 = vunpack.c.l.b16 %v410
  %v1197 = vunpack.c.h.b16 %v410
  %v1198 = vunpack.c.l.b16 %v411
  %v1199 = vunpack.c.h.b16 %v411
  %v1200 = vunpack.c.l.b16 %v412
  %v1201 = vunpack.c.h.b16 %v412
  %v1202 = vunpack.c.l.b16 %v413
  %v1203 = vunpack.c.h.b16 %v413
  %v1204 = vpack.c.b16 %v696, %v692
  %v1205 = vpack.c.b16 %v697, %v693
  %v1206 = vpack.c.b16 %v698, %v694
  %v1207 = vpack.c.b16 %v699, %v695
  %v1208 = vpack.c.b16 %v704, %v700
  %v1209 = vpack.c.b16 %v705, %v701
  %v1210 = vpack.c.b16 %v706, %v702
  %v1211 = vpack.c.b16 %v707, %v703
  %v1212 = vpack.c.b16 %v712, %v708
  %v1213 = vpack.c.b16 %v713, %v709
  %v1214 = vpack.c.b16 %v714, %v710
  %v1215 = vpack.c.b16 %v715, %v711
  %v1216 = vpack.c.b16 %v720, %v716
  %v1217 = vpack.c.b16 %v721, %v717
  %v1218 = vpack.c.b16 %v722, %v718
  %v1219 = vpack.c.b16 %v723, %v719
  %v1220 = vpack.c.b16 %v728, %v724
  %v1221 = vpack.c.b16 %v729, %v725
  %v1222 = vpack.c.b16 %v730, %v726
  %v1223 = vpack.c.b16 %v731, %v727
  %v1224 = vpack.c.b16 %v736, %v732
  %v1225 = vpack.c.b16 %v737, %v733
  %v1226 = vpack.c.b16 %v738, %v734
  %v1227 = vpack.c.b16 %v739, %v735
  %v1228 = vpack.c.b16 %v744, %v740
  %v1229 = vpack.c.b16 %v745, %v741
  %v1230 = vpack.c.b16 %v746, %v742
  %v1231 = vpack.c.b16 %v747, %v743
  %v1232 = vpack.c.b16 %v752, %v748
  %v1233 = vpack.c.b16 %v753, %v749
  %v1234 = vpack.c.b16 %v754, %v750
  %v1235 = vpack.c.b16 %v755, %v751
  %v1236 = vpack.c.b16 %v760, %v756
  %v1237 = vpack.c.b16 %v761, %v757
  %v1238 = vpack.c.b16 %v762, %v758
  %v1239 = vpack.c.b16 %v763, %v759
  %v1240 = vpack.c.b16 %v768, %v764
  %v1241 = vpack.c.b16 %v769, %v765
  %v1242 = vpack.c.b16 %v770, %v766
  %v1243 = vpack.c.b16 %v771, %v767
  %v1244 = vpack.c.b16 %v776, %v772
  %v1245 = vpack.c.b16 %v777, %v773
  %v1246 = vpack.c.b16 %v778, %v774
  %v1247 = vpack.c.b16 %v779, %v775
  %v1248 = vpack.c.b16 %v784, %v780
  %v1249 = vpack.c.b16 %v785, %v781
  %v1250 = vpack.c.b16 %v786, %v782
  %v1251 = vpack.c.b16 %v787, %v783
  %v1252 = vpack.c.b16 %v792, %v788
  %v1253 = vpack.c.b16 %v793, %v789
  %v1254 = vpack.c.b16 %v794, %v790
  %v1255 = vpack.c.b16 %v795, %v791
  %v1256 = vpack.c.b16 %v800, %v796
  %v1257 = vpack.c.b16 %v801, %v797
  %v1258 = vpack.c.b16 %v802, %v798
  %v1259 = vpack.c.b16 %v803, %v799
  %v1260 = vpack.c.b16 %v808, %v804
  %v1261 = vpack.c.b16 %v809, %v805
  %v1262 = vpack.c.b16 %v810, %v806
  %v1263 = vpack.c.b16 %v811, %v807
  %v1264 = vpack.c.b16 %v816, %v812
  %v1265 = vpack.c.b16 %v817, %v813
  %v1266 = vpack.c.b16 %v818, %v814
  %v1267 = vpack.c.b16 %v819, %v815
  %v1268 = vpack.c.b16 %v824, %v820
  %v1269 = vpack.c.b16 %v825, %v821
  %v1270 = vpack.c.b16 %v826, %v822
  %v1271 = vpack.c.b16 %v827, %v823
  %v1272 = vpack.c.b16 %v832, %v828
  %v1273 = vpack.c.b16 %v833, %v829
  %v1274 = vpack.c.b16 %v834, %v830
  %v1275 = vpack.c.b16 %v835, %v831
  %v1276 = vpack.c.b16 %v840, %v836
  %v1277 = vpack.c.b16 %v841, %v837
  %v1278 = vpack.c.b16 %v842, %v838
  %v1279 = vpack.c.b16 %v843, %v839
  %v1280 = vpack.c.b16 %v848, %v844
  %v1281 = vpack.c.b16 %v849, %v845
  %v1282 = vpack.c.b16 %v850, %v846
  %v1283 = vpack.c.b16 %v851, %v847
  %v1284 = vpack.c.b16 %v856, %v852
  %v1285 = vpack.c.b16 %v857, %v853
  %v1286 = vpack.c.b16 %v858, %v854
  %v1287 = vpack.c.b16 %v859, %v855
  %v1288 = vpack.c.b16 %v864, %v860
  %v1289 = vpack.c.b16 %v865, %v861
  %v1290 = vpack.c.b16 %v866, %v862
  %v1291 = vpack.c.b16 %v867, %v863
  %v1292 = vpack.c.b16 %v872, %v868
  %v1293 = vpack.c.b16 %v873, %v869
  %v1294 = vpack.c.b16 %v874, %v870
  %v1295 = vpack.c.b16 %v875, %v871
  %v1296 = vpack.c.b16 %v880, %v876
  %v1297 = vpack.c.b16 %v881, %v877
  %v1298 = vpack.c.b16 %v882, %v878
  %v1299 = vpack.c.b16 %v883, %v879
  %v1300 = vpack.c.b16 %v888, %v884
  %v1301 = vpack.c.b16 %v889, %v885
  %v1302 = vpack.c.b16 %v890, %v886
  %v1303 = vpack.c.b16 %v891, %v887
  %v1304 = vpack.c.b16 %v896, %v892
  %v1305 = vpack.c.b16 %v897, %v893
  %v1306 = vpack.c.b16 %v898, %v894
  %v1307 = vpack.c.b16 %v899, %v895
  %v1308 = vpack.c.b16 %v904, %v900
  %v1309 = vpack.c.b16 %v905, %v901
  %v1310 = vpack.c.b16 %v906, %v902
  %v1311 = vpack.c.b16 %v907, %v903
  %v1312 = vpack.c.b16 %v912, %v908
  %v1313 = vpack.c.b16 %v913, %v909
  %v1314 = vpack.c.b16 %v914, %v910
  %v1315 = vpack.c.b16 %v915, %v911
  %v1316 = vpack.c.b16 %v920, %v916
  %v1317 = vpack.c.b16 %v921, %v917
  %v1318 = vpack.c.b16 %v922, %v918
  %v1319 = vpack.c.b16 %v923, %v919
  %v1320 = vpack.c.b16 %v928, %v924
  %v1321 = vpack.c.b16 %v929, %v925
  %v1322 = vpack.c.b16 %v930, %v926
  %v1323 = vpack.c.b16 %v931, %v927
  %v1324 = vpack.c.b16 %v936, %v932
  %v1325 = vpack.c.b16 %v937, %v933
  %v1326 = vpack.c.b16 %v938, %v934
  %v1327 = vpack.c.b16 %v939, %v935
  %v1328 = vpack.c.b16 %v944, %v940
  %v1329 = vpack.c.b16 %v945, %v941
  %v1330 = vpack.c.b16 %v946, %v942
  %v1331 = vpack.c.b16 %v947, %v943
  %v1332 = vpack.c.b16 %v952, %v948
  %v1333 = vpack.c.b16 %v953, %v949
  %v1334 = vpack.c.b16 %v954, %v950
  %v1335 = vpack.c.b16 %v955, %v951
  %v1336 = vpack.c.b16 %v960, %v956
  %v1337 = vpack.c.b16 %v961, %v957
  %v1338 = vpack.c.b16 %v962, %v958
  %v1339 = vpack.c.b16 %v963, %v959
  %v1340 = vpack.c.b16 %v968, %v964
  %v1341 = vpack.c.b16 %v969, %v965
  %v1342 = vpack.c.b16 %v970, %v966
  %v1343 = vpack.c.b16 %v971, %v967
  %v1344 = vpack.c.b16 %v976, %v972
  %v1345 = vpack.c.b16 %v977, %v973
  %v1346 = vpack.c.b16 %v978, %v974
  %v1347 = vpack.c.b16 %v979, %v975
  %v1348 = vpack.c.b16 %v984, %v980
  %v1349 = vpack.c.b16 %v985, %v981
  %v1350 = vpack.c.b16 %v986, %v982
  %v1351 = vpack.c.b16 %v987, %v983
  %v1352 = vpack.c.b16 %v992, %v988
  %v1353 = vpack.c.b16 %v993, %v989
  %v1354 = vpack.c.b16 %v994, %v990
  %v1355 = vpack.c.b16 %v995, %v991
  %v1356 = vpack.c.b16 %v1000, %v996
  %v1357 = vpack.c.b16 %v1001, %v997
  %v1358 = vpack.c.b16 %v1002, %v998
  %v1359 = vpack.c.b16 %v1003, %v999
  %v1360 = vpack.c.b16 %v1008, %v1004
  %v1361 = vpack.c.b16 %v1009, %v1005
  %v1362 = vpack.c.b16 %v1010, %v1006
  %v1363 = vpack.c.b16 %v1011, %v1007
  %v1364 = vpack.c.b16 %v1016, %v1012
  %v1365 = vpack.c.b16 %v1017, %v1013
  %v1366 = vpack.c.b16 %v1018, %v1014
  %v1367 = vpack.c.b16 %v1019, %v1015
  %v1368 = vpack.c.b16 %v1024, %v1020
  %v1369 = vpack.c.b16 %v1025, %v1021
  %v1370 = vpack.c.b16 %v1026, %v1022
  %v1371 = vpack.c.b16 %v1027, %v1023
  %v1372 = vpack.c.b16 %v1032, %v1028
  %v1373 = vpack.c.b16 %v1033, %v1029
  %v1374 = vpack.c.b16 %v1034, %v1030
  %v1375 = vpack.c.b16 %v1035, %v1031
  %v1376 = vpack.c.b16 %v1040, %v1036
  %v1377 = vpack.c.b16 %v1041, %v1037
  %v1378 = vpack.c.b16 %v1042, %v1038
  %v1379 = vpack.c.b16 %v1043, %v1039
  %v1380 = vpack.c.b16 %v1048, %v1044
  %v1381 = vpack.c.b16 %v1049, %v1045
  %v1382 = vpack.c.b16 %v1050, %v1046
  %v1383 = vpack.c.b16 %v1051, %v1047
  %v1384 = vpack.c.b16 %v1056, %v1052
  %v1385 = vpack.c.b16 %v1057, %v1053
  %v1386 = vpack.c.b16 %v1058, %v1054
  %v1387 = vpack.c.b16 %v1059, %v1055
  %v1388 = vpack.c.b16 %v1064, %v1060
  %v1389 = vpack.c.b16 %v1065, %v1061
  %v1390 = vpack.c.b16 %v1066, %v1062
  %v1391 = vpack.c.b16 %v1067, %v1063
  %v1392 = vpack.c.b16 %v1072, %v1068
  %v1393 = vpack.c.b16 %v1073, %v1069
  %v1394 = vpack.c.b16 %v1074, %v1070
  %v1395 = vpack.c.b16 %v1075, %v1071
  %v1396 = vpack.c.b16 %v1080, %v1076
  %v1397 = vpack.c.b16 %v1081, %v1077
  %v1398 = vpack.c.b16 %v1082, %v1078
  %v1399 = vpack.c.b16 %v1083, %v1079
  %v1400 = vpack.c.b16 %v1088, %v1084
  %v1401 = vpack.c.b16 %v1089, %v1085
  %v1402 = vpack.c.b16 %v1090, %v1086
  %v1403 = vpack.c.b16 %v1091, %v1087
  %v1404 = vpack.c.b16 %v1096, %v1092
  %v1405 = vpack.c.b16 %v1097, %v1093
  %v1406 = vpack.c.b16 %v1098, %v1094
  %v1407 = vpack.c.b16 %v1099, %v1095
  %v1408 = vpack.c.b16 %v1104, %v1100
  %v1409 = vpack.c.b16 %v1105, %v1101
  %v1410 = vpack.c.b16 %v1106, %v1102
  %v1411 = vpack.c.b16 %v1107, %v1103
  %v1412 = vpack.c.b16 %v1112, %v1108
  %v1413 = vpack.c.b16 %v1113, %v1109
  %v1414 = vpack.c.b16 %v1114, %v1110
  %v1415 = vpack.c.b16 %v1115, %v1111
  %v1416 = vpack.c.b16 %v1120, %v1116
  %v1417 = vpack.c.b16 %v1121, %v1117
  %v1418 = vpack.c.b16 %v1122, %v1118
  %v1419 = vpack.c.b16 %v1123, %v1119
  %v1420 = vpack.c.b16 %v1128, %v1124
  %v1421 = vpack.c.b16 %v1129, %v1125
  %v1422 = vpack.c.b16 %v1130, %v1126
  %v1423 = vpack.c.b16 %v1131, %v1127
  %v1424 = vpack.c.b16 %v1136, %v1132
  %v1425 = vpack.c.b16 %v1137, %v1133
  %v1426 = vpack.c.b16 %v1138, %v1134
  %v1427 = vpack.c.b16 %v1139, %v1135
  %v1428 = vpack.c.b16 %v1144, %v1140
  %v1429 = vpack.c.b16 %v1145, %v1141
  %v1430 = vpack.c.b16 %v1146, %v1142
  %v1431 = vpack.c.b16 %v1147, %v1143
  %v1432 = vpack.c.b16 %v1152, %v1148
  %v1433 = vpack.c.b16 %v1153, %v1149
  %v1434 = vpack.c.b16 %v1154, %v1150
  %v1435 = vpack.c.b16 %v1155, %v1151
  %v1436 = vpack.c.b16 %v1160, %v1156
  %v1437 = vpack.c.b16 %v1161, %v1157
  %v1438 = vpack.c.b16 %v1162, %v1158
  %v1439 = vpack.c.b16 %v1163, %v1159
  %v1440 = vpack.c.b16 %v1168, %v1164
  %v1441 = vpack.c.b16 %v1169, %v1165
  %v1442 = vpack.c.b16 %v1170, %v1166
  %v1443 = vpack.c.b16 %v1171, %v1167
  %v1444 = vpack.c.b16 %v1176, %v1172
  %v1445 = vpack.c.b16 %v1177, %v1173
  %v1446 = vpack.c.b16 %v1178, %v1174
  %v1447 = vpack.c.b16 %v1179, %v1175
  %v1448 = vpack.c.b16 %v1184, %v1180
  %v1449 = vpack.c.b16 %v1185, %v1181
  %v1450 = vpack.c.b16 %v1186, %v1182
  %v1451 = vpack.c.b16 %v1187, %v1183
  %v1452 = vpack.c.b16 %v1192, %v1188
  %v1453 = vpack.c.b16 %v1193, %v1189
  %v1454 = vpack.c.b16 %v1194, %v1190
  %v1455 = vpack.c.b16 %v1195, %v1191
  %v1456 = vpack.c.b16 %v1200, %v1196
  %v1457 = vpack.c.b16 %v1201, %v1197
  %v1458 = vpack.c.b16 %v1202, %v1198
  %v1459 = vpack.c.b16 %v1203, %v1199
  %1716 = vmatprep.subr.bf16.mxu0 %v1205
  %1717 = vmatpush1.bf16.msra.mxu0 %v1204
  %1718 = vmatprep.subr.bf16.mxu0 %v1209
  %1719 = vmatpush1.bf16.msra.mxu0 %v1208
  %1720 = vmatprep.subr.bf16.mxu0 %v1213
  %1721 = vmatpush1.bf16.msra.mxu0 %v1212
  %1722 = vmatprep.subr.bf16.mxu0 %v1217
  %1723 = vmatpush1.bf16.msra.mxu0 %v1216
  %1724 = vmatprep.subr.bf16.mxu0 %v1221
  %1725 = vmatpush1.bf16.msra.mxu0 %v1220
  %1726 = vmatprep.subr.bf16.mxu0 %v1225
  %1727 = vmatpush1.bf16.msra.mxu0 %v1224
  %1728 = vmatprep.subr.bf16.mxu0 %v1229
  %1729 = vmatpush1.bf16.msra.mxu0 %v1228
  %1730 = vmatprep.subr.bf16.mxu0 %v1233
  %1731 = vmatpush1.bf16.msra.mxu0 %v1232
  %1732 = vmatprep.subr.bf16.mxu0 %v1237
  %1733 = vmatpush1.bf16.msra.mxu0 %v1236
  %1734 = vmatprep.subr.bf16.mxu0 %v1241
  %1735 = vmatpush1.bf16.msra.mxu0 %v1240
  %1736 = vmatprep.subr.bf16.mxu0 %v1245
  %1737 = vmatpush1.bf16.msra.mxu0 %v1244
  %1738 = vmatprep.subr.bf16.mxu0 %v1249
  %1739 = vmatpush1.bf16.msra.mxu0 %v1248
  %1740 = vmatprep.subr.bf16.mxu0 %v1253
  %1741 = vmatpush1.bf16.msra.mxu0 %v1252
  %1742 = vmatprep.subr.bf16.mxu0 %v1257
  %1743 = vmatpush1.bf16.msra.mxu0 %v1256
  %1744 = vmatprep.subr.bf16.mxu0 %v1261
  %1745 = vmatpush1.bf16.msra.mxu0 %v1260
  %1746 = vmatprep.subr.bf16.mxu0 %v1265
  %1747 = vmatpush1.bf16.msra.mxu0 %v1264
  %1748 = vmatprep.mubr.bf16.mxu0 %v151
  %1749 = vmatmul.mubr.bf16.gmra.mrb[0].mxu0 %v150
  %v1750 = vpop.f32.mrb[0].mxu0
  %v1751 = vadd.f32 %v419, %v1750
  %v1752 = vpop.f32.mrb[0].mxu0
  %v1753 = vadd.f32 %v423, %v1752
  %v1754 = vpop.f32.mrb[0].mxu0
  %v1755 = vpop.f32.mrb[0].mxu0
  %1756 = vdwg.mxu0
  %1757 = vmatprep.subr.bf16.mxu0 %v1269
  %1758 = vmatpush1.bf16.msra.mxu0 %v1268
  %1759 = vmatprep.subr.bf16.mxu0 %v1273
  %1760 = vmatpush1.bf16.msra.mxu0 %v1272
  %1761 = vmatprep.subr.bf16.mxu0 %v1277
  %1762 = vmatpush1.bf16.msra.mxu0 %v1276
  %1763 = vmatprep.subr.bf16.mxu0 %v1281
  %1764 = vmatpush1.bf16.msra.mxu0 %v1280
  %1765 = vmatprep.subr.bf16.mxu0 %v1285
  %1766 = vmatpush1.bf16.msra.mxu0 %v1284
  %1767 = vmatprep.subr.bf16.mxu0 %v1289
  %1768 = vmatpush1.bf16.msra.mxu0 %v1288
  %1769 = vmatprep.subr.bf16.mxu0 %v1293
  %1770 = vmatpush1.bf16.msra.mxu0 %v1292
  %1771 = vmatprep.subr.bf16.mxu0 %v1297
  %1772 = vmatpush1.bf16.msra.mxu0 %v1296
  %1773 = vmatprep.subr.bf16.mxu0 %v1301
  %1774 = vmatpush1.bf16.msra.mxu0 %v1300
  %1775 = vmatprep.subr.bf16.mxu0 %v1305
  %1776 = vmatpush1.bf16.msra.mxu0 %v1304
  %1777 = vmatprep.subr.bf16.mxu0 %v1309
  %1778 = vmatpush1.bf16.msra.mxu0 %v1308
  %1779 = vmatprep.subr.bf16.mxu0 %v1313
  %1780 = vmatpush1.bf16.msra.mxu0 %v1312
  %1781 = vmatprep.subr.bf16.mxu0 %v1317
  %1782 = vmatpush1.bf16.msra.mxu0 %v1316
  %1783 = vmatprep.subr.bf16.mxu0 %v1321
  %1784 = vmatpush1.bf16.msra.mxu0 %v1320
  %1785 = vmatprep.subr.bf16.mxu0 %v1325
  %1786 = vmatpush1.bf16.msra.mxu0 %v1324
  %1787 = vmatprep.subr.bf16.mxu0 %v1329
  %1788 = vmatpush1.bf16.msra.mxu0 %v1328
  %1789 = vmatprep.mubr.bf16.mxu0 %v153
  %1790 = vmatmul.mubr.bf16.gmra.mrb[0].mxu0 %v152
  %v1791 = vpop.f32.mrb[0].mxu0
  %v1792 = vadd.f32 %v1751, %v1791
  %v1793 = vpop.f32.mrb[0].mxu0
  %v1794 = vadd.f32 %v1753, %v1793
  %v1795 = vpop.f32.mrb[0].mxu0
  %v1796 = vpop.f32.mrb[0].mxu0
  %1797 = vdwg.mxu0
  %1798 = vmatprep.subr.bf16.mxu0 %v1333
  %1799 = vmatpush1.bf16.msra.mxu0 %v1332
  %1800 = vmatprep.subr.bf16.mxu0 %v1337
  %1801 = vmatpush1.bf16.msra.mxu0 %v1336
  %1802 = vmatprep.subr.bf16.mxu0 %v1341
  %1803 = vmatpush1.bf16.msra.mxu0 %v1340
  %1804 = vmatprep.subr.bf16.mxu0 %v1345
  %1805 = vmatpush1.bf16.msra.mxu0 %v1344
  %1806 = vmatprep.subr.bf16.mxu0 %v1349
  %1807 = vmatpush1.bf16.msra.mxu0 %v1348
  %1808 = vmatprep.subr.bf16.mxu0 %v1353
  %1809 = vmatpush1.bf16.msra.mxu0 %v1352
  %1810 = vmatprep.subr.bf16.mxu0 %v1357
  %1811 = vmatpush1.bf16.msra.mxu0 %v1356
  %1812 = vmatprep.subr.bf16.mxu0 %v1361
  %1813 = vmatpush1.bf16.msra.mxu0 %v1360
  %1814 = vmatprep.subr.bf16.mxu0 %v1365
  %1815 = vmatpush1.bf16.msra.mxu0 %v1364
  %1816 = vmatprep.subr.bf16.mxu0 %v1369
  %1817 = vmatpush1.bf16.msra.mxu0 %v1368
  %1818 = vmatprep.subr.bf16.mxu0 %v1373
  %1819 = vmatpush1.bf16.msra.mxu0 %v1372
  %1820 = vmatprep.subr.bf16.mxu0 %v1377
  %1821 = vmatpush1.bf16.msra.mxu0 %v1376
  %1822 = vmatprep.subr.bf16.mxu0 %v1381
  %1823 = vmatpush1.bf16.msra.mxu0 %v1380
  %1824 = vmatprep.subr.bf16.mxu0 %v1385
  %1825 = vmatpush1.bf16.msra.mxu0 %v1384
  %1826 = vmatprep.subr.bf16.mxu0 %v1389
  %1827 = vmatpush1.bf16.msra.mxu0 %v1388
  %1828 = vmatprep.subr.bf16.mxu0 %v1393
  %1829 = vmatpush1.bf16.msra.mxu0 %v1392
  %1830 = vmatprep.mubr.bf16.mxu0 %v155
  %1831 = vmatmul.mubr.bf16.gmra.mrb[0].mxu0 %v154
  %v1832 = vpop.f32.mrb[0].mxu0
  %v1833 = vadd.f32 %v1792, %v1832
  %v1834 = vpop.f32.mrb[0].mxu0
  %v1835 = vadd.f32 %v1794, %v1834
  %v1836 = vpop.f32.mrb[0].mxu0
  %v1837 = vpop.f32.mrb[0].mxu0
  %1838 = vdwg.mxu0
  %1839 = vmatprep.subr.bf16.mxu0 %v1397
  %1840 = vmatpush1.bf16.msra.mxu0 %v1396
  %1841 = vmatprep.subr.bf16.mxu0 %v1401
  %1842 = vmatpush1.bf16.msra.mxu0 %v1400
  %1843 = vmatprep.subr.bf16.mxu0 %v1405
  %1844 = vmatpush1.bf16.msra.mxu0 %v1404
  %1845 = vmatprep.subr.bf16.mxu0 %v1409
  %1846 = vmatpush1.bf16.msra.mxu0 %v1408
  %1847 = vmatprep.subr.bf16.mxu0 %v1413
  %1848 = vmatpush1.bf16.msra.mxu0 %v1412
  %1849 = vmatprep.subr.bf16.mxu0 %v1417
  %1850 = vmatpush1.bf16.msra.mxu0 %v1416
  %1851 = vmatprep.subr.bf16.mxu0 %v1421
  %1852 = vmatpush1.bf16.msra.mxu0 %v1420
  %1853 = vmatprep.subr.bf16.mxu0 %v1425
  %1854 = vmatpush1.bf16.msra.mxu0 %v1424
  %1855 = vmatprep.subr.bf16.mxu0 %v1429
  %1856 = vmatpush1.bf16.msra.mxu0 %v1428
  %1857 = vmatprep.subr.bf16.mxu0 %v1433
  %1858 = vmatpush1.bf16.msra.mxu0 %v1432
  %1859 = vmatprep.subr.bf16.mxu0 %v1437
  %1860 = vmatpush1.bf16.msra.mxu0 %v1436
  %1861 = vmatprep.subr.bf16.mxu0 %v1441
  %1862 = vmatpush1.bf16.msra.mxu0 %v1440
  %1863 = vmatprep.subr.bf16.mxu0 %v1445
  %1864 = vmatpush1.bf16.msra.mxu0 %v1444
  %1865 = vmatprep.subr.bf16.mxu0 %v1449
  %1866 = vmatpush1.bf16.msra.mxu0 %v1448
  %1867 = vmatprep.subr.bf16.mxu0 %v1453
  %1868 = vmatpush1.bf16.msra.mxu0 %v1452
  %1869 = vmatprep.subr.bf16.mxu0 %v1457
  %1870 = vmatpush1.bf16.msra.mxu0 %v1456
  %1871 = vmatprep.mubr.bf16.mxu0 %v157
  %1872 = vmatmul.mubr.bf16.gmra.mrb[0].mxu0 %v156
  %v1873 = vpop.f32.mrb[0].mxu0
  %v1874 = vadd.f32 %v1833, %v1873
  %v1875 = vpop.f32.mrb[0].mxu0
  %v1876 = vadd.f32 %v1835, %v1875
  %v1877 = vpop.f32.mrb[0].mxu0
  %v1878 = vpop.f32.mrb[0].mxu0
  %1879 = vdwg.mxu0
  %1880 = vmatprep.subr.bf16.mxu0 %v1207
  %1881 = vmatpush1.bf16.msra.mxu0 %v1206
  %1882 = vmatprep.subr.bf16.mxu0 %v1211
  %1883 = vmatpush1.bf16.msra.mxu0 %v1210
  %1884 = vmatprep.subr.bf16.mxu0 %v1215
  %1885 = vmatpush1.bf16.msra.mxu0 %v1214
  %1886 = vmatprep.subr.bf16.mxu0 %v1219
  %1887 = vmatpush1.bf16.msra.mxu0 %v1218
  %1888 = vmatprep.subr.bf16.mxu0 %v1223
  %1889 = vmatpush1.bf16.msra.mxu0 %v1222
  %1890 = vmatprep.subr.bf16.mxu0 %v1227
  %1891 = vmatpush1.bf16.msra.mxu0 %v1226
  %1892 = vmatprep.subr.bf16.mxu0 %v1231
  %1893 = vmatpush1.bf16.msra.mxu0 %v1230
  %1894 = vmatprep.subr.bf16.mxu0 %v1235
  %1895 = vmatpush1.bf16.msra.mxu0 %v1234
  %1896 = vmatprep.subr.bf16.mxu0 %v1239
  %1897 = vmatpush1.bf16.msra.mxu0 %v1238
  %1898 = vmatprep.subr.bf16.mxu0 %v1243
  %1899 = vmatpush1.bf16.msra.mxu0 %v1242
  %1900 = vmatprep.subr.bf16.mxu0 %v1247
  %1901 = vmatpush1.bf16.msra.mxu0 %v1246
  %1902 = vmatprep.subr.bf16.mxu0 %v1251
  %1903 = vmatpush1.bf16.msra.mxu0 %v1250
  %1904 = vmatprep.subr.bf16.mxu0 %v1255
  %1905 = vmatpush1.bf16.msra.mxu0 %v1254
  %1906 = vmatprep.subr.bf16.mxu0 %v1259
  %1907 = vmatpush1.bf16.msra.mxu0 %v1258
  %1908 = vmatprep.subr.bf16.mxu0 %v1263
  %1909 = vmatpush1.bf16.msra.mxu0 %v1262
  %1910 = vmatprep.subr.bf16.mxu0 %v1267
  %1911 = vmatpush1.bf16.msra.mxu0 %v1266
  %1912 = vmatprep.mubr.bf16.mxu0 %v151
  %1913 = vmatmul.mubr.bf16.gmra.mrb[0].mxu0 %v150
  %v1914 = vpop.f32.mrb[0].mxu0
  %v1915 = vadd.f32 %v427, %v1914
  %v1916 = vpop.f32.mrb[0].mxu0
  %v1917 = vadd.f32 %v431, %v1916
  %v1918 = vpop.f32.mrb[0].mxu0
  %v1919 = vpop.f32.mrb[0].mxu0
  %1920 = vdwg.mxu0
  %1921 = vmatprep.subr.bf16.mxu0 %v1271
  %1922 = vmatpush1.bf16.msra.mxu0 %v1270
  %1923 = vmatprep.subr.bf16.mxu0 %v1275
  %1924 = vmatpush1.bf16.msra.mxu0 %v1274
  %1925 = vmatprep.subr.bf16.mxu0 %v1279
  %1926 = vmatpush1.bf16.msra.mxu0 %v1278
  %1927 = vmatprep.subr.bf16.mxu0 %v1283
  %1928 = vmatpush1.bf16.msra.mxu0 %v1282
  %1929 = vmatprep.subr.bf16.mxu0 %v1287
  %1930 = vmatpush1.bf16.msra.mxu0 %v1286
  %1931 = vmatprep.subr.bf16.mxu0 %v1291
  %1932 = vmatpush1.bf16.msra.mxu0 %v1290
  %1933 = vmatprep.subr.bf16.mxu0 %v1295
  %1934 = vmatpush1.bf16.msra.mxu0 %v1294
  %1935 = vmatprep.subr.bf16.mxu0 %v1299
  %1936 = vmatpush1.bf16.msra.mxu0 %v1298
  %1937 = vmatprep.subr.bf16.mxu0 %v1303
  %1938 = vmatpush1.bf16.msra.mxu0 %v1302
  %1939 = vmatprep.subr.bf16.mxu0 %v1307
  %1940 = vmatpush1.bf16.msra.mxu0 %v1306
  %1941 = vmatprep.subr.bf16.mxu0 %v1311
  %1942 = vmatpush1.bf16.msra.mxu0 %v1310
  %1943 = vmatprep.subr.bf16.mxu0 %v1315
  %1944 = vmatpush1.bf16.msra.mxu0 %v1314
  %1945 = vmatprep.subr.bf16.mxu0 %v1319
  %1946 = vmatpush1.bf16.msra.mxu0 %v1318
  %1947 = vmatprep.subr.bf16.mxu0 %v1323
  %1948 = vmatpush1.bf16.msra.mxu0 %v1322
  %1949 = vmatprep.subr.bf16.mxu0 %v1327
  %1950 = vmatpush1.bf16.msra.mxu0 %v1326
  %1951 = vmatprep.subr.bf16.mxu0 %v1331
  %1952 = vmatpush1.bf16.msra.mxu0 %v1330
  %1953 = vmatprep.mubr.bf16.mxu0 %v153
  %1954 = vmatmul.mubr.bf16.gmra.mrb[0].mxu0 %v152
  %v1955 = vpop.f32.mrb[0].mxu0
  %v1956 = vadd.f32 %v1915, %v1955
  %v1957 = vpop.f32.mrb[0].mxu0
  %v1958 = vadd.f32 %v1917, %v1957
  %v1959 = vpop.f32.mrb[0].mxu0
  %v1960 = vpop.f32.mrb[0].mxu0
  %1961 = vdwg.mxu0
  %1962 = vmatprep.subr.bf16.mxu0 %v1335
  %1963 = vmatpush1.bf16.msra.mxu0 %v1334
  %1964 = vmatprep.subr.bf16.mxu0 %v1339
  %1965 = vmatpush1.bf16.msra.mxu0 %v1338
  %1966 = vmatprep.subr.bf16.mxu0 %v1343
  %1967 = vmatpush1.bf16.msra.mxu0 %v1342
  %1968 = vmatprep.subr.bf16.mxu0 %v1347
  %1969 = vmatpush1.bf16.msra.mxu0 %v1346
  %1970 = vmatprep.subr.bf16.mxu0 %v1351
  %1971 = vmatpush1.bf16.msra.mxu0 %v1350
  %1972 = vmatprep.subr.bf16.mxu0 %v1355
  %1973 = vmatpush1.bf16.msra.mxu0 %v1354
  %1974 = vmatprep.subr.bf16.mxu0 %v1359
  %1975 = vmatpush1.bf16.msra.mxu0 %v1358
  %1976 = vmatprep.subr.bf16.mxu0 %v1363
  %1977 = vmatpush1.bf16.msra.mxu0 %v1362
  %1978 = vmatprep.subr.bf16.mxu0 %v1367
  %1979 = vmatpush1.bf16.msra.mxu0 %v1366
  %1980 = vmatprep.subr.bf16.mxu0 %v1371
  %1981 = vmatpush1.bf16.msra.mxu0 %v1370
  %1982 = vmatprep.subr.bf16.mxu0 %v1375
  %1983 = vmatpush1.bf16.msra.mxu0 %v1374
  %1984 = vmatprep.subr.bf16.mxu0 %v1379
  %1985 = vmatpush1.bf16.msra.mxu0 %v1378
  %1986 = vmatprep.subr.bf16.mxu0 %v1383
  %1987 = vmatpush1.bf16.msra.mxu0 %v1382
  %1988 = vmatprep.subr.bf16.mxu0 %v1387
  %1989 = vmatpush1.bf16.msra.mxu0 %v1386
  %1990 = vmatprep.subr.bf16.mxu0 %v1391
  %1991 = vmatpush1.bf16.msra.mxu0 %v1390
  %1992 = vmatprep.subr.bf16.mxu0 %v1395
  %1993 = vmatpush1.bf16.msra.mxu0 %v1394
  %1994 = vmatprep.mubr.bf16.mxu0 %v155
  %1995 = vmatmul.mubr.bf16.gmra.mrb[0].mxu0 %v154
  %v1996 = vpop.f32.mrb[0].mxu0
  %v1997 = vadd.f32 %v1956, %v1996
  %v1998 = vpop.f32.mrb[0].mxu0
  %v1999 = vadd.f32 %v1958, %v1998
  %v2000 = vpop.f32.mrb[0].mxu0
  %v2001 = vpop.f32.mrb[0].mxu0
  %2002 = vdwg.mxu0
  %2003 = vmatprep.subr.bf16.mxu0 %v1399
  %2004 = vmatpush1.bf16.msra.mxu0 %v1398
  %2005 = vmatprep.subr.bf16.mxu0 %v1403
  %2006 = vmatpush1.bf16.msra.mxu0 %v1402
  %2007 = vmatprep.subr.bf16.mxu0 %v1407
  %2008 = vmatpush1.bf16.msra.mxu0 %v1406
  %2009 = vmatprep.subr.bf16.mxu0 %v1411
  %2010 = vmatpush1.bf16.msra.mxu0 %v1410
  %2011 = vmatprep.subr.bf16.mxu0 %v1415
  %2012 = vmatpush1.bf16.msra.mxu0 %v1414
  %2013 = vmatprep.subr.bf16.mxu0 %v1419
  %2014 = vmatpush1.bf16.msra.mxu0 %v1418
  %2015 = vmatprep.subr.bf16.mxu0 %v1423
  %2016 = vmatpush1.bf16.msra.mxu0 %v1422
  %2017 = vmatprep.subr.bf16.mxu0 %v1427
  %2018 = vmatpush1.bf16.msra.mxu0 %v1426
  %2019 = vmatprep.subr.bf16.mxu0 %v1431
  %2020 = vmatpush1.bf16.msra.mxu0 %v1430
  %2021 = vmatprep.subr.bf16.mxu0 %v1435
  %2022 = vmatpush1.bf16.msra.mxu0 %v1434
  %2023 = vmatprep.subr.bf16.mxu0 %v1439
  %2024 = vmatpush1.bf16.msra.mxu0 %v1438
  %2025 = vmatprep.subr.bf16.mxu0 %v1443
  %2026 = vmatpush1.bf16.msra.mxu0 %v1442
  %2027 = vmatprep.subr.bf16.mxu0 %v1447
  %2028 = vmatpush1.bf16.msra.mxu0 %v1446
  %2029 = vmatprep.subr.bf16.mxu0 %v1451
  %2030 = vmatpush1.bf16.msra.mxu0 %v1450
  %2031 = vmatprep.subr.bf16.mxu0 %v1455
  %2032 = vmatpush1.bf16.msra.mxu0 %v1454
  %2033 = vmatprep.subr.bf16.mxu0 %v1459
  %2034 = vmatpush1.bf16.msra.mxu0 %v1458
  %2035 = vmatprep.mubr.bf16.mxu0 %v157
  %2036 = vmatmul.mubr.bf16.gmra.mrb[0].mxu0 %v156
  %v2037 = vpop.f32.mrb[0].mxu0
  %v2038 = vadd.f32 %v1997, %v2037
  %v2039 = vpop.f32.mrb[0].mxu0
  %v2040 = vadd.f32 %v1999, %v2039
  %v2041 = vpop.f32.mrb[0].mxu0
  %v2042 = vpop.f32.mrb[0].mxu0
  %2043 = vdwg.mxu0
  %v2044 = vmax.f32 %v1874, 0.0
  %v2045 = vmax.f32 %v1876, 0.0
  %v2046 = vmax.f32 %v2038, 0.0
  %v2047 = vmax.f32 %v2040, 0.0
  %v2048 = vpack.c.bf16 %v2044, %v2044
  %v2049 = vpack.c.bf16 %v2045, %v2045
  %v2050 = vpack.c.bf16 %v2046, %v2046
  %v2051 = vpack.c.bf16 %v2047, %v2047
  %v2052 = vld [vmem:[%s4] sm:$0xff]
  %v2053 = vld [vmem:[%s4 + $0x8] sm:$0xff]
  %v2054 = vld [vmem:[%s4 + $0x10] sm:$0xff]
  %v2055 = vld [vmem:[%s4 + $0x18] sm:$0xff]
  %v2056 = vld [vmem:[%s4 + $0x20] sm:$0xff]
  %v2057 = vld [vmem:[%s4 + $0x28] sm:$0xff]
  %v2058 = vld [vmem:[%s4 + $0x30] sm:$0xff]
  %v2059 = vld [vmem:[%s4 + $0x38] sm:$0xff]
  %v2060 = vld [vmem:[%s4 + $0x40] sm:$0xff]
  %v2061 = vld [vmem:[%s4 + $0x48] sm:$0xff]
  %v2062 = vld [vmem:[%s4 + $0x50] sm:$0xff]
  %v2063 = vld [vmem:[%s4 + $0x58] sm:$0xff]
  %v2064 = vld [vmem:[%s4 + $0x60] sm:$0xff]
  %v2065 = vld [vmem:[%s4 + $0x68] sm:$0xff]
  %v2066 = vld [vmem:[%s4 + $0x70] sm:$0xff]
  %v2067 = vld [vmem:[%s4 + $0x78] sm:$0xff]
  %v2068 = vld [vmem:[%s4 + $0x80] sm:$0xff]
  %v2069 = vld [vmem:[%s4 + $0x88] sm:$0xff]
  %v2070 = vld [vmem:[%s4 + $0x90] sm:$0xff]
  %v2071 = vld [vmem:[%s4 + $0x98] sm:$0xff]
  %v2072 = vld [vmem:[%s4 + $0xa0] sm:$0xff]
  %v2073 = vld [vmem:[%s4 + $0xa8] sm:$0xff]
  %v2074 = vld [vmem:[%s4 + $0xb0] sm:$0xff]
  %v2075 = vld [vmem:[%s4 + $0xb8] sm:$0xff]
  %v2076 = vld [vmem:[%s4 + $0xc0] sm:$0xff]
  %v2077 = vld [vmem:[%s4 + $0xc8] sm:$0xff]
  %v2078 = vld [vmem:[%s4 + $0xd0] sm:$0xff]
  %v2079 = vld [vmem:[%s4 + $0xd8] sm:$0xff]
  %v2080 = vld [vmem:[%s4 + $0xe0] sm:$0xff]
  %v2081 = vld [vmem:[%s4 + $0xe8] sm:$0xff]
  %v2082 = vld [vmem:[%s4 + $0xf0] sm:$0xff]
  %v2083 = vld [vmem:[%s4 + $0xf8] sm:$0xff]
  %v2084 = vld [vmem:[%s4 + $0x100] sm:$0xff]
  %v2085 = vld [vmem:[%s4 + $0x108] sm:$0xff]
  %v2086 = vld [vmem:[%s4 + $0x110] sm:$0xff]
  %v2087 = vld [vmem:[%s4 + $0x118] sm:$0xff]
  %v2088 = vld [vmem:[%s4 + $0x120] sm:$0xff]
  %v2089 = vld [vmem:[%s4 + $0x128] sm:$0xff]
  %v2090 = vld [vmem:[%s4 + $0x130] sm:$0xff]
  %v2091 = vld [vmem:[%s4 + $0x138] sm:$0xff]
  %v2092 = vld [vmem:[%s4 + $0x140] sm:$0xff]
  %v2093 = vld [vmem:[%s4 + $0x148] sm:$0xff]
  %v2094 = vld [vmem:[%s4 + $0x150] sm:$0xff]
  %v2095 = vld [vmem:[%s4 + $0x158] sm:$0xff]
  %v2096 = vld [vmem:[%s4 + $0x160] sm:$0xff]
  %v2097 = vld [vmem:[%s4 + $0x168] sm:$0xff]
  %v2098 = vld [vmem:[%s4 + $0x170] sm:$0xff]
  %v2099 = vld [vmem:[%s4 + $0x178] sm:$0xff]
  %v2100 = vld [vmem:[%s4 + $0x180] sm:$0xff]
  %v2101 = vld [vmem:[%s4 + $0x188] sm:$0xff]
  %v2102 = vld [vmem:[%s4 + $0x190] sm:$0xff]
  %v2103 = vld [vmem:[%s4 + $0x198] sm:$0xff]
  %v2104 = vld [vmem:[%s4 + $0x1a0] sm:$0xff]
  %v2105 = vld [vmem:[%s4 + $0x1a8] sm:$0xff]
  %v2106 = vld [vmem:[%s4 + $0x1b0] sm:$0xff]
  %v2107 = vld [vmem:[%s4 + $0x1b8] sm:$0xff]
  %v2108 = vld [vmem:[%s4 + $0x1c0] sm:$0xff]
  %v2109 = vld [vmem:[%s4 + $0x1c8] sm:$0xff]
  %v2110 = vld [vmem:[%s4 + $0x1d0] sm:$0xff]
  %v2111 = vld [vmem:[%s4 + $0x1d8] sm:$0xff]
  %v2112 = vld [vmem:[%s4 + $0x1e0] sm:$0xff]
  %v2113 = vld [vmem:[%s4 + $0x1e8] sm:$0xff]
  %v2114 = vld [vmem:[%s4 + $0x1f0] sm:$0xff]
  %v2115 = vld [vmem:[%s4 + $0x1f8] sm:$0xff]
  %v2116 = vld [vmem:[%s5] sm:$0x3]
  %v2118 = vlaneseq
  %v2119 = vshrl.u32 %v2118, 7
  %v2120 = vsub.s32 0, %v2119
  %v2121 = vrot.slane %v2116, %v2120
  %v2122 = vlaneseq
  %v2123 = vshrl.u32 %v2122, 7
  %v2124 = vsub.s32 1, %v2123
  %v2125 = vrot.slane %v2116, %v2124
  %v2192 = vunpack.c.l.b16 %v2052
  %v2193 = vunpack.c.h.b16 %v2052
  %v2194 = vunpack.c.l.b16 %v2053
  %v2195 = vunpack.c.h.b16 %v2053
  %v2196 = vunpack.c.l.b16 %v2054
  %v2197 = vunpack.c.h.b16 %v2054
  %v2198 = vunpack.c.l.b16 %v2055
  %v2199 = vunpack.c.h.b16 %v2055
  %v2200 = vunpack.c.l.b16 %v2056
  %v2201 = vunpack.c.h.b16 %v2056
  %v2202 = vunpack.c.l.b16 %v2057
  %v2203 = vunpack.c.h.b16 %v2057
  %v2204 = vunpack.c.l.b16 %v2058
  %v2205 = vunpack.c.h.b16 %v2058
  %v2206 = vunpack.c.l.b16 %v2059
  %v2207 = vunpack.c.h.b16 %v2059
  %v2208 = vunpack.c.l.b16 %v2060
  %v2209 = vunpack.c.h.b16 %v2060
  %v2210 = vunpack.c.l.b16 %v2061
  %v2211 = vunpack.c.h.b16 %v2061
  %v2212 = vunpack.c.l.b16 %v2062
  %v2213 = vunpack.c.h.b16 %v2062
  %v2214 = vunpack.c.l.b16 %v2063
  %v2215 = vunpack.c.h.b16 %v2063
  %v2216 = vunpack.c.l.b16 %v2064
  %v2217 = vunpack.c.h.b16 %v2064
  %v2218 = vunpack.c.l.b16 %v2065
  %v2219 = vunpack.c.h.b16 %v2065
  %v2220 = vunpack.c.l.b16 %v2066
  %v2221 = vunpack.c.h.b16 %v2066
  %v2222 = vunpack.c.l.b16 %v2067
  %v2223 = vunpack.c.h.b16 %v2067
  %v2224 = vunpack.c.l.b16 %v2068
  %v2225 = vunpack.c.h.b16 %v2068
  %v2226 = vunpack.c.l.b16 %v2069
  %v2227 = vunpack.c.h.b16 %v2069
  %v2228 = vunpack.c.l.b16 %v2070
  %v2229 = vunpack.c.h.b16 %v2070
  %v2230 = vunpack.c.l.b16 %v2071
  %v2231 = vunpack.c.h.b16 %v2071
  %v2232 = vunpack.c.l.b16 %v2072
  %v2233 = vunpack.c.h.b16 %v2072
  %v2234 = vunpack.c.l.b16 %v2073
  %v2235 = vunpack.c.h.b16 %v2073
  %v2236 = vunpack.c.l.b16 %v2074
  %v2237 = vunpack.c.h.b16 %v2074
  %v2238 = vunpack.c.l.b16 %v2075
  %v2239 = vunpack.c.h.b16 %v2075
  %v2240 = vunpack.c.l.b16 %v2076
  %v2241 = vunpack.c.h.b16 %v2076
  %v2242 = vunpack.c.l.b16 %v2077
  %v2243 = vunpack.c.h.b16 %v2077
  %v2244 = vunpack.c.l.b16 %v2078
  %v2245 = vunpack.c.h.b16 %v2078
  %v2246 = vunpack.c.l.b16 %v2079
  %v2247 = vunpack.c.h.b16 %v2079
  %v2248 = vunpack.c.l.b16 %v2080
  %v2249 = vunpack.c.h.b16 %v2080
  %v2250 = vunpack.c.l.b16 %v2081
  %v2251 = vunpack.c.h.b16 %v2081
  %v2252 = vunpack.c.l.b16 %v2082
  %v2253 = vunpack.c.h.b16 %v2082
  %v2254 = vunpack.c.l.b16 %v2083
  %v2255 = vunpack.c.h.b16 %v2083
  %v2256 = vunpack.c.l.b16 %v2084
  %v2257 = vunpack.c.h.b16 %v2084
  %v2258 = vunpack.c.l.b16 %v2085
  %v2259 = vunpack.c.h.b16 %v2085
  %v2260 = vunpack.c.l.b16 %v2086
  %v2261 = vunpack.c.h.b16 %v2086
  %v2262 = vunpack.c.l.b16 %v2087
  %v2263 = vunpack.c.h.b16 %v2087
  %v2264 = vunpack.c.l.b16 %v2088
  %v2265 = vunpack.c.h.b16 %v2088
  %v2266 = vunpack.c.l.b16 %v2089
  %v2267 = vunpack.c.h.b16 %v2089
  %v2268 = vunpack.c.l.b16 %v2090
  %v2269 = vunpack.c.h.b16 %v2090
  %v2270 = vunpack.c.l.b16 %v2091
  %v2271 = vunpack.c.h.b16 %v2091
  %v2272 = vunpack.c.l.b16 %v2092
  %v2273 = vunpack.c.h.b16 %v2092
  %v2274 = vunpack.c.l.b16 %v2093
  %v2275 = vunpack.c.h.b16 %v2093
  %v2276 = vunpack.c.l.b16 %v2094
  %v2277 = vunpack.c.h.b16 %v2094
  %v2278 = vunpack.c.l.b16 %v2095
  %v2279 = vunpack.c.h.b16 %v2095
  %v2280 = vunpack.c.l.b16 %v2096
  %v2281 = vunpack.c.h.b16 %v2096
  %v2282 = vunpack.c.l.b16 %v2097
  %v2283 = vunpack.c.h.b16 %v2097
  %v2284 = vunpack.c.l.b16 %v2098
  %v2285 = vunpack.c.h.b16 %v2098
  %v2286 = vunpack.c.l.b16 %v2099
  %v2287 = vunpack.c.h.b16 %v2099
  %v2288 = vunpack.c.l.b16 %v2100
  %v2289 = vunpack.c.h.b16 %v2100
  %v2290 = vunpack.c.l.b16 %v2101
  %v2291 = vunpack.c.h.b16 %v2101
  %v2292 = vunpack.c.l.b16 %v2102
  %v2293 = vunpack.c.h.b16 %v2102
  %v2294 = vunpack.c.l.b16 %v2103
  %v2295 = vunpack.c.h.b16 %v2103
  %v2296 = vunpack.c.l.b16 %v2104
  %v2297 = vunpack.c.h.b16 %v2104
  %v2298 = vunpack.c.l.b16 %v2105
  %v2299 = vunpack.c.h.b16 %v2105
  %v2300 = vunpack.c.l.b16 %v2106
  %v2301 = vunpack.c.h.b16 %v2106
  %v2302 = vunpack.c.l.b16 %v2107
  %v2303 = vunpack.c.h.b16 %v2107
  %v2304 = vunpack.c.l.b16 %v2108
  %v2305 = vunpack.c.h.b16 %v2108
  %v2306 = vunpack.c.l.b16 %v2109
  %v2307 = vunpack.c.h.b16 %v2109
  %v2308 = vunpack.c.l.b16 %v2110
  %v2309 = vunpack.c.h.b16 %v2110
  %v2310 = vunpack.c.l.b16 %v2111
  %v2311 = vunpack.c.h.b16 %v2111
  %v2312 = vunpack.c.l.b16 %v2112
  %v2313 = vunpack.c.h.b16 %v2112
  %v2314 = vunpack.c.l.b16 %v2113
  %v2315 = vunpack.c.h.b16 %v2113
  %v2316 = vunpack.c.l.b16 %v2114
  %v2317 = vunpack.c.h.b16 %v2114
  %v2318 = vunpack.c.l.b16 %v2115
  %v2319 = vunpack.c.h.b16 %v2115
  %v2320 = vpack.c.b16 %v2194, %v2192
  %v2321 = vpack.c.b16 %v2195, %v2193
  %v2322 = vpack.c.b16 %v2198, %v2196
  %v2323 = vpack.c.b16 %v2199, %v2197
  %v2324 = vpack.c.b16 %v2202, %v2200
  %v2325 = vpack.c.b16 %v2203, %v2201
  %v2326 = vpack.c.b16 %v2206, %v2204
  %v2327 = vpack.c.b16 %v2207, %v2205
  %v2328 = vpack.c.b16 %v2210, %v2208
  %v2329 = vpack.c.b16 %v2211, %v2209
  %v2330 = vpack.c.b16 %v2214, %v2212
  %v2331 = vpack.c.b16 %v2215, %v2213
  %v2332 = vpack.c.b16 %v2218, %v2216
  %v2333 = vpack.c.b16 %v2219, %v2217
  %v2334 = vpack.c.b16 %v2222, %v2220
  %v2335 = vpack.c.b16 %v2223, %v2221
  %v2336 = vpack.c.b16 %v2226, %v2224
  %v2337 = vpack.c.b16 %v2227, %v2225
  %v2338 = vpack.c.b16 %v2230, %v2228
  %v2339 = vpack.c.b16 %v2231, %v2229
  %v2340 = vpack.c.b16 %v2234, %v2232
  %v2341 = vpack.c.b16 %v2235, %v2233
  %v2342 = vpack.c.b16 %v2238, %v2236
  %v2343 = vpack.c.b16 %v2239, %v2237
  %v2344 = vpack.c.b16 %v2242, %v2240
  %v2345 = vpack.c.b16 %v2243, %v2241
  %v2346 = vpack.c.b16 %v2246, %v2244
  %v2347 = vpack.c.b16 %v2247, %v2245
  %v2348 = vpack.c.b16 %v2250, %v2248
  %v2349 = vpack.c.b16 %v2251, %v2249
  %v2350 = vpack.c.b16 %v2254, %v2252
  %v2351 = vpack.c.b16 %v2255, %v2253
  %v2352 = vpack.c.b16 %v2258, %v2256
  %v2353 = vpack.c.b16 %v2259, %v2257
  %v2354 = vpack.c.b16 %v2262, %v2260
  %v2355 = vpack.c.b16 %v2263, %v2261
  %v2356 = vpack.c.b16 %v2266, %v2264
  %v2357 = vpack.c.b16 %v2267, %v2265
  %v2358 = vpack.c.b16 %v2270, %v2268
  %v2359 = vpack.c.b16 %v2271, %v2269
  %v2360 = vpack.c.b16 %v2274, %v2272
  %v2361 = vpack.c.b16 %v2275, %v2273
  %v2362 = vpack.c.b16 %v2278, %v2276
  %v2363 = vpack.c.b16 %v2279, %v2277
  %v2364 = vpack.c.b16 %v2282, %v2280
  %v2365 = vpack.c.b16 %v2283, %v2281
  %v2366 = vpack.c.b16 %v2286, %v2284
  %v2367 = vpack.c.b16 %v2287, %v2285
  %v2368 = vpack.c.b16 %v2290, %v2288
  %v2369 = vpack.c.b16 %v2291, %v2289
  %v2370 = vpack.c.b16 %v2294, %v2292
  %v2371 = vpack.c.b16 %v2295, %v2293
  %v2372 = vpack.c.b16 %v2298, %v2296
  %v2373 = vpack.c.b16 %v2299, %v2297
  %v2374 = vpack.c.b16 %v2302, %v2300
  %v2375 = vpack.c.b16 %v2303, %v2301
  %v2376 = vpack.c.b16 %v2306, %v2304
  %v2377 = vpack.c.b16 %v2307, %v2305
  %v2378 = vpack.c.b16 %v2310, %v2308
  %v2379 = vpack.c.b16 %v2311, %v2309
  %v2380 = vpack.c.b16 %v2314, %v2312
  %v2381 = vpack.c.b16 %v2315, %v2313
  %v2382 = vpack.c.b16 %v2318, %v2316
  %v2383 = vpack.c.b16 %v2319, %v2317
  %2448 = vmatprep.subr.bf16.mxu0 %v2321
  %2449 = vmatpush1.bf16.msra.mxu0 %v2320
  %2450 = vmatprep.subr.bf16.mxu0 %v2323
  %2451 = vmatpush1.bf16.msra.mxu0 %v2322
  %2452 = vmatprep.subr.bf16.mxu0 %v2325
  %2453 = vmatpush1.bf16.msra.mxu0 %v2324
  %2454 = vmatprep.subr.bf16.mxu0 %v2327
  %2455 = vmatpush1.bf16.msra.mxu0 %v2326
  %2456 = vmatprep.subr.bf16.mxu0 %v2329
  %2457 = vmatpush1.bf16.msra.mxu0 %v2328
  %2458 = vmatprep.subr.bf16.mxu0 %v2331
  %2459 = vmatpush1.bf16.msra.mxu0 %v2330
  %2460 = vmatprep.subr.bf16.mxu0 %v2333
  %2461 = vmatpush1.bf16.msra.mxu0 %v2332
  %2462 = vmatprep.subr.bf16.mxu0 %v2335
  %2463 = vmatpush1.bf16.msra.mxu0 %v2334
  %2464 = vmatprep.subr.bf16.mxu0 %v2337
  %2465 = vmatpush1.bf16.msra.mxu0 %v2336
  %2466 = vmatprep.subr.bf16.mxu0 %v2339
  %2467 = vmatpush1.bf16.msra.mxu0 %v2338
  %2468 = vmatprep.subr.bf16.mxu0 %v2341
  %2469 = vmatpush1.bf16.msra.mxu0 %v2340
  %2470 = vmatprep.subr.bf16.mxu0 %v2343
  %2471 = vmatpush1.bf16.msra.mxu0 %v2342
  %2472 = vmatprep.subr.bf16.mxu0 %v2345
  %2473 = vmatpush1.bf16.msra.mxu0 %v2344
  %2474 = vmatprep.subr.bf16.mxu0 %v2347
  %2475 = vmatpush1.bf16.msra.mxu0 %v2346
  %2476 = vmatprep.subr.bf16.mxu0 %v2349
  %2477 = vmatpush1.bf16.msra.mxu0 %v2348
  %2478 = vmatprep.subr.bf16.mxu0 %v2351
  %2479 = vmatpush1.bf16.msra.mxu0 %v2350
  %2480 = vmatprep.mubr.bf16.mxu0 %v2049
  %2481 = vmatmul.mubr.bf16.gmra.mrb[0].mxu0 %v2048
  %v2482 = vpop.f32.mrb[0].mxu0
  %v2483 = vadd.f32 %v2121, %v2482
  %v2484 = vpop.f32.mrb[0].mxu0
  %v2485 = vadd.f32 %v2125, %v2484
  %v2486 = vpop.f32.mrb[0].mxu0
  %v2487 = vpop.f32.mrb[0].mxu0
  %2488 = vdwg.mxu0
  %2489 = vmatprep.subr.bf16.mxu0 %v2353
  %2490 = vmatpush1.bf16.msra.mxu0 %v2352
  %2491 = vmatprep.subr.bf16.mxu0 %v2355
  %2492 = vmatpush1.bf16.msra.mxu0 %v2354
  %2493 = vmatprep.subr.bf16.mxu0 %v2357
  %2494 = vmatpush1.bf16.msra.mxu0 %v2356
  %2495 = vmatprep.subr.bf16.mxu0 %v2359
  %2496 = vmatpush1.bf16.msra.mxu0 %v2358
  %2497 = vmatprep.subr.bf16.mxu0 %v2361
  %2498 = vmatpush1.bf16.msra.mxu0 %v2360
  %2499 = vmatprep.subr.bf16.mxu0 %v2363
  %2500 = vmatpush1.bf16.msra.mxu0 %v2362
  %2501 = vmatprep.subr.bf16.mxu0 %v2365
  %2502 = vmatpush1.bf16.msra.mxu0 %v2364
  %2503 = vmatprep.subr.bf16.mxu0 %v2367
  %2504 = vmatpush1.bf16.msra.mxu0 %v2366
  %2505 = vmatprep.subr.bf16.mxu0 %v2369
  %2506 = vmatpush1.bf16.msra.mxu0 %v2368
  %2507 = vmatprep.subr.bf16.mxu0 %v2371
  %2508 = vmatpush1.bf16.msra.mxu0 %v2370
  %2509 = vmatprep.subr.bf16.mxu0 %v2373
  %2510 = vmatpush1.bf16.msra.mxu0 %v2372
  %2511 = vmatprep.subr.bf16.mxu0 %v2375
  %2512 = vmatpush1.bf16.msra.mxu0 %v2374
  %2513 = vmatprep.subr.bf16.mxu0 %v2377
  %2514 = vmatpush1.bf16.msra.mxu0 %v2376
  %2515 = vmatprep.subr.bf16.mxu0 %v2379
  %2516 = vmatpush1.bf16.msra.mxu0 %v2378
  %2517 = vmatprep.subr.bf16.mxu0 %v2381
  %2518 = vmatpush1.bf16.msra.mxu0 %v2380
  %2519 = vmatprep.subr.bf16.mxu0 %v2383
  %2520 = vmatpush1.bf16.msra.mxu0 %v2382
  %2521 = vmatprep.mubr.bf16.mxu0 %v2051
  %2522 = vmatmul.mubr.bf16.gmra.mrb[0].mxu0 %v2050
  %v2523 = vpop.f32.mrb[0].mxu0
  %v2524 = vadd.f32 %v2483, %v2523
  %v2525 = vpop.f32.mrb[0].mxu0
  %v2526 = vadd.f32 %v2485, %v2525
  %v2527 = vpop.f32.mrb[0].mxu0
  %v2528 = vpop.f32.mrb[0].mxu0
  %2529 = vdwg.mxu0
  %v2530 = vmax.f32 %v2524, 0.0
  %v2531 = vmax.f32 %v2526, 0.0
  %v2532 = vpack.c.bf16 %v2530, %v2530
  %v2533 = vpack.c.bf16 %v2531, %v2531
  %v2534 = vld [vmem:[%s6] sm:$0xf]
  %v2535 = vld [vmem:[%s6 + $0x4] sm:$0xf]
  %v2536 = vld [vmem:[%s6 + $0x8] sm:$0xf]
  %v2537 = vld [vmem:[%s6 + $0xc] sm:$0xf]
  %v2538 = vld [vmem:[%s6 + $0x10] sm:$0xf]
  %v2539 = vld [vmem:[%s6 + $0x14] sm:$0xf]
  %v2540 = vld [vmem:[%s6 + $0x18] sm:$0xf]
  %v2541 = vld [vmem:[%s6 + $0x1c] sm:$0xf]
  %v2542 = vld [vmem:[%s6 + $0x20] sm:$0xf]
  %v2543 = vld [vmem:[%s6 + $0x24] sm:$0xf]
  %v2544 = vld [vmem:[%s6 + $0x28] sm:$0xf]
  %v2545 = vld [vmem:[%s6 + $0x2c] sm:$0xf]
  %v2546 = vld [vmem:[%s6 + $0x30] sm:$0xf]
  %v2547 = vld [vmem:[%s6 + $0x34] sm:$0xf]
  %v2548 = vld [vmem:[%s6 + $0x38] sm:$0xf]
  %v2549 = vld [vmem:[%s6 + $0x3c] sm:$0xf]
  %v2550 = vld [vmem:[%s6 + $0x40] sm:$0xf]
  %v2551 = vld [vmem:[%s6 + $0x44] sm:$0xf]
  %v2552 = vld [vmem:[%s6 + $0x48] sm:$0xf]
  %v2553 = vld [vmem:[%s6 + $0x4c] sm:$0xf]
  %v2554 = vld [vmem:[%s6 + $0x50] sm:$0xf]
  %v2555 = vld [vmem:[%s6 + $0x54] sm:$0xf]
  %v2556 = vld [vmem:[%s6 + $0x58] sm:$0xf]
  %v2557 = vld [vmem:[%s6 + $0x5c] sm:$0xf]
  %v2558 = vld [vmem:[%s6 + $0x60] sm:$0xf]
  %v2559 = vld [vmem:[%s6 + $0x64] sm:$0xf]
  %v2560 = vld [vmem:[%s6 + $0x68] sm:$0xf]
  %v2561 = vld [vmem:[%s6 + $0x6c] sm:$0xf]
  %v2562 = vld [vmem:[%s6 + $0x70] sm:$0xf]
  %v2563 = vld [vmem:[%s6 + $0x74] sm:$0xf]
  %v2564 = vld [vmem:[%s6 + $0x78] sm:$0xf]
  %v2565 = vld [vmem:[%s6 + $0x7c] sm:$0xf]
  %v2566 = vld [vmem:[%s7] sm:$0x1]
  %v2568 = vlaneseq
  %v2569 = vshrl.u32 %v2568, 7
  %v2570 = vsub.s32 0, %v2569
  %v2571 = vrot.slane %v2566, %v2570
  %v2605 = vunpack.c.l.b16 %v2534
  %v2606 = vunpack.c.l.b16 %v2535
  %v2607 = vunpack.c.l.b16 %v2536
  %v2608 = vunpack.c.l.b16 %v2537
  %v2609 = vunpack.c.l.b16 %v2538
  %v2610 = vunpack.c.l.b16 %v2539
  %v2611 = vunpack.c.l.b16 %v2540
  %v2612 = vunpack.c.l.b16 %v2541
  %v2613 = vunpack.c.l.b16 %v2542
  %v2614 = vunpack.c.l.b16 %v2543
  %v2615 = vunpack.c.l.b16 %v2544
  %v2616 = vunpack.c.l.b16 %v2545
  %v2617 = vunpack.c.l.b16 %v2546
  %v2618 = vunpack.c.l.b16 %v2547
  %v2619 = vunpack.c.l.b16 %v2548
  %v2620 = vunpack.c.l.b16 %v2549
  %v2621 = vunpack.c.l.b16 %v2550
  %v2622 = vunpack.c.l.b16 %v2551
  %v2623 = vunpack.c.l.b16 %v2552
  %v2624 = vunpack.c.l.b16 %v2553
  %v2625 = vunpack.c.l.b16 %v2554
  %v2626 = vunpack.c.l.b16 %v2555
  %v2627 = vunpack.c.l.b16 %v2556
  %v2628 = vunpack.c.l.b16 %v2557
  %v2629 = vunpack.c.l.b16 %v2558
  %v2630 = vunpack.c.l.b16 %v2559
  %v2631 = vunpack.c.l.b16 %v2560
  %v2632 = vunpack.c.l.b16 %v2561
  %v2633 = vunpack.c.l.b16 %v2562
  %v2634 = vunpack.c.l.b16 %v2563
  %v2635 = vunpack.c.l.b16 %v2564
  %v2636 = vunpack.c.l.b16 %v2565
  %v2637 = vpack.c.b16 %v2606, %v2605
  %v2638 = vpack.c.b16 %v2608, %v2607
  %v2639 = vpack.c.b16 %v2610, %v2609
  %v2640 = vpack.c.b16 %v2612, %v2611
  %v2641 = vpack.c.b16 %v2614, %v2613
  %v2642 = vpack.c.b16 %v2616, %v2615
  %v2643 = vpack.c.b16 %v2618, %v2617
  %v2644 = vpack.c.b16 %v2620, %v2619
  %v2645 = vpack.c.b16 %v2622, %v2621
  %v2646 = vpack.c.b16 %v2624, %v2623
  %v2647 = vpack.c.b16 %v2626, %v2625
  %v2648 = vpack.c.b16 %v2628, %v2627
  %v2649 = vpack.c.b16 %v2630, %v2629
  %v2650 = vpack.c.b16 %v2632, %v2631
  %v2651 = vpack.c.b16 %v2634, %v2633
  %v2652 = vpack.c.b16 %v2636, %v2635
  %2669 = vmatprep.subr.bf16.mxu0 0
  %2670 = vmatpush1.bf16.msra.mxu0 %v2637
  %2671 = vmatprep.subr.bf16.mxu0 0
  %2672 = vmatpush1.bf16.msra.mxu0 %v2638
  %2673 = vmatprep.subr.bf16.mxu0 0
  %2674 = vmatpush1.bf16.msra.mxu0 %v2639
  %2675 = vmatprep.subr.bf16.mxu0 0
  %2676 = vmatpush1.bf16.msra.mxu0 %v2640
  %2677 = vmatprep.subr.bf16.mxu0 0
  %2678 = vmatpush1.bf16.msra.mxu0 %v2641
  %2679 = vmatprep.subr.bf16.mxu0 0
  %2680 = vmatpush1.bf16.msra.mxu0 %v2642
  %2681 = vmatprep.subr.bf16.mxu0 0
  %2682 = vmatpush1.bf16.msra.mxu0 %v2643
  %2683 = vmatprep.subr.bf16.mxu0 0
  %2684 = vmatpush1.bf16.msra.mxu0 %v2644
  %2685 = vmatprep.subr.bf16.mxu0 0
  %2686 = vmatpush1.bf16.msra.mxu0 %v2645
  %2687 = vmatprep.subr.bf16.mxu0 0
  %2688 = vmatpush1.bf16.msra.mxu0 %v2646
  %2689 = vmatprep.subr.bf16.mxu0 0
  %2690 = vmatpush1.bf16.msra.mxu0 %v2647
  %2691 = vmatprep.subr.bf16.mxu0 0
  %2692 = vmatpush1.bf16.msra.mxu0 %v2648
  %2693 = vmatprep.subr.bf16.mxu0 0
  %2694 = vmatpush1.bf16.msra.mxu0 %v2649
  %2695 = vmatprep.subr.bf16.mxu0 0
  %2696 = vmatpush1.bf16.msra.mxu0 %v2650
  %2697 = vmatprep.subr.bf16.mxu0 0
  %2698 = vmatpush1.bf16.msra.mxu0 %v2651
  %2699 = vmatprep.subr.bf16.mxu0 0
  %2700 = vmatpush1.bf16.msra.mxu0 %v2652
  %2701 = vmatprep.mubr.bf16.mxu0 %v2533
  %2702 = vmatmul.mubr.bf16.gmra.mrb[0].mxu0 %v2532
  %v2703 = vpop.f32.mrb[0].mxu0
  %v2704 = vadd.f32 %v2571, %v2703
  %v2705 = vpop.f32.mrb[0].mxu0
  %v2706 = vpop.f32.mrb[0].mxu0
  %v2707 = vpop.f32.mrb[0].mxu0
  %2708 = vdwg.mxu0
  %2709 = vst [vmem:[%s8] sm:$0x3] %v2704
  // Predicated region
  $region34: #{stn3d_forward.3} parent=0 // pred_check
    _
  $region35: #{stn3d_forward.3} parent=0 // pred_check_branch
    %2711 = sbr.rel (0) target = $region37
  $region36: #{stn3d_forward.3} parent=0 // pred_region
    _
  $region37: #{stn3d_forward.3} parent=0 // pred_fallthru
    _
  // Predicated region
  $region38: #{stn3d_forward.3} parent=0 // pred_check
    _
  $region39: #{stn3d_forward.3} parent=0 // pred_check_branch
    %2713 = sbr.rel (0) target = $region41
  $region40: #{stn3d_forward.3} parent=0 // pred_region
    _
  $region41: #{stn3d_forward.3} parent=0 // pred_fallthru
    _

// kernel: stn3d_forward.2
$region0: #{stn3d_forward.2}
  #allocation0 [shape = 'u32[]', space=smem, size = 0x4, offset = 0x4, fixed_abs, tag = 'smem constant byte address 0x4 - core index']
  #allocation1 [shape = 'u32[144,128]{1,0:T(1,128)}', space=vmem, size = 0x12000, scoped, tag = 'internal scratch']
  %s0 = inlined_call_operand.vmem [shape: f32[2,3,200], index: 0, kind: input, shape index: {}]
  %s1 = inlined_call_operand.vmem [shape: f32[64,3], index: 1, kind: input, shape index: {}]
  %s2 = inlined_call_operand.vmem [shape: f32[64,1], index: 2, kind: input, shape index: {}]
  %s3 = inlined_call_operand.vmem [shape: bf16[128,64], index: 3, kind: input, shape index: {}]
  %s4 = inlined_call_operand.vmem [shape: f32[128,1], index: 4, kind: input, shape index: {}]
  %s5 = inlined_call_operand.hbm [shape: bf16[1024,128], index: 5, kind: input, shape index: {}]
  %s6 = inlined_call_operand.vmem [shape: f32[2,1024,1], index: 6, kind: output, shape index: {}]
  %s7 = sld [smem:[#allocation0]]
  $region73: #{stn3d_forward.2} parent=0
    _
  %s9 = ssub.s32 1, %s7
  %s10 = scalar_select 0, %s9, %s7
  $region1: #{stn3d_forward.2} parent=0
    #allocation2 [shape = 'u8[262144]{0}', space=vmem, size = 0x40000, scoped, tag = 'input window, operand 5, single buffered']
    #allocation3 [shape = 's32[2]{0}', space=sflag, size = 0x8, scoped, tag = 'scoped memory for stn3d_forward.2']
    %11 = vsyncpa [#allocation3], 0
    loop: start=0, step=1, limit=6
    $region2: #{stn3d_forward.2} parent=1 // loop_pre_header
      _
    $region3: #{stn3d_forward.2} parent=1 // loop_header
      %s13 = sphi 0, %s17
      %p14 = scmp.ge.s32.totalorder %s13, 6
      %s20 = sphi 0, %s32
      %s21 = sphi 0, %s28
      %s22 = sphi 0, %s20
      %s23 = sphi 0, %s21
      %s24 = sphi 0, %s22
      %s25 = sphi 0, %s23
      %s37 = sphi 0, %s39
      %s40 = sphi 0, %s37
      %s41 = sphi 0, %s40
      %s57 = sphi 0, %s41
      %s61 = sphi 0, %s61
      %s63 = sphi 0, %s61
      %s64 = sphi 0, %s63
      %s78 = sphi 0, %s64
      %s82 = sphi 0, %s82
      %s84 = sphi 0, %s82
      %s85 = sphi 0, %s84
      %s99 = sphi 0, %s85
      %s103 = sphi 0, %s103
      %s105 = sphi 0, %s103
      %s106 = sphi 0, %s105
      %s120 = sphi 0, %s106
      %s124 = sphi 0, %s124
      %s126 = sphi 0, %s124
      %s127 = sphi 0, %s126
      %s141 = sphi 0, %s127
      %s145 = sphi 0, %s145
      %s147 = sphi 0, %s145
      %s148 = sphi 0, %s147
      %s162 = sphi 0, %s148
      %s168 = sphi 0, %s170
      %s171 = sphi 0, %s168
      %s172 = sphi 0, %s171
      %s188 = sphi 0, %s172
    $region4: #{stn3d_forward.2} parent=1 // loop_header_branch
      %16 = sbr.rel (%p14) target = $region8
    $region5: #{stn3d_forward.2} parent=1 // loop_body
      %s18 = ssub.s32 %s13, 1
      %s19 = ssub.s32 %s13, 2
      %s26 = sadd.s32 1, %s21
      %p27 = scmp.ge.s32.totalorder %s26, 2
      %s28 = scalar_select %p27, 0, %s26
      %s29 = sadd.s32 1, %s20
      %s30 = scalar_select %p27, %s29, %s20
      %p31 = scmp.ge.s32.totalorder %s30, 2
      %s32 = scalar_select %p31, 0, %s30
      %s33 = ssub.s32 %s20, %s32
      %s34 = ssub.s32 %s21, %s28
      %s35 = sor.u32 %s33, %s34
      %p36 = scmp.eq.s32.totalorder %s35, 0
      %s38 = sadd.s32 %s37, 1
      %s39 = scalar_select %p36, %s37, %s38
      %p42 = pneg %p36
      %p43 = scmp.eq.s32.totalorder %s13, 3
      %p44 = por %p42, %p43
      %p45 = scmp.ne.s32.totalorder %s37, %s40
      %p46 = scmp.eq.s32.totalorder %s13, 0
      %p47 = por %p45, %p46
      %p48 = scmp.ne.s32.totalorder %s37, %s40
      %p49 = scmp.eq.s32.totalorder %s18, 3
      %p50 = por %p48, %p49
      %p51 = scmp.ne.s32.totalorder %s40, %s41
      %p52 = scmp.eq.s32.totalorder %s18, 0
      %p53 = por %p51, %p52
      %p54 = scmp.ne.s32.totalorder %s40, %s41
      %p55 = scmp.eq.s32.totalorder %s19, 3
      %p56 = por %p54, %p55
      %p58 = scmp.ne.s32.totalorder %s41, %s57
      %p59 = scmp.eq.s32.totalorder %s19, 0
      %p60 = por %p58, %p59
      %s62 = sadd.s32 %s61, 1
      %p65 = scmp.eq.s32.totalorder %s13, 3
      %p66 = scmp.ne.s32.totalorder %s61, %s63
      %p67 = scmp.eq.s32.totalorder %s13, 0
      %p68 = por %p66, %p67
      %p69 = scmp.ne.s32.totalorder %s61, %s63
      %p70 = scmp.eq.s32.totalorder %s18, 3
      %p71 = por %p69, %p70
      %p72 = scmp.ne.s32.totalorder %s63, %s64
      %p73 = scmp.eq.s32.totalorder %s18, 0
      %p74 = por %p72, %p73
      %p75 = scmp.ne.s32.totalorder %s63, %s64
      %p76 = scmp.eq.s32.totalorder %s19, 3
      %p77 = por %p75, %p76
      %p79 = scmp.ne.s32.totalorder %s64, %s78
      %p80 = scmp.eq.s32.totalorder %s19, 0
      %p81 = por %p79, %p80
      %s83 = sadd.s32 %s82, 1
      %p86 = scmp.eq.s32.totalorder %s13, 3
      %p87 = scmp.ne.s32.totalorder %s82, %s84
      %p88 = scmp.eq.s32.totalorder %s13, 0
      %p89 = por %p87, %p88
      %p90 = scmp.ne.s32.totalorder %s82, %s84
      %p91 = scmp.eq.s32.totalorder %s18, 3
      %p92 = por %p90, %p91
      %p93 = scmp.ne.s32.totalorder %s84, %s85
      %p94 = scmp.eq.s32.totalorder %s18, 0
      %p95 = por %p93, %p94
      %p96 = scmp.ne.s32.totalorder %s84, %s85
      %p97 = scmp.eq.s32.totalorder %s19, 3
      %p98 = por %p96, %p97
      %p100 = scmp.ne.s32.totalorder %s85, %s99
      %p101 = scmp.eq.s32.totalorder %s19, 0
      %p102 = por %p100, %p101
      %s104 = sadd.s32 %s103, 1
      %p107 = scmp.eq.s32.totalorder %s13, 3
      %p108 = scmp.ne.s32.totalorder %s103, %s105
      %p109 = scmp.eq.s32.totalorder %s13, 0
      %p110 = por %p108, %p109
      %p111 = scmp.ne.s32.totalorder %s103, %s105
      %p112 = scmp.eq.s32.totalorder %s18, 3
      %p113 = por %p111, %p112
      %p114 = scmp.ne.s32.totalorder %s105, %s106
      %p115 = scmp.eq.s32.totalorder %s18, 0
      %p116 = por %p114, %p115
      %p117 = scmp.ne.s32.totalorder %s105, %s106
      %p118 = scmp.eq.s32.totalorder %s19, 3
      %p119 = por %p117, %p118
      %p121 = scmp.ne.s32.totalorder %s106, %s120
      %p122 = scmp.eq.s32.totalorder %s19, 0
      %p123 = por %p121, %p122
      %s125 = sadd.s32 %s124, 1
      %p128 = scmp.eq.s32.totalorder %s13, 3
      %p129 = scmp.ne.s32.totalorder %s124, %s126
      %p130 = scmp.eq.s32.totalorder %s13, 0
      %p131 = por %p129, %p130
      %p132 = scmp.ne.s32.totalorder %s124, %s126
      %p133 = scmp.eq.s32.totalorder %s18, 3
      %p134 = por %p132, %p133
      %p135 = scmp.ne.s32.totalorder %s126, %s127
      %p136 = scmp.eq.s32.totalorder %s18, 0
      %p137 = por %p135, %p136
      %p138 = scmp.ne.s32.totalorder %s126, %s127
      %p139 = scmp.eq.s32.totalorder %s19, 3
      %p140 = por %p138, %p139
      %p142 = scmp.ne.s32.totalorder %s127, %s141
      %p143 = scmp.eq.s32.totalorder %s19, 0
      %p144 = por %p142, %p143
      %s146 = sadd.s32 %s145, 1
      %p149 = scmp.eq.s32.totalorder %s13, 3
      %p150 = scmp.ne.s32.totalorder %s145, %s147
      %p151 = scmp.eq.s32.totalorder %s13, 0
      %p152 = por %p150, %p151
      %p153 = scmp.ne.s32.totalorder %s145, %s147
      %p154 = scmp.eq.s32.totalorder %s18, 3
      %p155 = por %p153, %p154
      %p156 = scmp.ne.s32.totalorder %s147, %s148
      %p157 = scmp.eq.s32.totalorder %s18, 0
      %p158 = por %p156, %p157
      %p159 = scmp.ne.s32.totalorder %s147, %s148
      %p160 = scmp.eq.s32.totalorder %s19, 3
      %p161 = por %p159, %p160
      %p163 = scmp.ne.s32.totalorder %s148, %s162
      %p164 = scmp.eq.s32.totalorder %s19, 0
      %p165 = por %p163, %p164
      %s166 = ssub.s32 %s20, %s32
      %p167 = scmp.eq.s32.totalorder %s166, 0
      %s169 = sadd.s32 %s168, 1
      %s170 = scalar_select %p167, %s168, %s169
      %p173 = pneg %p167
      %p174 = scmp.eq.s32.totalorder %s13, 3
      %p175 = por %p173, %p174
      %p176 = scmp.ne.s32.totalorder %s168, %s171
      %p177 = scmp.eq.s32.totalorder %s13, 0
      %p178 = por %p176, %p177
      %p179 = scmp.ne.s32.totalorder %s168, %s171
      %p180 = scmp.eq.s32.totalorder %s18, 3
      %p181 = por %p179, %p180
      %p182 = scmp.ne.s32.totalorder %s171, %s172
      %p183 = scmp.eq.s32.totalorder %s18, 0
      %p184 = por %p182, %p183
      %p185 = scmp.ne.s32.totalorder %s171, %s172
      %p186 = scmp.eq.s32.totalorder %s19, 3
      %p187 = por %p185, %p186
      %p189 = scmp.ne.s32.totalorder %s172, %s188
      %p190 = scmp.eq.s32.totalorder %s19, 0
      %p191 = por %p189, %p190
      %p192 = scmp.le.s32.totalorder 1, %s13
      %p193 = scmp.lt.s32.totalorder %s13, 5
      %p194 = pnand %p192, %p193
      %p195 = pneg %p194
      // Predicated region
      $region9: #{stn3d_forward.2} parent=5 // pred_check
        _
      $region10: #{stn3d_forward.2} parent=5 // pred_check_branch
        %197 = sbr.rel (%p194) target = $region12
      $region11: #{stn3d_forward.2} parent=5 // pred_region
        %s198 = ssub.s32 %s13, 1
        // Predicated region
        $region13: #{stn3d_forward.2} parent=11 // pred_check
          %p199 = pneg %p74
        $region14: #{stn3d_forward.2} parent=11 // pred_check_branch
          %201 = sbr.rel (%p199) target = $region16
        $region15: #{stn3d_forward.2} parent=11 // pred_region
          _
        $region16: #{stn3d_forward.2} parent=11 // pred_fallthru
          _
        // Predicated region
        $region17: #{stn3d_forward.2} parent=11 // pred_check
          %p202 = pneg %p95
        $region18: #{stn3d_forward.2} parent=11 // pred_check_branch
          %204 = sbr.rel (%p202) target = $region20
        $region19: #{stn3d_forward.2} parent=11 // pred_region
          _
        $region20: #{stn3d_forward.2} parent=11 // pred_fallthru
          _
        // Predicated region
        $region21: #{stn3d_forward.2} parent=11 // pred_check
          %p205 = pneg %p116
        $region22: #{stn3d_forward.2} parent=11 // pred_check_branch
          %207 = sbr.rel (%p205) target = $region24
        $region23: #{stn3d_forward.2} parent=11 // pred_region
          _
        $region24: #{stn3d_forward.2} parent=11 // pred_fallthru
          _
        // Predicated region
        $region25: #{stn3d_forward.2} parent=11 // pred_check
          %p208 = pneg %p137
        $region26: #{stn3d_forward.2} parent=11 // pred_check_branch
          %210 = sbr.rel (%p208) target = $region28
        $region27: #{stn3d_forward.2} parent=11 // pred_region
          _
        $region28: #{stn3d_forward.2} parent=11 // pred_fallthru
          _
        // Predicated region
        $region29: #{stn3d_forward.2} parent=11 // pred_check
          %p211 = pneg %p158
        $region30: #{stn3d_forward.2} parent=11 // pred_check_branch
          %213 = sbr.rel (%p211) target = $region32
        $region31: #{stn3d_forward.2} parent=11 // pred_region
          %s215 = ssub.s32 8192, 8192
          %216 = vsyncadd [#allocation3], %s215
          %s217 = sshll.u32 [#allocation2], 4
          %s218 = int_to_ptr.vmem [resolvable:$true] %s217
          %223 = dma.hbm_to_vmem [thread:$0]  %s5, 8192, %s218, [#allocation3], 64, 64, 4
        $region32: #{stn3d_forward.2} parent=11 // pred_fallthru
          _
      $region12: #{stn3d_forward.2} parent=5 // pred_fallthru
        _
      %p224 = scmp.lt.s32.totalorder %s13, 4
      // Predicated region
      $region33: #{stn3d_forward.2} parent=5 // pred_check
        %p225 = pneg %p224
      $region34: #{stn3d_forward.2} parent=5 // pred_check_branch
        %227 = sbr.rel (%p225) target = $region36
      $region35: #{stn3d_forward.2} parent=5 // pred_region
        // Predicated region
        $region37: #{stn3d_forward.2} parent=35 // pred_check
          %p228 = pneg %p47
        $region38: #{stn3d_forward.2} parent=35 // pred_check_branch
          %230 = sbr.rel (%p228) target = $region40
        $region39: #{stn3d_forward.2} parent=35 // pred_region
          %p231 = scmp.lt.s32.totalorder %s20, 1
          %s232 = scalar_select %p231, %s20, 1
          %p233 = scmp.lt.s32.totalorder %s21, 1
          %s234 = scalar_select %p233, %s21, 1
          %s235 = smul.addr %s232, 2
          %s236 = sadd.s32 %s234, %s235
          %s237 = smul.addr %s236, 4
          %s238 = scalar_lea.vmem %s0, %s237
        $region40: #{stn3d_forward.2} parent=35 // pred_fallthru
          _
      $region36: #{stn3d_forward.2} parent=5 // pred_fallthru
        _
      %p239 = scmp.le.s32.totalorder 1, %s13
      %p240 = scmp.lt.s32.totalorder %s13, 5
      %p241 = pnand %p239, %p240
      %p242 = pneg %p241
      // Predicated region
      $region41: #{stn3d_forward.2} parent=5 // pred_check
        _
      $region42: #{stn3d_forward.2} parent=5 // pred_check_branch
        %244 = sbr.rel (%p241) target = $region44
      $region43: #{stn3d_forward.2} parent=5 // pred_region
        %s245 = ssub.s32 %s13, 1
        // Predicated region
        $region45: #{stn3d_forward.2} parent=43 // pred_check
          %p246 = pneg %p158
        $region46: #{stn3d_forward.2} parent=43 // pred_check_branch
          %248 = sbr.rel (%p246) target = $region48
        $region47: #{stn3d_forward.2} parent=43 // pred_region
          %249 = dma.done [#allocation3], 8192
        $region48: #{stn3d_forward.2} parent=43 // pred_fallthru
          _
        %p250 = scmp.lt.s32.totalorder %s22, 1
        %s251 = scalar_select %p250, %s22, 1
        %p252 = scmp.lt.s32.totalorder %s23, 1
        %s253 = scalar_select %p252, %s23, 1
        %s254 = smul.addr %s251, 2
        %s255 = sadd.s32 %s253, %s254
        %s256 = smul.addr %s255, 4
        %s257 = scalar_lea.vmem %s0, %s256
        %p258 = pneg %p53
        %p259 = pneg %p50
        %p260 = pneg %p74
        %p261 = pneg %p71
        %p262 = pneg %p95
        %p263 = pneg %p92
        %p264 = pneg %p116
        %p265 = pneg %p113
        %p266 = pneg %p137
        %p267 = pneg %p134
        %p268 = pneg %p158
        %p269 = pneg %p155
        %p270 = pneg %p184
        %p271 = pneg %p181
        %p272 = scmp.lt.s32.totalorder %s22, 1
        %s273 = scalar_select %p272, %s22, 1
        %s274 = smul.addr %s273, 128
        %s275 = smul.addr %s274, 8
        %s276 = scalar_lea.vmem %s6, %s275
        %p277 = scmp.lt.s32.totalorder %s22, 1
        %s278 = scalar_select %p277, %s22, 1
        %p279 = scmp.lt.s32.totalorder %s23, 1
        %s280 = scalar_select %p279, %s23, 1
        %s281 = smul.addr %s278, 2
        %s282 = sadd.s32 %s280, %s281
        %s283 = smul.addr %s282, 4
        %s284 = scalar_lea.vmem %s0, %s283
        %p285 = scmp.lt.s32.totalorder %s22, 1
        %s286 = scalar_select %p285, %s22, 1
        %s287 = smul.addr %s286, 128
        %s288 = smul.addr %s287, 8
        %s289 = scalar_lea.vmem %s6, %s288
        %p291 = scmp.eq.s32.totalorder %s23, 0
        // Predicated region
        $region49: #{stn3d_forward.2} parent=43 // pred_check
          %p292 = pneg %p291
        $region50: #{stn3d_forward.2} parent=43 // pred_check_branch
          %294 = sbr.rel (%p292) target = $region52
        $region51: #{stn3d_forward.2} parent=43 // pred_region
          %vm295 = vcmask 7168
          %296 = vst.msk [vmem:[%s289] sm:$0xff] %vm295, -inf
          %297 = vst.msk [vmem:[%s289 + $0x8] sm:$0xff] %vm295, -inf
          %298 = vst.msk [vmem:[%s289 + $0x10] sm:$0xff] %vm295, -inf
          %299 = vst.msk [vmem:[%s289 + $0x18] sm:$0xff] %vm295, -inf
          %300 = vst.msk [vmem:[%s289 + $0x20] sm:$0xff] %vm295, -inf
          %301 = vst.msk [vmem:[%s289 + $0x28] sm:$0xff] %vm295, -inf
          %302 = vst.msk [vmem:[%s289 + $0x30] sm:$0xff] %vm295, -inf
          %303 = vst.msk [vmem:[%s289 + $0x38] sm:$0xff] %vm295, -inf
          %304 = vst.msk [vmem:[%s289 + $0x40] sm:$0xff] %vm295, -inf
          %305 = vst.msk [vmem:[%s289 + $0x48] sm:$0xff] %vm295, -inf
          %306 = vst.msk [vmem:[%s289 + $0x50] sm:$0xff] %vm295, -inf
          %307 = vst.msk [vmem:[%s289 + $0x58] sm:$0xff] %vm295, -inf
          %308 = vst.msk [vmem:[%s289 + $0x60] sm:$0xff] %vm295, -inf
          %309 = vst.msk [vmem:[%s289 + $0x68] sm:$0xff] %vm295, -inf
          %310 = vst.msk [vmem:[%s289 + $0x70] sm:$0xff] %vm295, -inf
          %311 = vst.msk [vmem:[%s289 + $0x78] sm:$0xff] %vm295, -inf
          %312 = vst.msk [vmem:[%s289 + $0x80] sm:$0xff] %vm295, -inf
          %313 = vst.msk [vmem:[%s289 + $0x88] sm:$0xff] %vm295, -inf
          %314 = vst.msk [vmem:[%s289 + $0x90] sm:$0xff] %vm295, -inf
          %315 = vst.msk [vmem:[%s289 + $0x98] sm:$0xff] %vm295, -inf
          %316 = vst.msk [vmem:[%s289 + $0xa0] sm:$0xff] %vm295, -inf
          %317 = vst.msk [vmem:[%s289 + $0xa8] sm:$0xff] %vm295, -inf
          %318 = vst.msk [vmem:[%s289 + $0xb0] sm:$0xff] %vm295, -inf
          %319 = vst.msk [vmem:[%s289 + $0xb8] sm:$0xff] %vm295, -inf
          %320 = vst.msk [vmem:[%s289 + $0xc0] sm:$0xff] %vm295, -inf
          %321 = vst.msk [vmem:[%s289 + $0xc8] sm:$0xff] %vm295, -inf
          %322 = vst.msk [vmem:[%s289 + $0xd0] sm:$0xff] %vm295, -inf
          %323 = vst.msk [vmem:[%s289 + $0xd8] sm:$0xff] %vm295, -inf
          %324 = vst.msk [vmem:[%s289 + $0xe0] sm:$0xff] %vm295, -inf
          %325 = vst.msk [vmem:[%s289 + $0xe8] sm:$0xff] %vm295, -inf
          %326 = vst.msk [vmem:[%s289 + $0xf0] sm:$0xff] %vm295, -inf
          %327 = vst.msk [vmem:[%s289 + $0xf8] sm:$0xff] %vm295, -inf
          %328 = vst.msk [vmem:[%s289 + $0x100] sm:$0xff] %vm295, -inf
          %329 = vst.msk [vmem:[%s289 + $0x108] sm:$0xff] %vm295, -inf
          %330 = vst.msk [vmem:[%s289 + $0x110] sm:$0xff] %vm295, -inf
          %331 = vst.msk [vmem:[%s289 + $0x118] sm:$0xff] %vm295, -inf
          %332 = vst.msk [vmem:[%s289 + $0x120] sm:$0xff] %vm295, -inf
          %333 = vst.msk [vmem:[%s289 + $0x128] sm:$0xff] %vm295, -inf
          %334 = vst.msk [vmem:[%s289 + $0x130] sm:$0xff] %vm295, -inf
          %335 = vst.msk [vmem:[%s289 + $0x138] sm:$0xff] %vm295, -inf
          %336 = vst.msk [vmem:[%s289 + $0x140] sm:$0xff] %vm295, -inf
          %337 = vst.msk [vmem:[%s289 + $0x148] sm:$0xff] %vm295, -inf
          %338 = vst.msk [vmem:[%s289 + $0x150] sm:$0xff] %vm295, -inf
          %339 = vst.msk [vmem:[%s289 + $0x158] sm:$0xff] %vm295, -inf
          %340 = vst.msk [vmem:[%s289 + $0x160] sm:$0xff] %vm295, -inf
          %341 = vst.msk [vmem:[%s289 + $0x168] sm:$0xff] %vm295, -inf
          %342 = vst.msk [vmem:[%s289 + $0x170] sm:$0xff] %vm295, -inf
          %343 = vst.msk [vmem:[%s289 + $0x178] sm:$0xff] %vm295, -inf
          %344 = vst.msk [vmem:[%s289 + $0x180] sm:$0xff] %vm295, -inf
          %345 = vst.msk [vmem:[%s289 + $0x188] sm:$0xff] %vm295, -inf
          %346 = vst.msk [vmem:[%s289 + $0x190] sm:$0xff] %vm295, -inf
          %347 = vst.msk [vmem:[%s289 + $0x198] sm:$0xff] %vm295, -inf
          %348 = vst.msk [vmem:[%s289 + $0x1a0] sm:$0xff] %vm295, -inf
          %349 = vst.msk [vmem:[%s289 + $0x1a8] sm:$0xff] %vm295, -inf
          %350 = vst.msk [vmem:[%s289 + $0x1b0] sm:$0xff] %vm295, -inf
          %351 = vst.msk [vmem:[%s289 + $0x1b8] sm:$0xff] %vm295, -inf
          %352 = vst.msk [vmem:[%s289 + $0x1c0] sm:$0xff] %vm295, -inf
          %353 = vst.msk [vmem:[%s289 + $0x1c8] sm:$0xff] %vm295, -inf
          %354 = vst.msk [vmem:[%s289 + $0x1d0] sm:$0xff] %vm295, -inf
          %355 = vst.msk [vmem:[%s289 + $0x1d8] sm:$0xff] %vm295, -inf
          %356 = vst.msk [vmem:[%s289 + $0x1e0] sm:$0xff] %vm295, -inf
          %357 = vst.msk [vmem:[%s289 + $0x1e8] sm:$0xff] %vm295, -inf
          %358 = vst.msk [vmem:[%s289 + $0x1f0] sm:$0xff] %vm295, -inf
          %359 = vst.msk [vmem:[%s289 + $0x1f8] sm:$0xff] %vm295, -inf
          %360 = vst.msk [vmem:[%s289 + $0x200] sm:$0xff] %vm295, -inf
          %361 = vst.msk [vmem:[%s289 + $0x208] sm:$0xff] %vm295, -inf
          %362 = vst.msk [vmem:[%s289 + $0x210] sm:$0xff] %vm295, -inf
          %363 = vst.msk [vmem:[%s289 + $0x218] sm:$0xff] %vm295, -inf
          %364 = vst.msk [vmem:[%s289 + $0x220] sm:$0xff] %vm295, -inf
          %365 = vst.msk [vmem:[%s289 + $0x228] sm:$0xff] %vm295, -inf
          %366 = vst.msk [vmem:[%s289 + $0x230] sm:$0xff] %vm295, -inf
          %367 = vst.msk [vmem:[%s289 + $0x238] sm:$0xff] %vm295, -inf
          %368 = vst.msk [vmem:[%s289 + $0x240] sm:$0xff] %vm295, -inf
          %369 = vst.msk [vmem:[%s289 + $0x248] sm:$0xff] %vm295, -inf
          %370 = vst.msk [vmem:[%s289 + $0x250] sm:$0xff] %vm295, -inf
          %371 = vst.msk [vmem:[%s289 + $0x258] sm:$0xff] %vm295, -inf
          %372 = vst.msk [vmem:[%s289 + $0x260] sm:$0xff] %vm295, -inf
          %373 = vst.msk [vmem:[%s289 + $0x268] sm:$0xff] %vm295, -inf
          %374 = vst.msk [vmem:[%s289 + $0x270] sm:$0xff] %vm295, -inf
          %375 = vst.msk [vmem:[%s289 + $0x278] sm:$0xff] %vm295, -inf
          %376 = vst.msk [vmem:[%s289 + $0x280] sm:$0xff] %vm295, -inf
          %377 = vst.msk [vmem:[%s289 + $0x288] sm:$0xff] %vm295, -inf
          %378 = vst.msk [vmem:[%s289 + $0x290] sm:$0xff] %vm295, -inf
          %379 = vst.msk [vmem:[%s289 + $0x298] sm:$0xff] %vm295, -inf
          %380 = vst.msk [vmem:[%s289 + $0x2a0] sm:$0xff] %vm295, -inf
          %381 = vst.msk [vmem:[%s289 + $0x2a8] sm:$0xff] %vm295, -inf
          %382 = vst.msk [vmem:[%s289 + $0x2b0] sm:$0xff] %vm295, -inf
          %383 = vst.msk [vmem:[%s289 + $0x2b8] sm:$0xff] %vm295, -inf
          %384 = vst.msk [vmem:[%s289 + $0x2c0] sm:$0xff] %vm295, -inf
          %385 = vst.msk [vmem:[%s289 + $0x2c8] sm:$0xff] %vm295, -inf
          %386 = vst.msk [vmem:[%s289 + $0x2d0] sm:$0xff] %vm295, -inf
          %387 = vst.msk [vmem:[%s289 + $0x2d8] sm:$0xff] %vm295, -inf
          %388 = vst.msk [vmem:[%s289 + $0x2e0] sm:$0xff] %vm295, -inf
          %389 = vst.msk [vmem:[%s289 + $0x2e8] sm:$0xff] %vm295, -inf
          %390 = vst.msk [vmem:[%s289 + $0x2f0] sm:$0xff] %vm295, -inf
          %391 = vst.msk [vmem:[%s289 + $0x2f8] sm:$0xff] %vm295, -inf
          %392 = vst.msk [vmem:[%s289 + $0x300] sm:$0xff] %vm295, -inf
          %393 = vst.msk [vmem:[%s289 + $0x308] sm:$0xff] %vm295, -inf
          %394 = vst.msk [vmem:[%s289 + $0x310] sm:$0xff] %vm295, -inf
          %395 = vst.msk [vmem:[%s289 + $0x318] sm:$0xff] %vm295, -inf
          %396 = vst.msk [vmem:[%s289 + $0x320] sm:$0xff] %vm295, -inf
          %397 = vst.msk [vmem:[%s289 + $0x328] sm:$0xff] %vm295, -inf
          %398 = vst.msk [vmem:[%s289 + $0x330] sm:$0xff] %vm295, -inf
          %399 = vst.msk [vmem:[%s289 + $0x338] sm:$0xff] %vm295, -inf
          %400 = vst.msk [vmem:[%s289 + $0x340] sm:$0xff] %vm295, -inf
          %401 = vst.msk [vmem:[%s289 + $0x348] sm:$0xff] %vm295, -inf
          %402 = vst.msk [vmem:[%s289 + $0x350] sm:$0xff] %vm295, -inf
          %403 = vst.msk [vmem:[%s289 + $0x358] sm:$0xff] %vm295, -inf
          %404 = vst.msk [vmem:[%s289 + $0x360] sm:$0xff] %vm295, -inf
          %405 = vst.msk [vmem:[%s289 + $0x368] sm:$0xff] %vm295, -inf
          %406 = vst.msk [vmem:[%s289 + $0x370] sm:$0xff] %vm295, -inf
          %407 = vst.msk [vmem:[%s289 + $0x378] sm:$0xff] %vm295, -inf
          %408 = vst.msk [vmem:[%s289 + $0x380] sm:$0xff] %vm295, -inf
          %409 = vst.msk [vmem:[%s289 + $0x388] sm:$0xff] %vm295, -inf
          %410 = vst.msk [vmem:[%s289 + $0x390] sm:$0xff] %vm295, -inf
          %411 = vst.msk [vmem:[%s289 + $0x398] sm:$0xff] %vm295, -inf
          %412 = vst.msk [vmem:[%s289 + $0x3a0] sm:$0xff] %vm295, -inf
          %413 = vst.msk [vmem:[%s289 + $0x3a8] sm:$0xff] %vm295, -inf
          %414 = vst.msk [vmem:[%s289 + $0x3b0] sm:$0xff] %vm295, -inf
          %415 = vst.msk [vmem:[%s289 + $0x3b8] sm:$0xff] %vm295, -inf
          %416 = vst.msk [vmem:[%s289 + $0x3c0] sm:$0xff] %vm295, -inf
          %417 = vst.msk [vmem:[%s289 + $0x3c8] sm:$0xff] %vm295, -inf
          %418 = vst.msk [vmem:[%s289 + $0x3d0] sm:$0xff] %vm295, -inf
          %419 = vst.msk [vmem:[%s289 + $0x3d8] sm:$0xff] %vm295, -inf
          %420 = vst.msk [vmem:[%s289 + $0x3e0] sm:$0xff] %vm295, -inf
          %421 = vst.msk [vmem:[%s289 + $0x3e8] sm:$0xff] %vm295, -inf
          %422 = vst.msk [vmem:[%s289 + $0x3f0] sm:$0xff] %vm295, -inf
          %423 = vst.msk [vmem:[%s289 + $0x3f8] sm:$0xff] %vm295, -inf
        $region52: #{stn3d_forward.2} parent=43 // pred_fallthru
          _
        %v424 = vld [vmem:[%s284] sm:$0x7]
        %v425 = vld [vmem:[%s1] sm:$0xff]
        %v426 = vld [vmem:[%s1 + $0x8] sm:$0xff]
        %v427 = vld [vmem:[%s1 + $0x10] sm:$0xff]
        %v428 = vld [vmem:[%s1 + $0x18] sm:$0xff]
        %v429 = vld [vmem:[%s1 + $0x20] sm:$0xff]
        %v430 = vld [vmem:[%s1 + $0x28] sm:$0xff]
        %v431 = vld [vmem:[%s1 + $0x30] sm:$0xff]
        %v432 = vld [vmem:[%s1 + $0x38] sm:$0xff]
        %434 = vset.pattern.permute.xlu0 0
        %435 = vperm.xlu0 %434, %v425
        %v436 = vpop.permute.xlu0 %435
        %439 = vset.pattern.permute.xlu0 0
        %440 = vperm.xlu0 %439, %v426
        %v441 = vpop.permute.xlu0 %440
        %444 = vset.pattern.permute.xlu0 0
        %445 = vperm.xlu0 %444, %v427
        %v446 = vpop.permute.xlu0 %445
        %449 = vset.pattern.permute.xlu0 0
        %450 = vperm.xlu0 %449, %v428
        %v451 = vpop.permute.xlu0 %450
        %454 = vset.pattern.permute.xlu0 0
        %455 = vperm.xlu0 %454, %v429
        %v456 = vpop.permute.xlu0 %455
        %459 = vset.pattern.permute.xlu0 0
        %460 = vperm.xlu0 %459, %v430
        %v461 = vpop.permute.xlu0 %460
        %464 = vset.pattern.permute.xlu0 0
        %465 = vperm.xlu0 %464, %v431
        %v466 = vpop.permute.xlu0 %465
        %469 = vset.pattern.permute.xlu0 0
        %470 = vperm.xlu0 %469, %v432
        %v471 = vpop.permute.xlu0 %470
        %v473 = vlaneseq
        %v474 = vshrl.u32 %v473, 7
        %v475 = vsub.s32 0, %v474
        %v476 = vrot.slane %v424, %v475
        %v477 = vmul.f32 %v436, %v476
        %v478 = vmul.f32 %v441, %v476
        %v479 = vmul.f32 %v446, %v476
        %v480 = vmul.f32 %v451, %v476
        %v481 = vmul.f32 %v456, %v476
        %v482 = vmul.f32 %v461, %v476
        %v483 = vmul.f32 %v466, %v476
        %v484 = vmul.f32 %v471, %v476
        %485 = vset.pattern.permute.xlu0 1
        %486 = vperm.xlu0 %485, %v425
        %v487 = vpop.permute.xlu0 %486
        %489 = vset.pattern.permute.xlu0 1
        %490 = vperm.xlu0 %489, %v426
        %v491 = vpop.permute.xlu0 %490
        %493 = vset.pattern.permute.xlu0 1
        %494 = vperm.xlu0 %493, %v427
        %v495 = vpop.permute.xlu0 %494
        %497 = vset.pattern.permute.xlu0 1
        %498 = vperm.xlu0 %497, %v428
        %v499 = vpop.permute.xlu0 %498
        %501 = vset.pattern.permute.xlu0 1
        %502 = vperm.xlu0 %501, %v429
        %v503 = vpop.permute.xlu0 %502
        %505 = vset.pattern.permute.xlu0 1
        %506 = vperm.xlu0 %505, %v430
        %v507 = vpop.permute.xlu0 %506
        %509 = vset.pattern.permute.xlu0 1
        %510 = vperm.xlu0 %509, %v431
        %v511 = vpop.permute.xlu0 %510
        %513 = vset.pattern.permute.xlu0 1
        %514 = vperm.xlu0 %513, %v432
        %v515 = vpop.permute.xlu0 %514
        %v517 = vlaneseq
        %v518 = vshrl.u32 %v517, 7
        %v519 = vsub.s32 1, %v518
        %v520 = vrot.slane %v424, %v519
        %v521 = vmul.f32 %v487, %v520
        %v522 = vmul.f32 %v491, %v520
        %v523 = vmul.f32 %v495, %v520
        %v524 = vmul.f32 %v499, %v520
        %v525 = vmul.f32 %v503, %v520
        %v526 = vmul.f32 %v507, %v520
        %v527 = vmul.f32 %v511, %v520
        %v528 = vmul.f32 %v515, %v520
        %v529 = vadd.f32 %v477, %v521
        %v530 = vadd.f32 %v478, %v522
        %v531 = vadd.f32 %v479, %v523
        %v532 = vadd.f32 %v480, %v524
        %v533 = vadd.f32 %v481, %v525
        %v534 = vadd.f32 %v482, %v526
        %v535 = vadd.f32 %v483, %v527
        %v536 = vadd.f32 %v484, %v528
        %537 = vset.pattern.permute.xlu0 2
        %538 = vperm.xlu0 %537, %v425
        %v539 = vpop.permute.xlu0 %538
        %541 = vset.pattern.permute.xlu0 2
        %542 = vperm.xlu0 %541, %v426
        %v543 = vpop.permute.xlu0 %542
        %545 = vset.pattern.permute.xlu0 2
        %546 = vperm.xlu0 %545, %v427
        %v547 = vpop.permute.xlu0 %546
        %549 = vset.pattern.permute.xlu0 2
        %550 = vperm.xlu0 %549, %v428
        %v551 = vpop.permute.xlu0 %550
        %553 = vset.pattern.permute.xlu0 2
        %554 = vperm.xlu0 %553, %v429
        %v555 = vpop.permute.xlu0 %554
        %557 = vset.pattern.permute.xlu0 2
        %558 = vperm.xlu0 %557, %v430
        %v559 = vpop.permute.xlu0 %558
        %561 = vset.pattern.permute.xlu0 2
        %562 = vperm.xlu0 %561, %v431
        %v563 = vpop.permute.xlu0 %562
        %565 = vset.pattern.permute.xlu0 2
        %566 = vperm.xlu0 %565, %v432
        %v567 = vpop.permute.xlu0 %566
        %v569 = vlaneseq
        %v570 = vshrl.u32 %v569, 7
        %v571 = vsub.s32 2, %v570
        %v572 = vrot.slane %v424, %v571
        %v573 = vmul.f32 %v539, %v572
        %v574 = vmul.f32 %v543, %v572
        %v575 = vmul.f32 %v547, %v572
        %v576 = vmul.f32 %v551, %v572
        %v577 = vmul.f32 %v555, %v572
        %v578 = vmul.f32 %v559, %v572
        %v579 = vmul.f32 %v563, %v572
        %v580 = vmul.f32 %v567, %v572
        %v581 = vadd.f32 %v529, %v573
        %v582 = vadd.f32 %v530, %v574
        %v583 = vadd.f32 %v531, %v575
        %v584 = vadd.f32 %v532, %v576
        %v585 = vadd.f32 %v533, %v577
        %v586 = vadd.f32 %v534, %v578
        %v587 = vadd.f32 %v535, %v579
        %v588 = vadd.f32 %v536, %v580
        %v589 = vld [vmem:[%s2] sm:$0xff]
        %v590 = vld [vmem:[%s2 + $0x8] sm:$0xff]
        %v591 = vld [vmem:[%s2 + $0x10] sm:$0xff]
        %v592 = vld [vmem:[%s2 + $0x18] sm:$0xff]
        %v593 = vld [vmem:[%s2 + $0x20] sm:$0xff]
        %v594 = vld [vmem:[%s2 + $0x28] sm:$0xff]
        %v595 = vld [vmem:[%s2 + $0x30] sm:$0xff]
        %v596 = vld [vmem:[%s2 + $0x38] sm:$0xff]
        %598 = vset.pattern.permute.xlu0 0
        %599 = vperm.xlu0 %598, %v589
        %v600 = vpop.permute.xlu0 %599
        %603 = vset.pattern.permute.xlu0 0
        %604 = vperm.xlu0 %603, %v590
        %v605 = vpop.permute.xlu0 %604
        %608 = vset.pattern.permute.xlu0 0
        %609 = vperm.xlu0 %608, %v591
        %v610 = vpop.permute.xlu0 %609
        %613 = vset.pattern.permute.xlu0 0
        %614 = vperm.xlu0 %613, %v592
        %v615 = vpop.permute.xlu0 %614
        %618 = vset.pattern.permute.xlu0 0
        %619 = vperm.xlu0 %618, %v593
        %v620 = vpop.permute.xlu0 %619
        %623 = vset.pattern.permute.xlu0 0
        %624 = vperm.xlu0 %623, %v594
        %v625 = vpop.permute.xlu0 %624
        %628 = vset.pattern.permute.xlu0 0
        %629 = vperm.xlu0 %628, %v595
        %v630 = vpop.permute.xlu0 %629
        %633 = vset.pattern.permute.xlu0 0
        %634 = vperm.xlu0 %633, %v596
        %v635 = vpop.permute.xlu0 %634
        %v637 = vadd.f32 %v581, %v600
        %v638 = vadd.f32 %v582, %v605
        %v639 = vadd.f32 %v583, %v610
        %v640 = vadd.f32 %v584, %v615
        %v641 = vadd.f32 %v585, %v620
        %v642 = vadd.f32 %v586, %v625
        %v643 = vadd.f32 %v587, %v630
        %v644 = vadd.f32 %v588, %v635
        %v645 = vmax.f32 %v637, 0.0
        %v646 = vmax.f32 %v638, 0.0
        %v647 = vmax.f32 %v639, 0.0
        %v648 = vmax.f32 %v640, 0.0
        %v649 = vmax.f32 %v641, 0.0
        %v650 = vmax.f32 %v642, 0.0
        %v651 = vmax.f32 %v643, 0.0
        %v652 = vmax.f32 %v644, 0.0
        %v653 = vld [vmem:[%s3] sm:$0xf]
        %v654 = vld [vmem:[%s3 + $0x4] sm:$0xf]
        %v655 = vld [vmem:[%s3 + $0x8] sm:$0xf]
        %v656 = vld [vmem:[%s3 + $0xc] sm:$0xf]
        %v657 = vld [vmem:[%s3 + $0x10] sm:$0xf]
        %v658 = vld [vmem:[%s3 + $0x14] sm:$0xf]
        %v659 = vld [vmem:[%s3 + $0x18] sm:$0xf]
        %v660 = vld [vmem:[%s3 + $0x1c] sm:$0xf]
        %v661 = vld [vmem:[%s3 + $0x20] sm:$0xf]
        %v662 = vld [vmem:[%s3 + $0x24] sm:$0xf]
        %v663 = vld [vmem:[%s3 + $0x28] sm:$0xf]
        %v664 = vld [vmem:[%s3 + $0x2c] sm:$0xf]
        %v665 = vld [vmem:[%s3 + $0x30] sm:$0xf]
        %v666 = vld [vmem:[%s3 + $0x34] sm:$0xf]
        %v667 = vld [vmem:[%s3 + $0x38] sm:$0xf]
        %v668 = vld [vmem:[%s3 + $0x3c] sm:$0xf]
        %v669 = vpack.c.bf16 %v646, %v645
        %v670 = vpack.c.bf16 %v648, %v647
        %v671 = vpack.c.bf16 %v650, %v649
        %v672 = vpack.c.bf16 %v652, %v651
        %v673 = vld [vmem:[%s4] sm:$0xff]
        %v674 = vld [vmem:[%s4 + $0x8] sm:$0xff]
        %v675 = vld [vmem:[%s4 + $0x10] sm:$0xff]
        %v676 = vld [vmem:[%s4 + $0x18] sm:$0xff]
        %v677 = vld [vmem:[%s4 + $0x20] sm:$0xff]
        %v678 = vld [vmem:[%s4 + $0x28] sm:$0xff]
        %v679 = vld [vmem:[%s4 + $0x30] sm:$0xff]
        %v680 = vld [vmem:[%s4 + $0x38] sm:$0xff]
        %v681 = vld [vmem:[%s4 + $0x40] sm:$0xff]
        %v682 = vld [vmem:[%s4 + $0x48] sm:$0xff]
        %v683 = vld [vmem:[%s4 + $0x50] sm:$0xff]
        %v684 = vld [vmem:[%s4 + $0x58] sm:$0xff]
        %v685 = vld [vmem:[%s4 + $0x60] sm:$0xff]
        %v686 = vld [vmem:[%s4 + $0x68] sm:$0xff]
        %v687 = vld [vmem:[%s4 + $0x70] sm:$0xff]
        %v688 = vld [vmem:[%s4 + $0x78] sm:$0xff]
        %690 = vset.pattern.permute.xlu0 0
        %691 = vperm.xlu0 %690, %v673
        %v692 = vpop.permute.xlu0 %691
        %695 = vset.pattern.permute.xlu0 0
        %696 = vperm.xlu0 %695, %v674
        %v697 = vpop.permute.xlu0 %696
        %700 = vset.pattern.permute.xlu0 0
        %701 = vperm.xlu0 %700, %v675
        %v702 = vpop.permute.xlu0 %701
        %705 = vset.pattern.permute.xlu0 0
        %706 = vperm.xlu0 %705, %v676
        %v707 = vpop.permute.xlu0 %706
        %710 = vset.pattern.permute.xlu0 0
        %711 = vperm.xlu0 %710, %v677
        %v712 = vpop.permute.xlu0 %711
        %715 = vset.pattern.permute.xlu0 0
        %716 = vperm.xlu0 %715, %v678
        %v717 = vpop.permute.xlu0 %716
        %720 = vset.pattern.permute.xlu0 0
        %721 = vperm.xlu0 %720, %v679
        %v722 = vpop.permute.xlu0 %721
        %725 = vset.pattern.permute.xlu0 0
        %726 = vperm.xlu0 %725, %v680
        %v727 = vpop.permute.xlu0 %726
        %730 = vset.pattern.permute.xlu0 0
        %731 = vperm.xlu0 %730, %v681
        %v732 = vpop.permute.xlu0 %731
        %735 = vset.pattern.permute.xlu0 0
        %736 = vperm.xlu0 %735, %v682
        %v737 = vpop.permute.xlu0 %736
        %740 = vset.pattern.permute.xlu0 0
        %741 = vperm.xlu0 %740, %v683
        %v742 = vpop.permute.xlu0 %741
        %745 = vset.pattern.permute.xlu0 0
        %746 = vperm.xlu0 %745, %v684
        %v747 = vpop.permute.xlu0 %746
        %750 = vset.pattern.permute.xlu0 0
        %751 = vperm.xlu0 %750, %v685
        %v752 = vpop.permute.xlu0 %751
        %755 = vset.pattern.permute.xlu0 0
        %756 = vperm.xlu0 %755, %v686
        %v757 = vpop.permute.xlu0 %756
        %760 = vset.pattern.permute.xlu0 0
        %761 = vperm.xlu0 %760, %v687
        %v762 = vpop.permute.xlu0 %761
        %765 = vset.pattern.permute.xlu0 0
        %766 = vperm.xlu0 %765, %v688
        %v767 = vpop.permute.xlu0 %766
        %v785 = vunpack.c.l.b16 %v653
        %v786 = vunpack.c.l.b16 %v654
        %v787 = vunpack.c.l.b16 %v655
        %v788 = vunpack.c.l.b16 %v656
        %v789 = vunpack.c.l.b16 %v657
        %v790 = vunpack.c.l.b16 %v658
        %v791 = vunpack.c.l.b16 %v659
        %v792 = vunpack.c.l.b16 %v660
        %v793 = vunpack.c.l.b16 %v661
        %v794 = vunpack.c.l.b16 %v662
        %v795 = vunpack.c.l.b16 %v663
        %v796 = vunpack.c.l.b16 %v664
        %v797 = vunpack.c.l.b16 %v665
        %v798 = vunpack.c.l.b16 %v666
        %v799 = vunpack.c.l.b16 %v667
        %v800 = vunpack.c.l.b16 %v668
        %v801 = vpack.c.b16 %v786, %v785
        %v802 = vpack.c.b16 %v788, %v787
        %v803 = vpack.c.b16 %v790, %v789
        %v804 = vpack.c.b16 %v792, %v791
        %v805 = vpack.c.b16 %v794, %v793
        %v806 = vpack.c.b16 %v796, %v795
        %v807 = vpack.c.b16 %v798, %v797
        %v808 = vpack.c.b16 %v800, %v799
        %vm809 = vcmask 523264
        %v811 = vsel %vm809, %v801, 0
        %v814 = vsel %vm809, %v802, 0
        %v817 = vsel %vm809, %v803, 0
        %v820 = vsel %vm809, %v804, 0
        %v823 = vsel %vm809, %v805, 0
        %v826 = vsel %vm809, %v806, 0
        %v829 = vsel %vm809, %v807, 0
        %v832 = vsel %vm809, %v808, 0
        %834 = vmatprep.subr.bf16.mxu0 0
        %835 = vmatpush1.bf16.msra.mxu0 %v669
        %836 = vmatprep.subr.bf16.mxu0 0
        %837 = vmatpush1.bf16.msra.mxu0 %v670
        %838 = vmatprep.subr.bf16.mxu0 0
        %839 = vmatpush1.bf16.msra.mxu0 %v671
        %840 = vmatprep.subr.bf16.mxu0 0
        %841 = vmatpush1.bf16.msra.mxu0 %v672
        %842 = vmatprep.subr.bf16.mxu0 0
        %843 = vmatpush1.bf16.msra.mxu0 0
        %844 = vmatprep.subr.bf16.mxu0 0
        %845 = vmatpush1.bf16.msra.mxu0 0
        %846 = vmatprep.subr.bf16.mxu0 0
        %847 = vmatpush1.bf16.msra.mxu0 0
        %848 = vmatprep.subr.bf16.mxu0 0
        %849 = vmatpush1.bf16.msra.mxu0 0
        %850 = vmatprep.subr.bf16.mxu0 0
        %851 = vmatpush1.bf16.msra.mxu0 0
        %852 = vmatprep.subr.bf16.mxu0 0
        %853 = vmatpush1.bf16.msra.mxu0 0
        %854 = vmatprep.subr.bf16.mxu0 0
        %855 = vmatpush1.bf16.msra.mxu0 0
        %856 = vmatprep.subr.bf16.mxu0 0
        %857 = vmatpush1.bf16.msra.mxu0 0
        %858 = vmatprep.subr.bf16.mxu0 0
        %859 = vmatpush1.bf16.msra.mxu0 0
        %860 = vmatprep.subr.bf16.mxu0 0
        %861 = vmatpush1.bf16.msra.mxu0 0
        %862 = vmatprep.subr.bf16.mxu0 0
        %863 = vmatpush1.bf16.msra.mxu0 0
        %864 = vmatprep.subr.bf16.mxu0 0
        %865 = vmatpush1.bf16.msra.mxu0 0
        %866 = vmatprep.mubr.bf16.mxu0 0
        %867 = vmatmul.mubr.bf16.gmra.mrb[0].mxu0 %v811
        %v868 = vpop.f32.mrb[0].mxu0
        %v869 = vadd.f32 %v692, %v868
        %v870 = vpop.f32.mrb[0].mxu0
        %v871 = vpop.f32.mrb[0].mxu0
        %v872 = vadd.f32 %v697, %v871
        %v873 = vpop.f32.mrb[0].mxu0
        %874 = vmatprep.mubr.bf16.mxu0 0
        %875 = vmatmul.mubr.bf16.gmra.mrb[0].mxu0 %v814
        %v876 = vpop.f32.mrb[0].mxu0
        %v877 = vadd.f32 %v702, %v876
        %v878 = vpop.f32.mrb[0].mxu0
        %v879 = vpop.f32.mrb[0].mxu0
        %v880 = vadd.f32 %v707, %v879
        %v881 = vpop.f32.mrb[0].mxu0
        %882 = vmatprep.mubr.bf16.mxu0 0
        %883 = vmatmul.mubr.bf16.gmra.mrb[0].mxu0 %v817
        %v884 = vpop.f32.mrb[0].mxu0
        %v885 = vadd.f32 %v712, %v884
        %v886 = vpop.f32.mrb[0].mxu0
        %v887 = vpop.f32.mrb[0].mxu0
        %v888 = vadd.f32 %v717, %v887
        %v889 = vpop.f32.mrb[0].mxu0
        %890 = vmatprep.mubr.bf16.mxu0 0
        %891 = vmatmul.mubr.bf16.gmra.mrb[0].mxu0 %v820
        %v892 = vpop.f32.mrb[0].mxu0
        %v893 = vadd.f32 %v722, %v892
        %v894 = vpop.f32.mrb[0].mxu0
        %v895 = vpop.f32.mrb[0].mxu0
        %v896 = vadd.f32 %v727, %v895
        %v897 = vpop.f32.mrb[0].mxu0
        %898 = vmatprep.mubr.bf16.mxu0 0
        %899 = vmatmul.mubr.bf16.gmra.mrb[0].mxu0 %v823
        %v900 = vpop.f32.mrb[0].mxu0
        %v901 = vadd.f32 %v732, %v900
        %v902 = vpop.f32.mrb[0].mxu0
        %v903 = vpop.f32.mrb[0].mxu0
        %v904 = vadd.f32 %v737, %v903
        %v905 = vpop.f32.mrb[0].mxu0
        %906 = vmatprep.mubr.bf16.mxu0 0
        %907 = vmatmul.mubr.bf16.gmra.mrb[0].mxu0 %v826
        %v908 = vpop.f32.mrb[0].mxu0
        %v909 = vadd.f32 %v742, %v908
        %v910 = vpop.f32.mrb[0].mxu0
        %v911 = vpop.f32.mrb[0].mxu0
        %v912 = vadd.f32 %v747, %v911
        %v913 = vpop.f32.mrb[0].mxu0
        %914 = vmatprep.mubr.bf16.mxu0 0
        %915 = vmatmul.mubr.bf16.gmra.mrb[0].mxu0 %v829
        %v916 = vpop.f32.mrb[0].mxu0
        %v917 = vadd.f32 %v752, %v916
        %v918 = vpop.f32.mrb[0].mxu0
        %v919 = vpop.f32.mrb[0].mxu0
        %v920 = vadd.f32 %v757, %v919
        %v921 = vpop.f32.mrb[0].mxu0
        %922 = vmatprep.mubr.bf16.mxu0 0
        %923 = vmatmul.mubr.bf16.gmra.mrb[0].mxu0 %v832
        %v924 = vpop.f32.mrb[0].mxu0
        %v925 = vadd.f32 %v762, %v924
        %v926 = vpop.f32.mrb[0].mxu0
        %v927 = vpop.f32.mrb[0].mxu0
        %v928 = vadd.f32 %v767, %v927
        %v929 = vpop.f32.mrb[0].mxu0
        %930 = vdwg.mxu0
        %v931 = vmax.f32 %v869, 0.0
        %v932 = vmax.f32 %v872, 0.0
        %v933 = vmax.f32 %v877, 0.0
        %v934 = vmax.f32 %v880, 0.0
        %v935 = vmax.f32 %v885, 0.0
        %v936 = vmax.f32 %v888, 0.0
        %v937 = vmax.f32 %v893, 0.0
        %v938 = vmax.f32 %v896, 0.0
        %v939 = vmax.f32 %v901, 0.0
        %v940 = vmax.f32 %v904, 0.0
        %v941 = vmax.f32 %v909, 0.0
        %v942 = vmax.f32 %v912, 0.0
        %v943 = vmax.f32 %v917, 0.0
        %v944 = vmax.f32 %v920, 0.0
        %v945 = vmax.f32 %v925, 0.0
        %v946 = vmax.f32 %v928, 0.0
        %v947 = vld [vmem:[#allocation2] sm:$0xf]
        %v948 = vld [vmem:[#allocation2 + $0x4] sm:$0xf]
        %v949 = vld [vmem:[#allocation2 + $0x8] sm:$0xf]
        %v950 = vld [vmem:[#allocation2 + $0xc] sm:$0xf]
        %v951 = vld [vmem:[#allocation2 + $0x10] sm:$0xf]
        %v952 = vld [vmem:[#allocation2 + $0x14] sm:$0xf]
        %v953 = vld [vmem:[#allocation2 + $0x18] sm:$0xf]
        %v954 = vld [vmem:[#allocation2 + $0x1c] sm:$0xf]
        %v955 = vld [vmem:[#allocation2 + $0x20] sm:$0xf]
        %v956 = vld [vmem:[#allocation2 + $0x24] sm:$0xf]
        %v957 = vld [vmem:[#allocation2 + $0x28] sm:$0xf]
        %v958 = vld [vmem:[#allocation2 + $0x2c] sm:$0xf]
        %v959 = vld [vmem:[#allocation2 + $0x30] sm:$0xf]
        %v960 = vld [vmem:[#allocation2 + $0x34] sm:$0xf]
        %v961 = vld [vmem:[#allocation2 + $0x38] sm:$0xf]
        %v962 = vld [vmem:[#allocation2 + $0x3c] sm:$0xf]
        %v963 = vld [vmem:[#allocation2 + $0x40] sm:$0xf]
        %v964 = vld [vmem:[#allocation2 + $0x44] sm:$0xf]
        %v965 = vld [vmem:[#allocation2 + $0x48] sm:$0xf]
        %v966 = vld [vmem:[#allocation2 + $0x4c] sm:$0xf]
        %v967 = vld [vmem:[#allocation2 + $0x50] sm:$0xf]
        %v968 = vld [vmem:[#allocation2 + $0x54] sm:$0xf]
        %v969 = vld [vmem:[#allocation2 + $0x58] sm:$0xf]
        %v970 = vld [vmem:[#allocation2 + $0x5c] sm:$0xf]
        %v971 = vld [vmem:[#allocation2 + $0x60] sm:$0xf]
        %v972 = vld [vmem:[#allocation2 + $0x64] sm:$0xf]
        %v973 = vld [vmem:[#allocation2 + $0x68] sm:$0xf]
        %v974 = vld [vmem:[#allocation2 + $0x6c] sm:$0xf]
        %v975 = vld [vmem:[#allocation2 + $0x70] sm:$0xf]
        %v976 = vld [vmem:[#allocation2 + $0x74] sm:$0xf]
        %v977 = vld [vmem:[#allocation2 + $0x78] sm:$0xf]
        %v978 = vld [vmem:[#allocation2 + $0x7c] sm:$0xf]
        %v979 = vld [vmem:[#allocation2 + $0x80] sm:$0xf]
        %v980 = vld [vmem:[#allocation2 + $0x84] sm:$0xf]
        %v981 = vld [vmem:[#allocation2 + $0x88] sm:$0xf]
        %v982 = vld [vmem:[#allocation2 + $0x8c] sm:$0xf]
        %v983 = vld [vmem:[#allocation2 + $0x90] sm:$0xf]
        %v984 = vld [vmem:[#allocation2 + $0x94] sm:$0xf]
        %v985 = vld [vmem:[#allocation2 + $0x98] sm:$0xf]
        %v986 = vld [vmem:[#allocation2 + $0x9c] sm:$0xf]
        %v987 = vld [vmem:[#allocation2 + $0xa0] sm:$0xf]
        %v988 = vld [vmem:[#allocation2 + $0xa4] sm:$0xf]
        %v989 = vld [vmem:[#allocation2 + $0xa8] sm:$0xf]
        %v990 = vld [vmem:[#allocation2 + $0xac] sm:$0xf]
        %v991 = vld [vmem:[#allocation2 + $0xb0] sm:$0xf]
        %v992 = vld [vmem:[#allocation2 + $0xb4] sm:$0xf]
        %v993 = vld [vmem:[#allocation2 + $0xb8] sm:$0xf]
        %v994 = vld [vmem:[#allocation2 + $0xbc] sm:$0xf]
        %v995 = vld [vmem:[#allocation2 + $0xc0] sm:$0xf]
        %v996 = vld [vmem:[#allocation2 + $0xc4] sm:$0xf]
        %v997 = vld [vmem:[#allocation2 + $0xc8] sm:$0xf]
        %v998 = vld [vmem:[#allocation2 + $0xcc] sm:$0xf]
        %v999 = vld [vmem:[#allocation2 + $0xd0] sm:$0xf]
        %v1000 = vld [vmem:[#allocation2 + $0xd4] sm:$0xf]
        %v1001 = vld [vmem:[#allocation2 + $0xd8] sm:$0xf]
        %v1002 = vld [vmem:[#allocation2 + $0xdc] sm:$0xf]
        %v1003 = vld [vmem:[#allocation2 + $0xe0] sm:$0xf]
        %v1004 = vld [vmem:[#allocation2 + $0xe4] sm:$0xf]
        %v1005 = vld [vmem:[#allocation2 + $0xe8] sm:$0xf]
        %v1006 = vld [vmem:[#allocation2 + $0xec] sm:$0xf]
        %v1007 = vld [vmem:[#allocation2 + $0xf0] sm:$0xf]
        %v1008 = vld [vmem:[#allocation2 + $0xf4] sm:$0xf]
        %v1009 = vld [vmem:[#allocation2 + $0xf8] sm:$0xf]
        %v1010 = vld [vmem:[#allocation2 + $0xfc] sm:$0xf]
        %v1011 = vld [vmem:[#allocation2 + $0x100] sm:$0xf]
        %v1012 = vld [vmem:[#allocation2 + $0x104] sm:$0xf]
        %v1013 = vld [vmem:[#allocation2 + $0x108] sm:$0xf]
        %v1014 = vld [vmem:[#allocation2 + $0x10c] sm:$0xf]
        %v1015 = vld [vmem:[#allocation2 + $0x110] sm:$0xf]
        %v1016 = vld [vmem:[#allocation2 + $0x114] sm:$0xf]
        %v1017 = vld [vmem:[#allocation2 + $0x118] sm:$0xf]
        %v1018 = vld [vmem:[#allocation2 + $0x11c] sm:$0xf]
        %v1019 = vld [vmem:[#allocation2 + $0x120] sm:$0xf]
        %v1020 = vld [vmem:[#allocation2 + $0x124] sm:$0xf]
        %v1021 = vld [vmem:[#allocation2 + $0x128] sm:$0xf]
        %v1022 = vld [vmem:[#allocation2 + $0x12c] sm:$0xf]
        %v1023 = vld [vmem:[#allocation2 + $0x130] sm:$0xf]
        %v1024 = vld [vmem:[#allocation2 + $0x134] sm:$0xf]
        %v1025 = vld [vmem:[#allocation2 + $0x138] sm:$0xf]
        %v1026 = vld [vmem:[#allocation2 + $0x13c] sm:$0xf]
        %v1027 = vld [vmem:[#allocation2 + $0x140] sm:$0xf]
        %v1028 = vld [vmem:[#allocation2 + $0x144] sm:$0xf]
        %v1029 = vld [vmem:[#allocation2 + $0x148] sm:$0xf]
        %v1030 = vld [vmem:[#allocation2 + $0x14c] sm:$0xf]
        %v1031 = vld [vmem:[#allocation2 + $0x150] sm:$0xf]
        %v1032 = vld [vmem:[#allocation2 + $0x154] sm:$0xf]
        %v1033 = vld [vmem:[#allocation2 + $0x158] sm:$0xf]
        %v1034 = vld [vmem:[#allocation2 + $0x15c] sm:$0xf]
        %v1035 = vld [vmem:[#allocation2 + $0x160] sm:$0xf]
        %v1036 = vld [vmem:[#allocation2 + $0x164] sm:$0xf]
        %v1037 = vld [vmem:[#allocation2 + $0x168] sm:$0xf]
        %v1038 = vld [vmem:[#allocation2 + $0x16c] sm:$0xf]
        %v1039 = vld [vmem:[#allocation2 + $0x170] sm:$0xf]
        %v1040 = vld [vmem:[#allocation2 + $0x174] sm:$0xf]
        %v1041 = vld [vmem:[#allocation2 + $0x178] sm:$0xf]
        %v1042 = vld [vmem:[#allocation2 + $0x17c] sm:$0xf]
        %v1043 = vld [vmem:[#allocation2 + $0x180] sm:$0xf]
        %v1044 = vld [vmem:[#allocation2 + $0x184] sm:$0xf]
        %v1045 = vld [vmem:[#allocation2 + $0x188] sm:$0xf]
        %v1046 = vld [vmem:[#allocation2 + $0x18c] sm:$0xf]
        %v1047 = vld [vmem:[#allocation2 + $0x190] sm:$0xf]
        %v1048 = vld [vmem:[#allocation2 + $0x194] sm:$0xf]
        %v1049 = vld [vmem:[#allocation2 + $0x198] sm:$0xf]
        %v1050 = vld [vmem:[#allocation2 + $0x19c] sm:$0xf]
        %v1051 = vld [vmem:[#allocation2 + $0x1a0] sm:$0xf]
        %v1052 = vld [vmem:[#allocation2 + $0x1a4] sm:$0xf]
        %v1053 = vld [vmem:[#allocation2 + $0x1a8] sm:$0xf]
        %v1054 = vld [vmem:[#allocation2 + $0x1ac] sm:$0xf]
        %v1055 = vld [vmem:[#allocation2 + $0x1b0] sm:$0xf]
        %v1056 = vld [vmem:[#allocation2 + $0x1b4] sm:$0xf]
        %v1057 = vld [vmem:[#allocation2 + $0x1b8] sm:$0xf]
        %v1058 = vld [vmem:[#allocation2 + $0x1bc] sm:$0xf]
        %v1059 = vld [vmem:[#allocation2 + $0x1c0] sm:$0xf]
        %v1060 = vld [vmem:[#allocation2 + $0x1c4] sm:$0xf]
        %v1061 = vld [vmem:[#allocation2 + $0x1c8] sm:$0xf]
        %v1062 = vld [vmem:[#allocation2 + $0x1cc] sm:$0xf]
        %v1063 = vld [vmem:[#allocation2 + $0x1d0] sm:$0xf]
        %v1064 = vld [vmem:[#allocation2 + $0x1d4] sm:$0xf]
        %v1065 = vld [vmem:[#allocation2 + $0x1d8] sm:$0xf]
        %v1066 = vld [vmem:[#allocation2 + $0x1dc] sm:$0xf]
        %v1067 = vld [vmem:[#allocation2 + $0x1e0] sm:$0xf]
        %v1068 = vld [vmem:[#allocation2 + $0x1e4] sm:$0xf]
        %v1069 = vld [vmem:[#allocation2 + $0x1e8] sm:$0xf]
        %v1070 = vld [vmem:[#allocation2 + $0x1ec] sm:$0xf]
        %v1071 = vld [vmem:[#allocation2 + $0x1f0] sm:$0xf]
        %v1072 = vld [vmem:[#allocation2 + $0x1f4] sm:$0xf]
        %v1073 = vld [vmem:[#allocation2 + $0x1f8] sm:$0xf]
        %v1074 = vld [vmem:[#allocation2 + $0x1fc] sm:$0xf]
        %v1075 = vpack.c.bf16 %v932, %v931
        %v1076 = vpack.c.bf16 %v934, %v933
        %v1077 = vpack.c.bf16 %v936, %v935
        %v1078 = vpack.c.bf16 %v938, %v937
        %v1079 = vpack.c.bf16 %v940, %v939
        %v1080 = vpack.c.bf16 %v942, %v941
        %v1081 = vpack.c.bf16 %v944, %v943
        %v1082 = vpack.c.bf16 %v946, %v945
        %v1211 = vunpack.c.l.b16 %v947
        %v1212 = vunpack.c.l.b16 %v948
        %v1213 = vunpack.c.l.b16 %v949
        %v1214 = vunpack.c.l.b16 %v950
        %v1215 = vunpack.c.l.b16 %v951
        %v1216 = vunpack.c.l.b16 %v952
        %v1217 = vunpack.c.l.b16 %v953
        %v1218 = vunpack.c.l.b16 %v954
        %v1219 = vunpack.c.l.b16 %v955
        %v1220 = vunpack.c.l.b16 %v956
        %v1221 = vunpack.c.l.b16 %v957
        %v1222 = vunpack.c.l.b16 %v958
        %v1223 = vunpack.c.l.b16 %v959
        %v1224 = vunpack.c.l.b16 %v960
        %v1225 = vunpack.c.l.b16 %v961
        %v1226 = vunpack.c.l.b16 %v962
        %v1227 = vunpack.c.l.b16 %v963
        %v1228 = vunpack.c.l.b16 %v964
        %v1229 = vunpack.c.l.b16 %v965
        %v1230 = vunpack.c.l.b16 %v966
        %v1231 = vunpack.c.l.b16 %v967
        %v1232 = vunpack.c.l.b16 %v968
        %v1233 = vunpack.c.l.b16 %v969
        %v1234 = vunpack.c.l.b16 %v970
        %v1235 = vunpack.c.l.b16 %v971
        %v1236 = vunpack.c.l.b16 %v972
        %v1237 = vunpack.c.l.b16 %v973
        %v1238 = vunpack.c.l.b16 %v974
        %v1239 = vunpack.c.l.b16 %v975
        %v1240 = vunpack.c.l.b16 %v976
        %v1241 = vunpack.c.l.b16 %v977
        %v1242 = vunpack.c.l.b16 %v978
        %v1243 = vunpack.c.l.b16 %v979
        %v1244 = vunpack.c.l.b16 %v980
        %v1245 = vunpack.c.l.b16 %v981
        %v1246 = vunpack.c.l.b16 %v982
        %v1247 = vunpack.c.l.b16 %v983
        %v1248 = vunpack.c.l.b16 %v984
        %v1249 = vunpack.c.l.b16 %v985
        %v1250 = vunpack.c.l.b16 %v986
        %v1251 = vunpack.c.l.b16 %v987
        %v1252 = vunpack.c.l.b16 %v988
        %v1253 = vunpack.c.l.b16 %v989
        %v1254 = vunpack.c.l.b16 %v990
        %v1255 = vunpack.c.l.b16 %v991
        %v1256 = vunpack.c.l.b16 %v992
        %v1257 = vunpack.c.l.b16 %v993
        %v1258 = vunpack.c.l.b16 %v994
        %v1259 = vunpack.c.l.b16 %v995
        %v1260 = vunpack.c.l.b16 %v996
        %v1261 = vunpack.c.l.b16 %v997
        %v1262 = vunpack.c.l.b16 %v998
        %v1263 = vunpack.c.l.b16 %v999
        %v1264 = vunpack.c.l.b16 %v1000
        %v1265 = vunpack.c.l.b16 %v1001
        %v1266 = vunpack.c.l.b16 %v1002
        %v1267 = vunpack.c.l.b16 %v1003
        %v1268 = vunpack.c.l.b16 %v1004
        %v1269 = vunpack.c.l.b16 %v1005
        %v1270 = vunpack.c.l.b16 %v1006
        %v1271 = vunpack.c.l.b16 %v1007
        %v1272 = vunpack.c.l.b16 %v1008
        %v1273 = vunpack.c.l.b16 %v1009
        %v1274 = vunpack.c.l.b16 %v1010
        %v1275 = vunpack.c.l.b16 %v1011
        %v1276 = vunpack.c.l.b16 %v1012
        %v1277 = vunpack.c.l.b16 %v1013
        %v1278 = vunpack.c.l.b16 %v1014
        %v1279 = vunpack.c.l.b16 %v1015
        %v1280 = vunpack.c.l.b16 %v1016
        %v1281 = vunpack.c.l.b16 %v1017
        %v1282 = vunpack.c.l.b16 %v1018
        %v1283 = vunpack.c.l.b16 %v1019
        %v1284 = vunpack.c.l.b16 %v1020
        %v1285 = vunpack.c.l.b16 %v1021
        %v1286 = vunpack.c.l.b16 %v1022
        %v1287 = vunpack.c.l.b16 %v1023
        %v1288 = vunpack.c.l.b16 %v1024
        %v1289 = vunpack.c.l.b16 %v1025
        %v1290 = vunpack.c.l.b16 %v1026
        %v1291 = vunpack.c.l.b16 %v1027
        %v1292 = vunpack.c.l.b16 %v1028
        %v1293 = vunpack.c.l.b16 %v1029
        %v1294 = vunpack.c.l.b16 %v1030
        %v1295 = vunpack.c.l.b16 %v1031
        %v1296 = vunpack.c.l.b16 %v1032
        %v1297 = vunpack.c.l.b16 %v1033
        %v1298 = vunpack.c.l.b16 %v1034
        %v1299 = vunpack.c.l.b16 %v1035
        %v1300 = vunpack.c.l.b16 %v1036
        %v1301 = vunpack.c.l.b16 %v1037
        %v1302 = vunpack.c.l.b16 %v1038
        %v1303 = vunpack.c.l.b16 %v1039
        %v1304 = vunpack.c.l.b16 %v1040
        %v1305 = vunpack.c.l.b16 %v1041
        %v1306 = vunpack.c.l.b16 %v1042
        %v1307 = vunpack.c.l.b16 %v1043
        %v1308 = vunpack.c.l.b16 %v1044
        %v1309 = vunpack.c.l.b16 %v1045
        %v1310 = vunpack.c.l.b16 %v1046
        %v1311 = vunpack.c.l.b16 %v1047
        %v1312 = vunpack.c.l.b16 %v1048
        %v1313 = vunpack.c.l.b16 %v1049
        %v1314 = vunpack.c.l.b16 %v1050
        %v1315 = vunpack.c.l.b16 %v1051
        %v1316 = vunpack.c.l.b16 %v1052
        %v1317 = vunpack.c.l.b16 %v1053
        %v1318 = vunpack.c.l.b16 %v1054
        %v1319 = vunpack.c.l.b16 %v1055
        %v1320 = vunpack.c.l.b16 %v1056
        %v1321 = vunpack.c.l.b16 %v1057
        %v1322 = vunpack.c.l.b16 %v1058
        %v1323 = vunpack.c.l.b16 %v1059
        %v1324 = vunpack.c.l.b16 %v1060
        %v1325 = vunpack.c.l.b16 %v1061
        %v1326 = vunpack.c.l.b16 %v1062
        %v1327 = vunpack.c.l.b16 %v1063
        %v1328 = vunpack.c.l.b16 %v1064
        %v1329 = vunpack.c.l.b16 %v1065
        %v1330 = vunpack.c.l.b16 %v1066
        %v1331 = vunpack.c.l.b16 %v1067
        %v1332 = vunpack.c.l.b16 %v1068
        %v1333 = vunpack.c.l.b16 %v1069
        %v1334 = vunpack.c.l.b16 %v1070
        %v1335 = vunpack.c.l.b16 %v1071
        %v1336 = vunpack.c.l.b16 %v1072
        %v1337 = vunpack.c.l.b16 %v1073
        %v1338 = vunpack.c.l.b16 %v1074
        %v1339 = vpack.c.b16 %v1212, %v1211
        %v1340 = vpack.c.b16 %v1214, %v1213
        %v1341 = vpack.c.b16 %v1216, %v1215
        %v1342 = vpack.c.b16 %v1218, %v1217
        %v1343 = vpack.c.b16 %v1220, %v1219
        %v1344 = vpack.c.b16 %v1222, %v1221
        %v1345 = vpack.c.b16 %v1224, %v1223
        %v1346 = vpack.c.b16 %v1226, %v1225
        %v1347 = vpack.c.b16 %v1228, %v1227
        %v1348 = vpack.c.b16 %v1230, %v1229
        %v1349 = vpack.c.b16 %v1232, %v1231
        %v1350 = vpack.c.b16 %v1234, %v1233
        %v1351 = vpack.c.b16 %v1236, %v1235
        %v1352 = vpack.c.b16 %v1238, %v1237
        %v1353 = vpack.c.b16 %v1240, %v1239
        %v1354 = vpack.c.b16 %v1242, %v1241
        %v1355 = vpack.c.b16 %v1244, %v1243
        %v1356 = vpack.c.b16 %v1246, %v1245
        %v1357 = vpack.c.b16 %v1248, %v1247
        %v1358 = vpack.c.b16 %v1250, %v1249
        %v1359 = vpack.c.b16 %v1252, %v1251
        %v1360 = vpack.c.b16 %v1254, %v1253
        %v1361 = vpack.c.b16 %v1256, %v1255
        %v1362 = vpack.c.b16 %v1258, %v1257
        %v1363 = vpack.c.b16 %v1260, %v1259
        %v1364 = vpack.c.b16 %v1262, %v1261
        %v1365 = vpack.c.b16 %v1264, %v1263
        %v1366 = vpack.c.b16 %v1266, %v1265
        %v1367 = vpack.c.b16 %v1268, %v1267
        %v1368 = vpack.c.b16 %v1270, %v1269
        %v1369 = vpack.c.b16 %v1272, %v1271
        %v1370 = vpack.c.b16 %v1274, %v1273
        %v1371 = vpack.c.b16 %v1276, %v1275
        %v1372 = vpack.c.b16 %v1278, %v1277
        %v1373 = vpack.c.b16 %v1280, %v1279
        %v1374 = vpack.c.b16 %v1282, %v1281
        %v1375 = vpack.c.b16 %v1284, %v1283
        %v1376 = vpack.c.b16 %v1286, %v1285
        %v1377 = vpack.c.b16 %v1288, %v1287
        %v1378 = vpack.c.b16 %v1290, %v1289
        %v1379 = vpack.c.b16 %v1292, %v1291
        %v1380 = vpack.c.b16 %v1294, %v1293
        %v1381 = vpack.c.b16 %v1296, %v1295
        %v1382 = vpack.c.b16 %v1298, %v1297
        %v1383 = vpack.c.b16 %v1300, %v1299
        %v1384 = vpack.c.b16 %v1302, %v1301
        %v1385 = vpack.c.b16 %v1304, %v1303
        %v1386 = vpack.c.b16 %v1306, %v1305
        %v1387 = vpack.c.b16 %v1308, %v1307
        %v1388 = vpack.c.b16 %v1310, %v1309
        %v1389 = vpack.c.b16 %v1312, %v1311
        %v1390 = vpack.c.b16 %v1314, %v1313
        %v1391 = vpack.c.b16 %v1316, %v1315
        %v1392 = vpack.c.b16 %v1318, %v1317
        %v1393 = vpack.c.b16 %v1320, %v1319
        %v1394 = vpack.c.b16 %v1322, %v1321
        %v1395 = vpack.c.b16 %v1324, %v1323
        %v1396 = vpack.c.b16 %v1326, %v1325
        %v1397 = vpack.c.b16 %v1328, %v1327
        %v1398 = vpack.c.b16 %v1330, %v1329
        %v1399 = vpack.c.b16 %v1332, %v1331
        %v1400 = vpack.c.b16 %v1334, %v1333
        %v1401 = vpack.c.b16 %v1336, %v1335
        %v1402 = vpack.c.b16 %v1338, %v1337
        %1467 = vmatprep.subr.bf16.mxu0 0
        %1468 = vmatpush1.bf16.msra.mxu0 %v1075
        %1469 = vmatprep.subr.bf16.mxu0 0
        %1470 = vmatpush1.bf16.msra.mxu0 %v1076
        %1471 = vmatprep.subr.bf16.mxu0 0
        %1472 = vmatpush1.bf16.msra.mxu0 %v1077
        %1473 = vmatprep.subr.bf16.mxu0 0
        %1474 = vmatpush1.bf16.msra.mxu0 %v1078
        %1475 = vmatprep.subr.bf16.mxu0 0
        %1476 = vmatpush1.bf16.msra.mxu0 %v1079
        %1477 = vmatprep.subr.bf16.mxu0 0
        %1478 = vmatpush1.bf16.msra.mxu0 %v1080
        %1479 = vmatprep.subr.bf16.mxu0 0
        %1480 = vmatpush1.bf16.msra.mxu0 %v1081
        %1481 = vmatprep.subr.bf16.mxu0 0
        %1482 = vmatpush1.bf16.msra.mxu0 %v1082
        %1483 = vmatprep.subr.bf16.mxu0 0
        %1484 = vmatpush1.bf16.msra.mxu0 0
        %1485 = vmatprep.subr.bf16.mxu0 0
        %1486 = vmatpush1.bf16.msra.mxu0 0
        %1487 = vmatprep.subr.bf16.mxu0 0
        %1488 = vmatpush1.bf16.msra.mxu0 0
        %1489 = vmatprep.subr.bf16.mxu0 0
        %1490 = vmatpush1.bf16.msra.mxu0 0
        %1491 = vmatprep.subr.bf16.mxu0 0
        %1492 = vmatpush1.bf16.msra.mxu0 0
        %1493 = vmatprep.subr.bf16.mxu0 0
        %1494 = vmatpush1.bf16.msra.mxu0 0
        %1495 = vmatprep.subr.bf16.mxu0 0
        %1496 = vmatpush1.bf16.msra.mxu0 0
        %1497 = vmatprep.subr.bf16.mxu0 0
        %1498 = vmatpush1.bf16.msra.mxu0 0
        %1499 = vmatprep.mubr.bf16.mxu0 0
        %1500 = vmatmul.mubr.bf16.gmra.mrb[0].mxu0 %v1339
        %v1501 = vpop.f32.mrb[0].mxu0
        %v1502 = vadd.f32 0.0, %v1501
        %v1503 = vpop.f32.mrb[0].mxu0
        %v1504 = vpop.f32.mrb[0].mxu0
        %v1505 = vadd.f32 0.0, %v1504
        %v1506 = vpop.f32.mrb[0].mxu0
        %1507 = vmatprep.mubr.bf16.mxu0 0
        %1508 = vmatmul.mubr.bf16.gmra.mrb[0].mxu0 %v1340
        %v1509 = vpop.f32.mrb[0].mxu0
        %v1510 = vadd.f32 0.0, %v1509
        %v1511 = vpop.f32.mrb[0].mxu0
        %v1512 = vpop.f32.mrb[0].mxu0
        %v1513 = vadd.f32 0.0, %v1512
        %v1514 = vpop.f32.mrb[0].mxu0
        %1515 = vmatprep.mubr.bf16.mxu0 0
        %1516 = vmatmul.mubr.bf16.gmra.mrb[0].mxu0 %v1341
        %v1517 = vpop.f32.mrb[0].mxu0
        %v1518 = vadd.f32 0.0, %v1517
        %v1519 = vpop.f32.mrb[0].mxu0
        %v1520 = vpop.f32.mrb[0].mxu0
        %v1521 = vadd.f32 0.0, %v1520
        %v1522 = vpop.f32.mrb[0].mxu0
        %1523 = vmatprep.mubr.bf16.mxu0 0
        %1524 = vmatmul.mubr.bf16.gmra.mrb[0].mxu0 %v1342
        %v1525 = vpop.f32.mrb[0].mxu0
        %v1526 = vadd.f32 0.0, %v1525
        %v1527 = vpop.f32.mrb[0].mxu0
        %v1528 = vpop.f32.mrb[0].mxu0
        %v1529 = vadd.f32 0.0, %v1528
        %v1530 = vpop.f32.mrb[0].mxu0
        %1531 = vmatprep.mubr.bf16.mxu0 0
        %1532 = vmatmul.mubr.bf16.gmra.mrb[0].mxu0 %v1343
        %v1533 = vpop.f32.mrb[0].mxu0
        %v1534 = vadd.f32 0.0, %v1533
        %v1535 = vpop.f32.mrb[0].mxu0
        %v1536 = vpop.f32.mrb[0].mxu0
        %v1537 = vadd.f32 0.0, %v1536
        %v1538 = vpop.f32.mrb[0].mxu0
        %1539 = vmatprep.mubr.bf16.mxu0 0
        %1540 = vmatmul.mubr.bf16.gmra.mrb[0].mxu0 %v1344
        %v1541 = vpop.f32.mrb[0].mxu0
        %v1542 = vadd.f32 0.0, %v1541
        %v1543 = vpop.f32.mrb[0].mxu0
        %v1544 = vpop.f32.mrb[0].mxu0
        %v1545 = vadd.f32 0.0, %v1544
        %v1546 = vpop.f32.mrb[0].mxu0
        %1547 = vmatprep.mubr.bf16.mxu0 0
        %1548 = vmatmul.mubr.bf16.gmra.mrb[0].mxu0 %v1345
        %v1549 = vpop.f32.mrb[0].mxu0
        %v1550 = vadd.f32 0.0, %v1549
        %v1551 = vpop.f32.mrb[0].mxu0
        %v1552 = vpop.f32.mrb[0].mxu0
        %v1553 = vadd.f32 0.0, %v1552
        %v1554 = vpop.f32.mrb[0].mxu0
        %1555 = vmatprep.mubr.bf16.mxu0 0
        %1556 = vmatmul.mubr.bf16.gmra.mrb[0].mxu0 %v1346
        %v1557 = vpop.f32.mrb[0].mxu0
        %v1558 = vadd.f32 0.0, %v1557
        %v1559 = vpop.f32.mrb[0].mxu0
        %v1560 = vpop.f32.mrb[0].mxu0
        %v1561 = vadd.f32 0.0, %v1560
        %v1562 = vpop.f32.mrb[0].mxu0
        %1563 = vmatprep.mubr.bf16.mxu0 0
        %1564 = vmatmul.mubr.bf16.gmra.mrb[0].mxu0 %v1347
        %v1565 = vpop.f32.mrb[0].mxu0
        %v1566 = vadd.f32 0.0, %v1565
        %v1567 = vpop.f32.mrb[0].mxu0
        %v1568 = vpop.f32.mrb[0].mxu0
        %v1569 = vadd.f32 0.0, %v1568
        %v1570 = vpop.f32.mrb[0].mxu0
        %1571 = vmatprep.mubr.bf16.mxu0 0
        %1572 = vmatmul.mubr.bf16.gmra.mrb[0].mxu0 %v1348
        %v1573 = vpop.f32.mrb[0].mxu0
        %v1574 = vadd.f32 0.0, %v1573
        %v1575 = vpop.f32.mrb[0].mxu0
        %v1576 = vpop.f32.mrb[0].mxu0
        %v1577 = vadd.f32 0.0, %v1576
        %v1578 = vpop.f32.mrb[0].mxu0
        %1579 = vmatprep.mubr.bf16.mxu0 0
        %1580 = vmatmul.mubr.bf16.gmra.mrb[0].mxu0 %v1349
        %v1581 = vpop.f32.mrb[0].mxu0
        %v1582 = vadd.f32 0.0, %v1581
        %v1583 = vpop.f32.mrb[0].mxu0
        %v1584 = vpop.f32.mrb[0].mxu0
        %v1585 = vadd.f32 0.0, %v1584
        %v1586 = vpop.f32.mrb[0].mxu0
        %1587 = vmatprep.mubr.bf16.mxu0 0
        %1588 = vmatmul.mubr.bf16.gmra.mrb[0].mxu0 %v1350
        %v1589 = vpop.f32.mrb[0].mxu0
        %v1590 = vadd.f32 0.0, %v1589
        %v1591 = vpop.f32.mrb[0].mxu0
        %v1592 = vpop.f32.mrb[0].mxu0
        %v1593 = vadd.f32 0.0, %v1592
        %v1594 = vpop.f32.mrb[0].mxu0
        %1595 = vmatprep.mubr.bf16.mxu0 0
        %1596 = vmatmul.mubr.bf16.gmra.mrb[0].mxu0 %v1351
        %v1597 = vpop.f32.mrb[0].mxu0
        %v1598 = vadd.f32 0.0, %v1597
        %v1599 = vpop.f32.mrb[0].mxu0
        %v1600 = vpop.f32.mrb[0].mxu0
        %v1601 = vadd.f32 0.0, %v1600
        %v1602 = vpop.f32.mrb[0].mxu0
        %1603 = vmatprep.mubr.bf16.mxu0 0
        %1604 = vmatmul.mubr.bf16.gmra.mrb[0].mxu0 %v1352
        %v1605 = vpop.f32.mrb[0].mxu0
        %v1606 = vadd.f32 0.0, %v1605
        %v1607 = vpop.f32.mrb[0].mxu0
        %v1608 = vpop.f32.mrb[0].mxu0
        %v1609 = vadd.f32 0.0, %v1608
        %v1610 = vpop.f32.mrb[0].mxu0
        %1611 = vmatprep.mubr.bf16.mxu0 0
        %1612 = vmatmul.mubr.bf16.gmra.mrb[0].mxu0 %v1353
        %v1613 = vpop.f32.mrb[0].mxu0
        %v1614 = vadd.f32 0.0, %v1613
        %v1615 = vpop.f32.mrb[0].mxu0
        %v1616 = vpop.f32.mrb[0].mxu0
        %v1617 = vadd.f32 0.0, %v1616
        %v1618 = vpop.f32.mrb[0].mxu0
        %1619 = vmatprep.mubr.bf16.mxu0 0
        %1620 = vmatmul.mubr.bf16.gmra.mrb[0].mxu0 %v1354
        %v1621 = vpop.f32.mrb[0].mxu0
        %v1622 = vadd.f32 0.0, %v1621
        %v1623 = vpop.f32.mrb[0].mxu0
        %v1624 = vpop.f32.mrb[0].mxu0
        %v1625 = vadd.f32 0.0, %v1624
        %v1626 = vpop.f32.mrb[0].mxu0
        %1627 = vmatprep.mubr.bf16.mxu0 0
        %1628 = vmatmul.mubr.bf16.gmra.mrb[0].mxu0 %v1355
        %v1629 = vpop.f32.mrb[0].mxu0
        %v1630 = vadd.f32 0.0, %v1629
        %v1631 = vpop.f32.mrb[0].mxu0
        %v1632 = vpop.f32.mrb[0].mxu0
        %v1633 = vadd.f32 0.0, %v1632
        %v1634 = vpop.f32.mrb[0].mxu0
        %1635 = vmatprep.mubr.bf16.mxu0 0
        %1636 = vmatmul.mubr.bf16.gmra.mrb[0].mxu0 %v1356
        %v1637 = vpop.f32.mrb[0].mxu0
        %v1638 = vadd.f32 0.0, %v1637
        %v1639 = vpop.f32.mrb[0].mxu0
        %v1640 = vpop.f32.mrb[0].mxu0
        %v1641 = vadd.f32 0.0, %v1640
        %v1642 = vpop.f32.mrb[0].mxu0
        %1643 = vmatprep.mubr.bf16.mxu0 0
        %1644 = vmatmul.mubr.bf16.gmra.mrb[0].mxu0 %v1357
        %v1645 = vpop.f32.mrb[0].mxu0
        %v1646 = vadd.f32 0.0, %v1645
        %v1647 = vpop.f32.mrb[0].mxu0
        %v1648 = vpop.f32.mrb[0].mxu0
        %v1649 = vadd.f32 0.0, %v1648
        %v1650 = vpop.f32.mrb[0].mxu0
        %1651 = vmatprep.mubr.bf16.mxu0 0
        %1652 = vmatmul.mubr.bf16.gmra.mrb[0].mxu0 %v1358
        %v1653 = vpop.f32.mrb[0].mxu0
        %v1654 = vadd.f32 0.0, %v1653
        %v1655 = vpop.f32.mrb[0].mxu0
        %v1656 = vpop.f32.mrb[0].mxu0
        %v1657 = vadd.f32 0.0, %v1656
        %v1658 = vpop.f32.mrb[0].mxu0
        %1659 = vmatprep.mubr.bf16.mxu0 0
        %1660 = vmatmul.mubr.bf16.gmra.mrb[0].mxu0 %v1359
        %v1661 = vpop.f32.mrb[0].mxu0
        %v1662 = vadd.f32 0.0, %v1661
        %v1663 = vpop.f32.mrb[0].mxu0
        %v1664 = vpop.f32.mrb[0].mxu0
        %v1665 = vadd.f32 0.0, %v1664
        %v1666 = vpop.f32.mrb[0].mxu0
        %1667 = vmatprep.mubr.bf16.mxu0 0
        %1668 = vmatmul.mubr.bf16.gmra.mrb[0].mxu0 %v1360
        %v1669 = vpop.f32.mrb[0].mxu0
        %v1670 = vadd.f32 0.0, %v1669
        %v1671 = vpop.f32.mrb[0].mxu0
        %v1672 = vpop.f32.mrb[0].mxu0
        %v1673 = vadd.f32 0.0, %v1672
        %v1674 = vpop.f32.mrb[0].mxu0
        %1675 = vmatprep.mubr.bf16.mxu0 0
        %1676 = vmatmul.mubr.bf16.gmra.mrb[0].mxu0 %v1361
        %v1677 = vpop.f32.mrb[0].mxu0
        %v1678 = vadd.f32 0.0, %v1677
        %v1679 = vpop.f32.mrb[0].mxu0
        %v1680 = vpop.f32.mrb[0].mxu0
        %v1681 = vadd.f32 0.0, %v1680
        %v1682 = vpop.f32.mrb[0].mxu0
        %1683 = vmatprep.mubr.bf16.mxu0 0
        %1684 = vmatmul.mubr.bf16.gmra.mrb[0].mxu0 %v1362
        %v1685 = vpop.f32.mrb[0].mxu0
        %v1686 = vadd.f32 0.0, %v1685
        %v1687 = vpop.f32.mrb[0].mxu0
        %v1688 = vpop.f32.mrb[0].mxu0
        %v1689 = vadd.f32 0.0, %v1688
        %v1690 = vpop.f32.mrb[0].mxu0
        %1691 = vmatprep.mubr.bf16.mxu0 0
        %1692 = vmatmul.mubr.bf16.gmra.mrb[0].mxu0 %v1363
        %v1693 = vpop.f32.mrb[0].mxu0
        %v1694 = vadd.f32 0.0, %v1693
        %v1695 = vpop.f32.mrb[0].mxu0
        %v1696 = vpop.f32.mrb[0].mxu0
        %v1697 = vadd.f32 0.0, %v1696
        %v1698 = vpop.f32.mrb[0].mxu0
        %1699 = vmatprep.mubr.bf16.mxu0 0
        %1700 = vmatmul.mubr.bf16.gmra.mrb[0].mxu0 %v1364
        %v1701 = vpop.f32.mrb[0].mxu0
        %v1702 = vadd.f32 0.0, %v1701
        %v1703 = vpop.f32.mrb[0].mxu0
        %v1704 = vpop.f32.mrb[0].mxu0
        %v1705 = vadd.f32 0.0, %v1704
        %v1706 = vpop.f32.mrb[0].mxu0
        %1707 = vmatprep.mubr.bf16.mxu0 0
        %1708 = vmatmul.mubr.bf16.gmra.mrb[0].mxu0 %v1365
        %v1709 = vpop.f32.mrb[0].mxu0
        %v1710 = vadd.f32 0.0, %v1709
        %v1711 = vpop.f32.mrb[0].mxu0
        %v1712 = vpop.f32.mrb[0].mxu0
        %v1713 = vadd.f32 0.0, %v1712
        %v1714 = vpop.f32.mrb[0].mxu0
        %1715 = vmatprep.mubr.bf16.mxu0 0
        %1716 = vmatmul.mubr.bf16.gmra.mrb[0].mxu0 %v1366
        %v1717 = vpop.f32.mrb[0].mxu0
        %v1718 = vadd.f32 0.0, %v1717
        %v1719 = vpop.f32.mrb[0].mxu0
        %v1720 = vpop.f32.mrb[0].mxu0
        %v1721 = vadd.f32 0.0, %v1720
        %v1722 = vpop.f32.mrb[0].mxu0
        %1723 = vmatprep.mubr.bf16.mxu0 0
        %1724 = vmatmul.mubr.bf16.gmra.mrb[0].mxu0 %v1367
        %v1725 = vpop.f32.mrb[0].mxu0
        %v1726 = vadd.f32 0.0, %v1725
        %v1727 = vpop.f32.mrb[0].mxu0
        %v1728 = vpop.f32.mrb[0].mxu0
        %v1729 = vadd.f32 0.0, %v1728
        %v1730 = vpop.f32.mrb[0].mxu0
        %1731 = vmatprep.mubr.bf16.mxu0 0
        %1732 = vmatmul.mubr.bf16.gmra.mrb[0].mxu0 %v1368
        %v1733 = vpop.f32.mrb[0].mxu0
        %v1734 = vadd.f32 0.0, %v1733
        %v1735 = vpop.f32.mrb[0].mxu0
        %v1736 = vpop.f32.mrb[0].mxu0
        %v1737 = vadd.f32 0.0, %v1736
        %v1738 = vpop.f32.mrb[0].mxu0
        %1739 = vmatprep.mubr.bf16.mxu0 0
        %1740 = vmatmul.mubr.bf16.gmra.mrb[0].mxu0 %v1369
        %v1741 = vpop.f32.mrb[0].mxu0
        %v1742 = vadd.f32 0.0, %v1741
        %v1743 = vpop.f32.mrb[0].mxu0
        %v1744 = vpop.f32.mrb[0].mxu0
        %v1745 = vadd.f32 0.0, %v1744
        %v1746 = vpop.f32.mrb[0].mxu0
        %1747 = vmatprep.mubr.bf16.mxu0 0
        %1748 = vmatmul.mubr.bf16.gmra.mrb[0].mxu0 %v1370
        %v1749 = vpop.f32.mrb[0].mxu0
        %v1750 = vadd.f32 0.0, %v1749
        %v1751 = vpop.f32.mrb[0].mxu0
        %v1752 = vpop.f32.mrb[0].mxu0
        %v1753 = vadd.f32 0.0, %v1752
        %v1754 = vpop.f32.mrb[0].mxu0
        %1755 = vmatprep.mubr.bf16.mxu0 0
        %1756 = vmatmul.mubr.bf16.gmra.mrb[0].mxu0 %v1371
        %v1757 = vpop.f32.mrb[0].mxu0
        %v1758 = vadd.f32 0.0, %v1757
        %v1759 = vpop.f32.mrb[0].mxu0
        %v1760 = vpop.f32.mrb[0].mxu0
        %v1761 = vadd.f32 0.0, %v1760
        %v1762 = vpop.f32.mrb[0].mxu0
        %1763 = vmatprep.mubr.bf16.mxu0 0
        %1764 = vmatmul.mubr.bf16.gmra.mrb[0].mxu0 %v1372
        %v1765 = vpop.f32.mrb[0].mxu0
        %v1766 = vadd.f32 0.0, %v1765
        %v1767 = vpop.f32.mrb[0].mxu0
        %v1768 = vpop.f32.mrb[0].mxu0
        %v1769 = vadd.f32 0.0, %v1768
        %v1770 = vpop.f32.mrb[0].mxu0
        %1771 = vmatprep.mubr.bf16.mxu0 0
        %1772 = vmatmul.mubr.bf16.gmra.mrb[0].mxu0 %v1373
        %v1773 = vpop.f32.mrb[0].mxu0
        %v1774 = vadd.f32 0.0, %v1773
        %v1775 = vpop.f32.mrb[0].mxu0
        %v1776 = vpop.f32.mrb[0].mxu0
        %v1777 = vadd.f32 0.0, %v1776
        %v1778 = vpop.f32.mrb[0].mxu0
        %1779 = vmatprep.mubr.bf16.mxu0 0
        %1780 = vmatmul.mubr.bf16.gmra.mrb[0].mxu0 %v1374
        %v1781 = vpop.f32.mrb[0].mxu0
        %v1782 = vadd.f32 0.0, %v1781
        %v1783 = vpop.f32.mrb[0].mxu0
        %v1784 = vpop.f32.mrb[0].mxu0
        %v1785 = vadd.f32 0.0, %v1784
        %v1786 = vpop.f32.mrb[0].mxu0
        %1787 = vmatprep.mubr.bf16.mxu0 0
        %1788 = vmatmul.mubr.bf16.gmra.mrb[0].mxu0 %v1375
        %v1789 = vpop.f32.mrb[0].mxu0
        %v1790 = vadd.f32 0.0, %v1789
        %v1791 = vpop.f32.mrb[0].mxu0
        %v1792 = vpop.f32.mrb[0].mxu0
        %v1793 = vadd.f32 0.0, %v1792
        %v1794 = vpop.f32.mrb[0].mxu0
        %1795 = vmatprep.mubr.bf16.mxu0 0
        %1796 = vmatmul.mubr.bf16.gmra.mrb[0].mxu0 %v1376
        %v1797 = vpop.f32.mrb[0].mxu0
        %v1798 = vadd.f32 0.0, %v1797
        %v1799 = vpop.f32.mrb[0].mxu0
        %v1800 = vpop.f32.mrb[0].mxu0
        %v1801 = vadd.f32 0.0, %v1800
        %v1802 = vpop.f32.mrb[0].mxu0
        %1803 = vmatprep.mubr.bf16.mxu0 0
        %1804 = vmatmul.mubr.bf16.gmra.mrb[0].mxu0 %v1377
        %v1805 = vpop.f32.mrb[0].mxu0
        %v1806 = vadd.f32 0.0, %v1805
        %v1807 = vpop.f32.mrb[0].mxu0
        %v1808 = vpop.f32.mrb[0].mxu0
        %v1809 = vadd.f32 0.0, %v1808
        %v1810 = vpop.f32.mrb[0].mxu0
        %1811 = vmatprep.mubr.bf16.mxu0 0
        %1812 = vmatmul.mubr.bf16.gmra.mrb[0].mxu0 %v1378
        %v1813 = vpop.f32.mrb[0].mxu0
        %v1814 = vadd.f32 0.0, %v1813
        %v1815 = vpop.f32.mrb[0].mxu0
        %v1816 = vpop.f32.mrb[0].mxu0
        %v1817 = vadd.f32 0.0, %v1816
        %v1818 = vpop.f32.mrb[0].mxu0
        %1819 = vmatprep.mubr.bf16.mxu0 0
        %1820 = vmatmul.mubr.bf16.gmra.mrb[0].mxu0 %v1379
        %v1821 = vpop.f32.mrb[0].mxu0
        %v1822 = vadd.f32 0.0, %v1821
        %v1823 = vpop.f32.mrb[0].mxu0
        %v1824 = vpop.f32.mrb[0].mxu0
        %v1825 = vadd.f32 0.0, %v1824
        %v1826 = vpop.f32.mrb[0].mxu0
        %1827 = vmatprep.mubr.bf16.mxu0 0
        %1828 = vmatmul.mubr.bf16.gmra.mrb[0].mxu0 %v1380
        %v1829 = vpop.f32.mrb[0].mxu0
        %v1830 = vadd.f32 0.0, %v1829
        %v1831 = vpop.f32.mrb[0].mxu0
        %v1832 = vpop.f32.mrb[0].mxu0
        %v1833 = vadd.f32 0.0, %v1832
        %v1834 = vpop.f32.mrb[0].mxu0
        %1835 = vmatprep.mubr.bf16.mxu0 0
        %1836 = vmatmul.mubr.bf16.gmra.mrb[0].mxu0 %v1381
        %v1837 = vpop.f32.mrb[0].mxu0
        %v1838 = vadd.f32 0.0, %v1837
        %v1839 = vpop.f32.mrb[0].mxu0
        %v1840 = vpop.f32.mrb[0].mxu0
        %v1841 = vadd.f32 0.0, %v1840
        %v1842 = vpop.f32.mrb[0].mxu0
        %1843 = vmatprep.mubr.bf16.mxu0 0
        %1844 = vmatmul.mubr.bf16.gmra.mrb[0].mxu0 %v1382
        %v1845 = vpop.f32.mrb[0].mxu0
        %v1846 = vadd.f32 0.0, %v1845
        %v1847 = vpop.f32.mrb[0].mxu0
        %v1848 = vpop.f32.mrb[0].mxu0
        %v1849 = vadd.f32 0.0, %v1848
        %v1850 = vpop.f32.mrb[0].mxu0
        %1851 = vmatprep.mubr.bf16.mxu0 0
        %1852 = vmatmul.mubr.bf16.gmra.mrb[0].mxu0 %v1383
        %v1853 = vpop.f32.mrb[0].mxu0
        %v1854 = vadd.f32 0.0, %v1853
        %v1855 = vpop.f32.mrb[0].mxu0
        %v1856 = vpop.f32.mrb[0].mxu0
        %v1857 = vadd.f32 0.0, %v1856
        %v1858 = vpop.f32.mrb[0].mxu0
        %1859 = vmatprep.mubr.bf16.mxu0 0
        %1860 = vmatmul.mubr.bf16.gmra.mrb[0].mxu0 %v1384
        %v1861 = vpop.f32.mrb[0].mxu0
        %v1862 = vadd.f32 0.0, %v1861
        %v1863 = vpop.f32.mrb[0].mxu0
        %v1864 = vpop.f32.mrb[0].mxu0
        %v1865 = vadd.f32 0.0, %v1864
        %v1866 = vpop.f32.mrb[0].mxu0
        %1867 = vmatprep.mubr.bf16.mxu0 0
        %1868 = vmatmul.mubr.bf16.gmra.mrb[0].mxu0 %v1385
        %v1869 = vpop.f32.mrb[0].mxu0
        %v1870 = vadd.f32 0.0, %v1869
        %v1871 = vpop.f32.mrb[0].mxu0
        %v1872 = vpop.f32.mrb[0].mxu0
        %v1873 = vadd.f32 0.0, %v1872
        %v1874 = vpop.f32.mrb[0].mxu0
        %1875 = vmatprep.mubr.bf16.mxu0 0
        %1876 = vmatmul.mubr.bf16.gmra.mrb[0].mxu0 %v1386
        %v1877 = vpop.f32.mrb[0].mxu0
        %v1878 = vadd.f32 0.0, %v1877
        %v1879 = vpop.f32.mrb[0].mxu0
        %v1880 = vpop.f32.mrb[0].mxu0
        %v1881 = vadd.f32 0.0, %v1880
        %v1882 = vpop.f32.mrb[0].mxu0
        %1883 = vmatprep.mubr.bf16.mxu0 0
        %1884 = vmatmul.mubr.bf16.gmra.mrb[0].mxu0 %v1387
        %v1885 = vpop.f32.mrb[0].mxu0
        %v1886 = vadd.f32 0.0, %v1885
        %v1887 = vpop.f32.mrb[0].mxu0
        %v1888 = vpop.f32.mrb[0].mxu0
        %v1889 = vadd.f32 0.0, %v1888
        %v1890 = vpop.f32.mrb[0].mxu0
        %1891 = vmatprep.mubr.bf16.mxu0 0
        %1892 = vmatmul.mubr.bf16.gmra.mrb[0].mxu0 %v1388
        %v1893 = vpop.f32.mrb[0].mxu0
        %v1894 = vadd.f32 0.0, %v1893
        %v1895 = vpop.f32.mrb[0].mxu0
        %v1896 = vpop.f32.mrb[0].mxu0
        %v1897 = vadd.f32 0.0, %v1896
        %v1898 = vpop.f32.mrb[0].mxu0
        %1899 = vmatprep.mubr.bf16.mxu0 0
        %1900 = vmatmul.mubr.bf16.gmra.mrb[0].mxu0 %v1389
        %v1901 = vpop.f32.mrb[0].mxu0
        %v1902 = vadd.f32 0.0, %v1901
        %v1903 = vpop.f32.mrb[0].mxu0
        %v1904 = vpop.f32.mrb[0].mxu0
        %v1905 = vadd.f32 0.0, %v1904
        %v1906 = vpop.f32.mrb[0].mxu0
        %1907 = vmatprep.mubr.bf16.mxu0 0
        %1908 = vmatmul.mubr.bf16.gmra.mrb[0].mxu0 %v1390
        %v1909 = vpop.f32.mrb[0].mxu0
        %v1910 = vadd.f32 0.0, %v1909
        %v1911 = vpop.f32.mrb[0].mxu0
        %v1912 = vpop.f32.mrb[0].mxu0
        %v1913 = vadd.f32 0.0, %v1912
        %v1914 = vpop.f32.mrb[0].mxu0
        %1915 = vmatprep.mubr.bf16.mxu0 0
        %1916 = vmatmul.mubr.bf16.gmra.mrb[0].mxu0 %v1391
        %v1917 = vpop.f32.mrb[0].mxu0
        %v1918 = vadd.f32 0.0, %v1917
        %v1919 = vpop.f32.mrb[0].mxu0
        %v1920 = vpop.f32.mrb[0].mxu0
        %v1921 = vadd.f32 0.0, %v1920
        %v1922 = vpop.f32.mrb[0].mxu0
        %1923 = vmatprep.mubr.bf16.mxu0 0
        %1924 = vmatmul.mubr.bf16.gmra.mrb[0].mxu0 %v1392
        %v1925 = vpop.f32.mrb[0].mxu0
        %v1926 = vadd.f32 0.0, %v1925
        %v1927 = vpop.f32.mrb[0].mxu0
        %v1928 = vpop.f32.mrb[0].mxu0
        %v1929 = vadd.f32 0.0, %v1928
        %v1930 = vpop.f32.mrb[0].mxu0
        %1931 = vmatprep.mubr.bf16.mxu0 0
        %1932 = vmatmul.mubr.bf16.gmra.mrb[0].mxu0 %v1393
        %v1933 = vpop.f32.mrb[0].mxu0
        %v1934 = vadd.f32 0.0, %v1933
        %v1935 = vpop.f32.mrb[0].mxu0
        %v1936 = vpop.f32.mrb[0].mxu0
        %v1937 = vadd.f32 0.0, %v1936
        %v1938 = vpop.f32.mrb[0].mxu0
        %1939 = vmatprep.mubr.bf16.mxu0 0
        %1940 = vmatmul.mubr.bf16.gmra.mrb[0].mxu0 %v1394
        %v1941 = vpop.f32.mrb[0].mxu0
        %v1942 = vadd.f32 0.0, %v1941
        %v1943 = vpop.f32.mrb[0].mxu0
        %v1944 = vpop.f32.mrb[0].mxu0
        %v1945 = vadd.f32 0.0, %v1944
        %v1946 = vpop.f32.mrb[0].mxu0
        %1947 = vmatprep.mubr.bf16.mxu0 0
        %1948 = vmatmul.mubr.bf16.gmra.mrb[0].mxu0 %v1395
        %v1949 = vpop.f32.mrb[0].mxu0
        %v1950 = vadd.f32 0.0, %v1949
        %v1951 = vpop.f32.mrb[0].mxu0
        %v1952 = vpop.f32.mrb[0].mxu0
        %v1953 = vadd.f32 0.0, %v1952
        %v1954 = vpop.f32.mrb[0].mxu0
        %1955 = vmatprep.mubr.bf16.mxu0 0
        %1956 = vmatmul.mubr.bf16.gmra.mrb[0].mxu0 %v1396
        %v1957 = vpop.f32.mrb[0].mxu0
        %v1958 = vadd.f32 0.0, %v1957
        %v1959 = vpop.f32.mrb[0].mxu0
        %v1960 = vpop.f32.mrb[0].mxu0
        %v1961 = vadd.f32 0.0, %v1960
        %v1962 = vpop.f32.mrb[0].mxu0
        %1963 = vmatprep.mubr.bf16.mxu0 0
        %1964 = vmatmul.mubr.bf16.gmra.mrb[0].mxu0 %v1397
        %v1965 = vpop.f32.mrb[0].mxu0
        %v1966 = vadd.f32 0.0, %v1965
        %v1967 = vpop.f32.mrb[0].mxu0
        %v1968 = vpop.f32.mrb[0].mxu0
        %v1969 = vadd.f32 0.0, %v1968
        %v1970 = vpop.f32.mrb[0].mxu0
        %1971 = vmatprep.mubr.bf16.mxu0 0
        %1972 = vmatmul.mubr.bf16.gmra.mrb[0].mxu0 %v1398
        %v1973 = vpop.f32.mrb[0].mxu0
        %v1974 = vadd.f32 0.0, %v1973
        %v1975 = vpop.f32.mrb[0].mxu0
        %v1976 = vpop.f32.mrb[0].mxu0
        %v1977 = vadd.f32 0.0, %v1976
        %v1978 = vpop.f32.mrb[0].mxu0
        %1979 = vmatprep.mubr.bf16.mxu0 0
        %1980 = vmatmul.mubr.bf16.gmra.mrb[0].mxu0 %v1399
        %v1981 = vpop.f32.mrb[0].mxu0
        %v1982 = vadd.f32 0.0, %v1981
        %v1983 = vpop.f32.mrb[0].mxu0
        %v1984 = vpop.f32.mrb[0].mxu0
        %v1985 = vadd.f32 0.0, %v1984
        %v1986 = vpop.f32.mrb[0].mxu0
        %1987 = vmatprep.mubr.bf16.mxu0 0
        %1988 = vmatmul.mubr.bf16.gmra.mrb[0].mxu0 %v1400
        %v1989 = vpop.f32.mrb[0].mxu0
        %v1990 = vadd.f32 0.0, %v1989
        %v1991 = vpop.f32.mrb[0].mxu0
        %v1992 = vpop.f32.mrb[0].mxu0
        %v1993 = vadd.f32 0.0, %v1992
        %v1994 = vpop.f32.mrb[0].mxu0
        %1995 = vmatprep.mubr.bf16.mxu0 0
        %1996 = vmatmul.mubr.bf16.gmra.mrb[0].mxu0 %v1401
        %v1997 = vpop.f32.mrb[0].mxu0
        %v1998 = vadd.f32 0.0, %v1997
        %v1999 = vpop.f32.mrb[0].mxu0
        %v2000 = vpop.f32.mrb[0].mxu0
        %v2001 = vadd.f32 0.0, %v2000
        %v2002 = vpop.f32.mrb[0].mxu0
        %2003 = vmatprep.mubr.bf16.mxu0 0
        %2004 = vmatmul.mubr.bf16.gmra.mrb[0].mxu0 %v1402
        %v2005 = vpop.f32.mrb[0].mxu0
        %v2006 = vadd.f32 0.0, %v2005
        %v2007 = vpop.f32.mrb[0].mxu0
        %v2008 = vpop.f32.mrb[0].mxu0
        %v2009 = vadd.f32 0.0, %v2008
        %v2010 = vpop.f32.mrb[0].mxu0
        %2011 = vdwg.mxu0
        %p2012 = scmp.ne.s32.totalorder %s23, 1
        // Predicated region
        $region53: #{stn3d_forward.2} parent=43 // pred_check
          %p2013 = pneg %p2012
        $region54: #{stn3d_forward.2} parent=43 // pred_check_branch
          %2015 = sbr.rel (%p2013) target = $region56
        $region55: #{stn3d_forward.2} parent=43 // pred_region
          %v2016 = vld [vmem:[%s289] sm:$0xff]
          %v2017 = vld [vmem:[%s289 + $0x8] sm:$0xff]
          %v2018 = vld [vmem:[%s289 + $0x10] sm:$0xff]
          %v2019 = vld [vmem:[%s289 + $0x18] sm:$0xff]
          %v2020 = vld [vmem:[%s289 + $0x20] sm:$0xff]
          %v2021 = vld [vmem:[%s289 + $0x28] sm:$0xff]
          %v2022 = vld [vmem:[%s289 + $0x30] sm:$0xff]
          %v2023 = vld [vmem:[%s289 + $0x38] sm:$0xff]
          %v2024 = vld [vmem:[%s289 + $0x40] sm:$0xff]
          %v2025 = vld [vmem:[%s289 + $0x48] sm:$0xff]
          %v2026 = vld [vmem:[%s289 + $0x50] sm:$0xff]
          %v2027 = vld [vmem:[%s289 + $0x58] sm:$0xff]
          %v2028 = vld [vmem:[%s289 + $0x60] sm:$0xff]
          %v2029 = vld [vmem:[%s289 + $0x68] sm:$0xff]
          %v2030 = vld [vmem:[%s289 + $0x70] sm:$0xff]
          %v2031 = vld [vmem:[%s289 + $0x78] sm:$0xff]
          %v2032 = vld [vmem:[%s289 + $0x80] sm:$0xff]
          %v2033 = vld [vmem:[%s289 + $0x88] sm:$0xff]
          %v2034 = vld [vmem:[%s289 + $0x90] sm:$0xff]
          %v2035 = vld [vmem:[%s289 + $0x98] sm:$0xff]
          %v2036 = vld [vmem:[%s289 + $0xa0] sm:$0xff]
          %v2037 = vld [vmem:[%s289 + $0xa8] sm:$0xff]
          %v2038 = vld [vmem:[%s289 + $0xb0] sm:$0xff]
          %v2039 = vld [vmem:[%s289 + $0xb8] sm:$0xff]
          %v2040 = vld [vmem:[%s289 + $0xc0] sm:$0xff]
          %v2041 = vld [vmem:[%s289 + $0xc8] sm:$0xff]
          %v2042 = vld [vmem:[%s289 + $0xd0] sm:$0xff]
          %v2043 = vld [vmem:[%s289 + $0xd8] sm:$0xff]
          %v2044 = vld [vmem:[%s289 + $0xe0] sm:$0xff]
          %v2045 = vld [vmem:[%s289 + $0xe8] sm:$0xff]
          %v2046 = vld [vmem:[%s289 + $0xf0] sm:$0xff]
          %v2047 = vld [vmem:[%s289 + $0xf8] sm:$0xff]
          %v2048 = vld [vmem:[%s289 + $0x100] sm:$0xff]
          %v2049 = vld [vmem:[%s289 + $0x108] sm:$0xff]
          %v2050 = vld [vmem:[%s289 + $0x110] sm:$0xff]
          %v2051 = vld [vmem:[%s289 + $0x118] sm:$0xff]
          %v2052 = vld [vmem:[%s289 + $0x120] sm:$0xff]
          %v2053 = vld [vmem:[%s289 + $0x128] sm:$0xff]
          %v2054 = vld [vmem:[%s289 + $0x130] sm:$0xff]
          %v2055 = vld [vmem:[%s289 + $0x138] sm:$0xff]
          %v2056 = vld [vmem:[%s289 + $0x140] sm:$0xff]
          %v2057 = vld [vmem:[%s289 + $0x148] sm:$0xff]
          %v2058 = vld [vmem:[%s289 + $0x150] sm:$0xff]
          %v2059 = vld [vmem:[%s289 + $0x158] sm:$0xff]
          %v2060 = vld [vmem:[%s289 + $0x160] sm:$0xff]
          %v2061 = vld [vmem:[%s289 + $0x168] sm:$0xff]
          %v2062 = vld [vmem:[%s289 + $0x170] sm:$0xff]
          %v2063 = vld [vmem:[%s289 + $0x178] sm:$0xff]
          %v2064 = vld [vmem:[%s289 + $0x180] sm:$0xff]
          %v2065 = vld [vmem:[%s289 + $0x188] sm:$0xff]
          %v2066 = vld [vmem:[%s289 + $0x190] sm:$0xff]
          %v2067 = vld [vmem:[%s289 + $0x198] sm:$0xff]
          %v2068 = vld [vmem:[%s289 + $0x1a0] sm:$0xff]
          %v2069 = vld [vmem:[%s289 + $0x1a8] sm:$0xff]
          %v2070 = vld [vmem:[%s289 + $0x1b0] sm:$0xff]
          %v2071 = vld [vmem:[%s289 + $0x1b8] sm:$0xff]
          %v2072 = vld [vmem:[%s289 + $0x1c0] sm:$0xff]
          %v2073 = vld [vmem:[%s289 + $0x1c8] sm:$0xff]
          %v2074 = vld [vmem:[%s289 + $0x1d0] sm:$0xff]
          %v2075 = vld [vmem:[%s289 + $0x1d8] sm:$0xff]
          %v2076 = vld [vmem:[%s289 + $0x1e0] sm:$0xff]
          %v2077 = vld [vmem:[%s289 + $0x1e8] sm:$0xff]
          %v2078 = vld [vmem:[%s289 + $0x1f0] sm:$0xff]
          %v2079 = vld [vmem:[%s289 + $0x1f8] sm:$0xff]
          %v2080 = vld [vmem:[%s289 + $0x200] sm:$0xff]
          %v2081 = vld [vmem:[%s289 + $0x208] sm:$0xff]
          %v2082 = vld [vmem:[%s289 + $0x210] sm:$0xff]
          %v2083 = vld [vmem:[%s289 + $0x218] sm:$0xff]
          %v2084 = vld [vmem:[%s289 + $0x220] sm:$0xff]
          %v2085 = vld [vmem:[%s289 + $0x228] sm:$0xff]
          %v2086 = vld [vmem:[%s289 + $0x230] sm:$0xff]
          %v2087 = vld [vmem:[%s289 + $0x238] sm:$0xff]
          %v2088 = vld [vmem:[%s289 + $0x240] sm:$0xff]
          %v2089 = vld [vmem:[%s289 + $0x248] sm:$0xff]
          %v2090 = vld [vmem:[%s289 + $0x250] sm:$0xff]
          %v2091 = vld [vmem:[%s289 + $0x258] sm:$0xff]
          %v2092 = vld [vmem:[%s289 + $0x260] sm:$0xff]
          %v2093 = vld [vmem:[%s289 + $0x268] sm:$0xff]
          %v2094 = vld [vmem:[%s289 + $0x270] sm:$0xff]
          %v2095 = vld [vmem:[%s289 + $0x278] sm:$0xff]
          %v2096 = vld [vmem:[%s289 + $0x280] sm:$0xff]
          %v2097 = vld [vmem:[%s289 + $0x288] sm:$0xff]
          %v2098 = vld [vmem:[%s289 + $0x290] sm:$0xff]
          %v2099 = vld [vmem:[%s289 + $0x298] sm:$0xff]
          %v2100 = vld [vmem:[%s289 + $0x2a0] sm:$0xff]
          %v2101 = vld [vmem:[%s289 + $0x2a8] sm:$0xff]
          %v2102 = vld [vmem:[%s289 + $0x2b0] sm:$0xff]
          %v2103 = vld [vmem:[%s289 + $0x2b8] sm:$0xff]
          %v2104 = vld [vmem:[%s289 + $0x2c0] sm:$0xff]
          %v2105 = vld [vmem:[%s289 + $0x2c8] sm:$0xff]
          %v2106 = vld [vmem:[%s289 + $0x2d0] sm:$0xff]
          %v2107 = vld [vmem:[%s289 + $0x2d8] sm:$0xff]
          %v2108 = vld [vmem:[%s289 + $0x2e0] sm:$0xff]
          %v2109 = vld [vmem:[%s289 + $0x2e8] sm:$0xff]
          %v2110 = vld [vmem:[%s289 + $0x2f0] sm:$0xff]
          %v2111 = vld [vmem:[%s289 + $0x2f8] sm:$0xff]
          %v2112 = vld [vmem:[%s289 + $0x300] sm:$0xff]
          %v2113 = vld [vmem:[%s289 + $0x308] sm:$0xff]
          %v2114 = vld [vmem:[%s289 + $0x310] sm:$0xff]
          %v2115 = vld [vmem:[%s289 + $0x318] sm:$0xff]
          %v2116 = vld [vmem:[%s289 + $0x320] sm:$0xff]
          %v2117 = vld [vmem:[%s289 + $0x328] sm:$0xff]
          %v2118 = vld [vmem:[%s289 + $0x330] sm:$0xff]
          %v2119 = vld [vmem:[%s289 + $0x338] sm:$0xff]
          %v2120 = vld [vmem:[%s289 + $0x340] sm:$0xff]
          %v2121 = vld [vmem:[%s289 + $0x348] sm:$0xff]
          %v2122 = vld [vmem:[%s289 + $0x350] sm:$0xff]
          %v2123 = vld [vmem:[%s289 + $0x358] sm:$0xff]
          %v2124 = vld [vmem:[%s289 + $0x360] sm:$0xff]
          %v2125 = vld [vmem:[%s289 + $0x368] sm:$0xff]
          %v2126 = vld [vmem:[%s289 + $0x370] sm:$0xff]
          %v2127 = vld [vmem:[%s289 + $0x378] sm:$0xff]
          %v2128 = vld [vmem:[%s289 + $0x380] sm:$0xff]
          %v2129 = vld [vmem:[%s289 + $0x388] sm:$0xff]
          %v2130 = vld [vmem:[%s289 + $0x390] sm:$0xff]
          %v2131 = vld [vmem:[%s289 + $0x398] sm:$0xff]
          %v2132 = vld [vmem:[%s289 + $0x3a0] sm:$0xff]
          %v2133 = vld [vmem:[%s289 + $0x3a8] sm:$0xff]
          %v2134 = vld [vmem:[%s289 + $0x3b0] sm:$0xff]
          %v2135 = vld [vmem:[%s289 + $0x3b8] sm:$0xff]
          %v2136 = vld [vmem:[%s289 + $0x3c0] sm:$0xff]
          %v2137 = vld [vmem:[%s289 + $0x3c8] sm:$0xff]
          %v2138 = vld [vmem:[%s289 + $0x3d0] sm:$0xff]
          %v2139 = vld [vmem:[%s289 + $0x3d8] sm:$0xff]
          %v2140 = vld [vmem:[%s289 + $0x3e0] sm:$0xff]
          %v2141 = vld [vmem:[%s289 + $0x3e8] sm:$0xff]
          %v2142 = vld [vmem:[%s289 + $0x3f0] sm:$0xff]
          %v2143 = vld [vmem:[%s289 + $0x3f8] sm:$0xff]
          %2144 = vmax.xlane.f32.xlu0 %v1502
          %v2145 = vpop.xlane.xlu0 %2144
          %2146 = vmax.xlane.f32.xlu0 %v1505
          %v2147 = vpop.xlane.xlu0 %2146
          %2148 = vmax.xlane.f32.xlu0 %v1510
          %v2149 = vpop.xlane.xlu0 %2148
          %2150 = vmax.xlane.f32.xlu0 %v1513
          %v2151 = vpop.xlane.xlu0 %2150
          %2152 = vmax.xlane.f32.xlu0 %v1518
          %v2153 = vpop.xlane.xlu0 %2152
          %2154 = vmax.xlane.f32.xlu0 %v1521
          %v2155 = vpop.xlane.xlu0 %2154
          %2156 = vmax.xlane.f32.xlu0 %v1526
          %v2157 = vpop.xlane.xlu0 %2156
          %2158 = vmax.xlane.f32.xlu0 %v1529
          %v2159 = vpop.xlane.xlu0 %2158
          %2160 = vmax.xlane.f32.xlu0 %v1534
          %v2161 = vpop.xlane.xlu0 %2160
          %2162 = vmax.xlane.f32.xlu0 %v1537
          %v2163 = vpop.xlane.xlu0 %2162
          %2164 = vmax.xlane.f32.xlu0 %v1542
          %v2165 = vpop.xlane.xlu0 %2164
          %2166 = vmax.xlane.f32.xlu0 %v1545
          %v2167 = vpop.xlane.xlu0 %2166
          %2168 = vmax.xlane.f32.xlu0 %v1550
          %v2169 = vpop.xlane.xlu0 %2168
          %2170 = vmax.xlane.f32.xlu0 %v1553
          %v2171 = vpop.xlane.xlu0 %2170
          %2172 = vmax.xlane.f32.xlu0 %v1558
          %v2173 = vpop.xlane.xlu0 %2172
          %2174 = vmax.xlane.f32.xlu0 %v1561
          %v2175 = vpop.xlane.xlu0 %2174
          %2176 = vmax.xlane.f32.xlu0 %v1566
          %v2177 = vpop.xlane.xlu0 %2176
          %2178 = vmax.xlane.f32.xlu0 %v1569
          %v2179 = vpop.xlane.xlu0 %2178
          %2180 = vmax.xlane.f32.xlu0 %v1574
          %v2181 = vpop.xlane.xlu0 %2180
          %2182 = vmax.xlane.f32.xlu0 %v1577
          %v2183 = vpop.xlane.xlu0 %2182
          %2184 = vmax.xlane.f32.xlu0 %v1582
          %v2185 = vpop.xlane.xlu0 %2184
          %2186 = vmax.xlane.f32.xlu0 %v1585
          %v2187 = vpop.xlane.xlu0 %2186
          %2188 = vmax.xlane.f32.xlu0 %v1590
          %v2189 = vpop.xlane.xlu0 %2188
          %2190 = vmax.xlane.f32.xlu0 %v1593
          %v2191 = vpop.xlane.xlu0 %2190
          %2192 = vmax.xlane.f32.xlu0 %v1598
          %v2193 = vpop.xlane.xlu0 %2192
          %2194 = vmax.xlane.f32.xlu0 %v1601
          %v2195 = vpop.xlane.xlu0 %2194
          %2196 = vmax.xlane.f32.xlu0 %v1606
          %v2197 = vpop.xlane.xlu0 %2196
          %2198 = vmax.xlane.f32.xlu0 %v1609
          %v2199 = vpop.xlane.xlu0 %2198
          %2200 = vmax.xlane.f32.xlu0 %v1614
          %v2201 = vpop.xlane.xlu0 %2200
          %2202 = vmax.xlane.f32.xlu0 %v1617
          %v2203 = vpop.xlane.xlu0 %2202
          %2204 = vmax.xlane.f32.xlu0 %v1622
          %v2205 = vpop.xlane.xlu0 %2204
          %2206 = vmax.xlane.f32.xlu0 %v1625
          %v2207 = vpop.xlane.xlu0 %2206
          %2208 = vmax.xlane.f32.xlu0 %v1630
          %v2209 = vpop.xlane.xlu0 %2208
          %2210 = vmax.xlane.f32.xlu0 %v1633
          %v2211 = vpop.xlane.xlu0 %2210
          %2212 = vmax.xlane.f32.xlu0 %v1638
          %v2213 = vpop.xlane.xlu0 %2212
          %2214 = vmax.xlane.f32.xlu0 %v1641
          %v2215 = vpop.xlane.xlu0 %2214
          %2216 = vmax.xlane.f32.xlu0 %v1646
          %v2217 = vpop.xlane.xlu0 %2216
          %2218 = vmax.xlane.f32.xlu0 %v1649
          %v2219 = vpop.xlane.xlu0 %2218
          %2220 = vmax.xlane.f32.xlu0 %v1654
          %v2221 = vpop.xlane.xlu0 %2220
          %2222 = vmax.xlane.f32.xlu0 %v1657
          %v2223 = vpop.xlane.xlu0 %2222
          %2224 = vmax.xlane.f32.xlu0 %v1662
          %v2225 = vpop.xlane.xlu0 %2224
          %2226 = vmax.xlane.f32.xlu0 %v1665
          %v2227 = vpop.xlane.xlu0 %2226
          %2228 = vmax.xlane.f32.xlu0 %v1670
          %v2229 = vpop.xlane.xlu0 %2228
          %2230 = vmax.xlane.f32.xlu0 %v1673
          %v2231 = vpop.xlane.xlu0 %2230
          %2232 = vmax.xlane.f32.xlu0 %v1678
          %v2233 = vpop.xlane.xlu0 %2232
          %2234 = vmax.xlane.f32.xlu0 %v1681
          %v2235 = vpop.xlane.xlu0 %2234
          %2236 = vmax.xlane.f32.xlu0 %v1686
          %v2237 = vpop.xlane.xlu0 %2236
          %2238 = vmax.xlane.f32.xlu0 %v1689
          %v2239 = vpop.xlane.xlu0 %2238
          %2240 = vmax.xlane.f32.xlu0 %v1694
          %v2241 = vpop.xlane.xlu0 %2240
          %2242 = vmax.xlane.f32.xlu0 %v1697
          %v2243 = vpop.xlane.xlu0 %2242
          %2244 = vmax.xlane.f32.xlu0 %v1702
          %v2245 = vpop.xlane.xlu0 %2244
          %2246 = vmax.xlane.f32.xlu0 %v1705
          %v2247 = vpop.xlane.xlu0 %2246
          %2248 = vmax.xlane.f32.xlu0 %v1710
          %v2249 = vpop.xlane.xlu0 %2248
          %2250 = vmax.xlane.f32.xlu0 %v1713
          %v2251 = vpop.xlane.xlu0 %2250
          %2252 = vmax.xlane.f32.xlu0 %v1718
          %v2253 = vpop.xlane.xlu0 %2252
          %2254 = vmax.xlane.f32.xlu0 %v1721
          %v2255 = vpop.xlane.xlu0 %2254
          %2256 = vmax.xlane.f32.xlu0 %v1726
          %v2257 = vpop.xlane.xlu0 %2256
          %2258 = vmax.xlane.f32.xlu0 %v1729
          %v2259 = vpop.xlane.xlu0 %2258
          %2260 = vmax.xlane.f32.xlu0 %v1734
          %v2261 = vpop.xlane.xlu0 %2260
          %2262 = vmax.xlane.f32.xlu0 %v1737
          %v2263 = vpop.xlane.xlu0 %2262
          %2264 = vmax.xlane.f32.xlu0 %v1742
          %v2265 = vpop.xlane.xlu0 %2264
          %2266 = vmax.xlane.f32.xlu0 %v1745
          %v2267 = vpop.xlane.xlu0 %2266
          %2268 = vmax.xlane.f32.xlu0 %v1750
          %v2269 = vpop.xlane.xlu0 %2268
          %2270 = vmax.xlane.f32.xlu0 %v1753
          %v2271 = vpop.xlane.xlu0 %2270
          %2272 = vmax.xlane.f32.xlu0 %v1758
          %v2273 = vpop.xlane.xlu0 %2272
          %2274 = vmax.xlane.f32.xlu0 %v1761
          %v2275 = vpop.xlane.xlu0 %2274
          %2276 = vmax.xlane.f32.xlu0 %v1766
          %v2277 = vpop.xlane.xlu0 %2276
          %2278 = vmax.xlane.f32.xlu0 %v1769
          %v2279 = vpop.xlane.xlu0 %2278
          %2280 = vmax.xlane.f32.xlu0 %v1774
          %v2281 = vpop.xlane.xlu0 %2280
          %2282 = vmax.xlane.f32.xlu0 %v1777
          %v2283 = vpop.xlane.xlu0 %2282
          %2284 = vmax.xlane.f32.xlu0 %v1782
          %v2285 = vpop.xlane.xlu0 %2284
          %2286 = vmax.xlane.f32.xlu0 %v1785
          %v2287 = vpop.xlane.xlu0 %2286
          %2288 = vmax.xlane.f32.xlu0 %v1790
          %v2289 = vpop.xlane.xlu0 %2288
          %2290 = vmax.xlane.f32.xlu0 %v1793
          %v2291 = vpop.xlane.xlu0 %2290
          %2292 = vmax.xlane.f32.xlu0 %v1798
          %v2293 = vpop.xlane.xlu0 %2292
          %2294 = vmax.xlane.f32.xlu0 %v1801
          %v2295 = vpop.xlane.xlu0 %2294
          %2296 = vmax.xlane.f32.xlu0 %v1806
          %v2297 = vpop.xlane.xlu0 %2296
          %2298 = vmax.xlane.f32.xlu0 %v1809
          %v2299 = vpop.xlane.xlu0 %2298
          %2300 = vmax.xlane.f32.xlu0 %v1814
          %v2301 = vpop.xlane.xlu0 %2300
          %2302 = vmax.xlane.f32.xlu0 %v1817
          %v2303 = vpop.xlane.xlu0 %2302
          %2304 = vmax.xlane.f32.xlu0 %v1822
          %v2305 = vpop.xlane.xlu0 %2304
          %2306 = vmax.xlane.f32.xlu0 %v1825
          %v2307 = vpop.xlane.xlu0 %2306
          %2308 = vmax.xlane.f32.xlu0 %v1830
          %v2309 = vpop.xlane.xlu0 %2308
          %2310 = vmax.xlane.f32.xlu0 %v1833
          %v2311 = vpop.xlane.xlu0 %2310
          %2312 = vmax.xlane.f32.xlu0 %v1838
          %v2313 = vpop.xlane.xlu0 %2312
          %2314 = vmax.xlane.f32.xlu0 %v1841
          %v2315 = vpop.xlane.xlu0 %2314
          %2316 = vmax.xlane.f32.xlu0 %v1846
          %v2317 = vpop.xlane.xlu0 %2316
          %2318 = vmax.xlane.f32.xlu0 %v1849
          %v2319 = vpop.xlane.xlu0 %2318
          %2320 = vmax.xlane.f32.xlu0 %v1854
          %v2321 = vpop.xlane.xlu0 %2320
          %2322 = vmax.xlane.f32.xlu0 %v1857
          %v2323 = vpop.xlane.xlu0 %2322
          %2324 = vmax.xlane.f32.xlu0 %v1862
          %v2325 = vpop.xlane.xlu0 %2324
          %2326 = vmax.xlane.f32.xlu0 %v1865
          %v2327 = vpop.xlane.xlu0 %2326
          %2328 = vmax.xlane.f32.xlu0 %v1870
          %v2329 = vpop.xlane.xlu0 %2328
          %2330 = vmax.xlane.f32.xlu0 %v1873
          %v2331 = vpop.xlane.xlu0 %2330
          %2332 = vmax.xlane.f32.xlu0 %v1878
          %v2333 = vpop.xlane.xlu0 %2332
          %2334 = vmax.xlane.f32.xlu0 %v1881
          %v2335 = vpop.xlane.xlu0 %2334
          %2336 = vmax.xlane.f32.xlu0 %v1886
          %v2337 = vpop.xlane.xlu0 %2336
          %2338 = vmax.xlane.f32.xlu0 %v1889
          %v2339 = vpop.xlane.xlu0 %2338
          %2340 = vmax.xlane.f32.xlu0 %v1894
          %v2341 = vpop.xlane.xlu0 %2340
          %2342 = vmax.xlane.f32.xlu0 %v1897
          %v2343 = vpop.xlane.xlu0 %2342
          %2344 = vmax.xlane.f32.xlu0 %v1902
          %v2345 = vpop.xlane.xlu0 %2344
          %2346 = vmax.xlane.f32.xlu0 %v1905
          %v2347 = vpop.xlane.xlu0 %2346
          %2348 = vmax.xlane.f32.xlu0 %v1910
          %v2349 = vpop.xlane.xlu0 %2348
          %2350 = vmax.xlane.f32.xlu0 %v1913
          %v2351 = vpop.xlane.xlu0 %2350
          %2352 = vmax.xlane.f32.xlu0 %v1918
          %v2353 = vpop.xlane.xlu0 %2352
          %2354 = vmax.xlane.f32.xlu0 %v1921
          %v2355 = vpop.xlane.xlu0 %2354
          %2356 = vmax.xlane.f32.xlu0 %v1926
          %v2357 = vpop.xlane.xlu0 %2356
          %2358 = vmax.xlane.f32.xlu0 %v1929
          %v2359 = vpop.xlane.xlu0 %2358
          %2360 = vmax.xlane.f32.xlu0 %v1934
          %v2361 = vpop.xlane.xlu0 %2360
          %2362 = vmax.xlane.f32.xlu0 %v1937
          %v2363 = vpop.xlane.xlu0 %2362
          %2364 = vmax.xlane.f32.xlu0 %v1942
          %v2365 = vpop.xlane.xlu0 %2364
          %2366 = vmax.xlane.f32.xlu0 %v1945
          %v2367 = vpop.xlane.xlu0 %2366
          %2368 = vmax.xlane.f32.xlu0 %v1950
          %v2369 = vpop.xlane.xlu0 %2368
          %2370 = vmax.xlane.f32.xlu0 %v1953
          %v2371 = vpop.xlane.xlu0 %2370
          %2372 = vmax.xlane.f32.xlu0 %v1958
          %v2373 = vpop.xlane.xlu0 %2372
          %2374 = vmax.xlane.f32.xlu0 %v1961
          %v2375 = vpop.xlane.xlu0 %2374
          %2376 = vmax.xlane.f32.xlu0 %v1966
          %v2377 = vpop.xlane.xlu0 %2376
          %2378 = vmax.xlane.f32.xlu0 %v1969
          %v2379 = vpop.xlane.xlu0 %2378
          %2380 = vmax.xlane.f32.xlu0 %v1974
          %v2381 = vpop.xlane.xlu0 %2380
          %2382 = vmax.xlane.f32.xlu0 %v1977
          %v2383 = vpop.xlane.xlu0 %2382
          %2384 = vmax.xlane.f32.xlu0 %v1982
          %v2385 = vpop.xlane.xlu0 %2384
          %2386 = vmax.xlane.f32.xlu0 %v1985
          %v2387 = vpop.xlane.xlu0 %2386
          %2388 = vmax.xlane.f32.xlu0 %v1990
          %v2389 = vpop.xlane.xlu0 %2388
          %2390 = vmax.xlane.f32.xlu0 %v1993
          %v2391 = vpop.xlane.xlu0 %2390
          %2392 = vmax.xlane.f32.xlu0 %v1998
          %v2393 = vpop.xlane.xlu0 %2392
          %2394 = vmax.xlane.f32.xlu0 %v2001
          %v2395 = vpop.xlane.xlu0 %2394
          %2396 = vmax.xlane.f32.xlu0 %v2006
          %v2397 = vpop.xlane.xlu0 %2396
          %2398 = vmax.xlane.f32.xlu0 %v2009
          %v2399 = vpop.xlane.xlu0 %2398
          %v2400 = vmax.f32 %v2016, %v2145
          %v2401 = vmax.f32 %v2017, %v2147
          %v2402 = vmax.f32 %v2018, %v2149
          %v2403 = vmax.f32 %v2019, %v2151
          %v2404 = vmax.f32 %v2020, %v2153
          %v2405 = vmax.f32 %v2021, %v2155
          %v2406 = vmax.f32 %v2022, %v2157
          %v2407 = vmax.f32 %v2023, %v2159
          %v2408 = vmax.f32 %v2024, %v2161
          %v2409 = vmax.f32 %v2025, %v2163
          %v2410 = vmax.f32 %v2026, %v2165
          %v2411 = vmax.f32 %v2027, %v2167
          %v2412 = vmax.f32 %v2028, %v2169
          %v2413 = vmax.f32 %v2029, %v2171
          %v2414 = vmax.f32 %v2030, %v2173
          %v2415 = vmax.f32 %v2031, %v2175
          %v2416 = vmax.f32 %v2032, %v2177
          %v2417 = vmax.f32 %v2033, %v2179
          %v2418 = vmax.f32 %v2034, %v2181
          %v2419 = vmax.f32 %v2035, %v2183
          %v2420 = vmax.f32 %v2036, %v2185
          %v2421 = vmax.f32 %v2037, %v2187
          %v2422 = vmax.f32 %v2038, %v2189
          %v2423 = vmax.f32 %v2039, %v2191
          %v2424 = vmax.f32 %v2040, %v2193
          %v2425 = vmax.f32 %v2041, %v2195
          %v2426 = vmax.f32 %v2042, %v2197
          %v2427 = vmax.f32 %v2043, %v2199
          %v2428 = vmax.f32 %v2044, %v2201
          %v2429 = vmax.f32 %v2045, %v2203
          %v2430 = vmax.f32 %v2046, %v2205
          %v2431 = vmax.f32 %v2047, %v2207
          %v2432 = vmax.f32 %v2048, %v2209
          %v2433 = vmax.f32 %v2049, %v2211
          %v2434 = vmax.f32 %v2050, %v2213
          %v2435 = vmax.f32 %v2051, %v2215
          %v2436 = vmax.f32 %v2052, %v2217
          %v2437 = vmax.f32 %v2053, %v2219
          %v2438 = vmax.f32 %v2054, %v2221
          %v2439 = vmax.f32 %v2055, %v2223
          %v2440 = vmax.f32 %v2056, %v2225
          %v2441 = vmax.f32 %v2057, %v2227
          %v2442 = vmax.f32 %v2058, %v2229
          %v2443 = vmax.f32 %v2059, %v2231
          %v2444 = vmax.f32 %v2060, %v2233
          %v2445 = vmax.f32 %v2061, %v2235
          %v2446 = vmax.f32 %v2062, %v2237
          %v2447 = vmax.f32 %v2063, %v2239
          %v2448 = vmax.f32 %v2064, %v2241
          %v2449 = vmax.f32 %v2065, %v2243
          %v2450 = vmax.f32 %v2066, %v2245
          %v2451 = vmax.f32 %v2067, %v2247
          %v2452 = vmax.f32 %v2068, %v2249
          %v2453 = vmax.f32 %v2069, %v2251
          %v2454 = vmax.f32 %v2070, %v2253
          %v2455 = vmax.f32 %v2071, %v2255
          %v2456 = vmax.f32 %v2072, %v2257
          %v2457 = vmax.f32 %v2073, %v2259
          %v2458 = vmax.f32 %v2074, %v2261
          %v2459 = vmax.f32 %v2075, %v2263
          %v2460 = vmax.f32 %v2076, %v2265
          %v2461 = vmax.f32 %v2077, %v2267
          %v2462 = vmax.f32 %v2078, %v2269
          %v2463 = vmax.f32 %v2079, %v2271
          %v2464 = vmax.f32 %v2080, %v2273
          %v2465 = vmax.f32 %v2081, %v2275
          %v2466 = vmax.f32 %v2082, %v2277
          %v2467 = vmax.f32 %v2083, %v2279
          %v2468 = vmax.f32 %v2084, %v2281
          %v2469 = vmax.f32 %v2085, %v2283
          %v2470 = vmax.f32 %v2086, %v2285
          %v2471 = vmax.f32 %v2087, %v2287
          %v2472 = vmax.f32 %v2088, %v2289
          %v2473 = vmax.f32 %v2089, %v2291
          %v2474 = vmax.f32 %v2090, %v2293
          %v2475 = vmax.f32 %v2091, %v2295
          %v2476 = vmax.f32 %v2092, %v2297
          %v2477 = vmax.f32 %v2093, %v2299
          %v2478 = vmax.f32 %v2094, %v2301
          %v2479 = vmax.f32 %v2095, %v2303
          %v2480 = vmax.f32 %v2096, %v2305
          %v2481 = vmax.f32 %v2097, %v2307
          %v2482 = vmax.f32 %v2098, %v2309
          %v2483 = vmax.f32 %v2099, %v2311
          %v2484 = vmax.f32 %v2100, %v2313
          %v2485 = vmax.f32 %v2101, %v2315
          %v2486 = vmax.f32 %v2102, %v2317
          %v2487 = vmax.f32 %v2103, %v2319
          %v2488 = vmax.f32 %v2104, %v2321
          %v2489 = vmax.f32 %v2105, %v2323
          %v2490 = vmax.f32 %v2106, %v2325
          %v2491 = vmax.f32 %v2107, %v2327
          %v2492 = vmax.f32 %v2108, %v2329
          %v2493 = vmax.f32 %v2109, %v2331
          %v2494 = vmax.f32 %v2110, %v2333
          %v2495 = vmax.f32 %v2111, %v2335
          %v2496 = vmax.f32 %v2112, %v2337
          %v2497 = vmax.f32 %v2113, %v2339
          %v2498 = vmax.f32 %v2114, %v2341
          %v2499 = vmax.f32 %v2115, %v2343
          %v2500 = vmax.f32 %v2116, %v2345
          %v2501 = vmax.f32 %v2117, %v2347
          %v2502 = vmax.f32 %v2118, %v2349
          %v2503 = vmax.f32 %v2119, %v2351
          %v2504 = vmax.f32 %v2120, %v2353
          %v2505 = vmax.f32 %v2121, %v2355
          %v2506 = vmax.f32 %v2122, %v2357
          %v2507 = vmax.f32 %v2123, %v2359
          %v2508 = vmax.f32 %v2124, %v2361
          %v2509 = vmax.f32 %v2125, %v2363
          %v2510 = vmax.f32 %v2126, %v2365
          %v2511 = vmax.f32 %v2127, %v2367
          %v2512 = vmax.f32 %v2128, %v2369
          %v2513 = vmax.f32 %v2129, %v2371
          %v2514 = vmax.f32 %v2130, %v2373
          %v2515 = vmax.f32 %v2131, %v2375
          %v2516 = vmax.f32 %v2132, %v2377
          %v2517 = vmax.f32 %v2133, %v2379
          %v2518 = vmax.f32 %v2134, %v2381
          %v2519 = vmax.f32 %v2135, %v2383
          %v2520 = vmax.f32 %v2136, %v2385
          %v2521 = vmax.f32 %v2137, %v2387
          %v2522 = vmax.f32 %v2138, %v2389
          %v2523 = vmax.f32 %v2139, %v2391
          %v2524 = vmax.f32 %v2140, %v2393
          %v2525 = vmax.f32 %v2141, %v2395
          %v2526 = vmax.f32 %v2142, %v2397
          %v2527 = vmax.f32 %v2143, %v2399
          %vm2528 = vcmask 7168
          %2529 = vst.msk [vmem:[%s289] sm:$0xff] %vm2528, %v2400
          %2530 = vst.msk [vmem:[%s289 + $0x8] sm:$0xff] %vm2528, %v2401
          %2531 = vst.msk [vmem:[%s289 + $0x10] sm:$0xff] %vm2528, %v2402
          %2532 = vst.msk [vmem:[%s289 + $0x18] sm:$0xff] %vm2528, %v2403
          %2533 = vst.msk [vmem:[%s289 + $0x20] sm:$0xff] %vm2528, %v2404
          %2534 = vst.msk [vmem:[%s289 + $0x28] sm:$0xff] %vm2528, %v2405
          %2535 = vst.msk [vmem:[%s289 + $0x30] sm:$0xff] %vm2528, %v2406
          %2536 = vst.msk [vmem:[%s289 + $0x38] sm:$0xff] %vm2528, %v2407
          %2537 = vst.msk [vmem:[%s289 + $0x40] sm:$0xff] %vm2528, %v2408
          %2538 = vst.msk [vmem:[%s289 + $0x48] sm:$0xff] %vm2528, %v2409
          %2539 = vst.msk [vmem:[%s289 + $0x50] sm:$0xff] %vm2528, %v2410
          %2540 = vst.msk [vmem:[%s289 + $0x58] sm:$0xff] %vm2528, %v2411
          %2541 = vst.msk [vmem:[%s289 + $0x60] sm:$0xff] %vm2528, %v2412
          %2542 = vst.msk [vmem:[%s289 + $0x68] sm:$0xff] %vm2528, %v2413
          %2543 = vst.msk [vmem:[%s289 + $0x70] sm:$0xff] %vm2528, %v2414
          %2544 = vst.msk [vmem:[%s289 + $0x78] sm:$0xff] %vm2528, %v2415
          %2545 = vst.msk [vmem:[%s289 + $0x80] sm:$0xff] %vm2528, %v2416
          %2546 = vst.msk [vmem:[%s289 + $0x88] sm:$0xff] %vm2528, %v2417
          %2547 = vst.msk [vmem:[%s289 + $0x90] sm:$0xff] %vm2528, %v2418
          %2548 = vst.msk [vmem:[%s289 + $0x98] sm:$0xff] %vm2528, %v2419
          %2549 = vst.msk [vmem:[%s289 + $0xa0] sm:$0xff] %vm2528, %v2420
          %2550 = vst.msk [vmem:[%s289 + $0xa8] sm:$0xff] %vm2528, %v2421
          %2551 = vst.msk [vmem:[%s289 + $0xb0] sm:$0xff] %vm2528, %v2422
          %2552 = vst.msk [vmem:[%s289 + $0xb8] sm:$0xff] %vm2528, %v2423
          %2553 = vst.msk [vmem:[%s289 + $0xc0] sm:$0xff] %vm2528, %v2424
          %2554 = vst.msk [vmem:[%s289 + $0xc8] sm:$0xff] %vm2528, %v2425
          %2555 = vst.msk [vmem:[%s289 + $0xd0] sm:$0xff] %vm2528, %v2426
          %2556 = vst.msk [vmem:[%s289 + $0xd8] sm:$0xff] %vm2528, %v2427
          %2557 = vst.msk [vmem:[%s289 + $0xe0] sm:$0xff] %vm2528, %v2428
          %2558 = vst.msk [vmem:[%s289 + $0xe8] sm:$0xff] %vm2528, %v2429
          %2559 = vst.msk [vmem:[%s289 + $0xf0] sm:$0xff] %vm2528, %v2430
          %2560 = vst.msk [vmem:[%s289 + $0xf8] sm:$0xff] %vm2528, %v2431
          %2561 = vst.msk [vmem:[%s289 + $0x100] sm:$0xff] %vm2528, %v2432
          %2562 = vst.msk [vmem:[%s289 + $0x108] sm:$0xff] %vm2528, %v2433
          %2563 = vst.msk [vmem:[%s289 + $0x110] sm:$0xff] %vm2528, %v2434
          %2564 = vst.msk [vmem:[%s289 + $0x118] sm:$0xff] %vm2528, %v2435
          %2565 = vst.msk [vmem:[%s289 + $0x120] sm:$0xff] %vm2528, %v2436
          %2566 = vst.msk [vmem:[%s289 + $0x128] sm:$0xff] %vm2528, %v2437
          %2567 = vst.msk [vmem:[%s289 + $0x130] sm:$0xff] %vm2528, %v2438
          %2568 = vst.msk [vmem:[%s289 + $0x138] sm:$0xff] %vm2528, %v2439
          %2569 = vst.msk [vmem:[%s289 + $0x140] sm:$0xff] %vm2528, %v2440
          %2570 = vst.msk [vmem:[%s289 + $0x148] sm:$0xff] %vm2528, %v2441
          %2571 = vst.msk [vmem:[%s289 + $0x150] sm:$0xff] %vm2528, %v2442
          %2572 = vst.msk [vmem:[%s289 + $0x158] sm:$0xff] %vm2528, %v2443
          %2573 = vst.msk [vmem:[%s289 + $0x160] sm:$0xff] %vm2528, %v2444
          %2574 = vst.msk [vmem:[%s289 + $0x168] sm:$0xff] %vm2528, %v2445
          %2575 = vst.msk [vmem:[%s289 + $0x170] sm:$0xff] %vm2528, %v2446
          %2576 = vst.msk [vmem:[%s289 + $0x178] sm:$0xff] %vm2528, %v2447
          %2577 = vst.msk [vmem:[%s289 + $0x180] sm:$0xff] %vm2528, %v2448
          %2578 = vst.msk [vmem:[%s289 + $0x188] sm:$0xff] %vm2528, %v2449
          %2579 = vst.msk [vmem:[%s289 + $0x190] sm:$0xff] %vm2528, %v2450
          %2580 = vst.msk [vmem:[%s289 + $0x198] sm:$0xff] %vm2528, %v2451
          %2581 = vst.msk [vmem:[%s289 + $0x1a0] sm:$0xff] %vm2528, %v2452
          %2582 = vst.msk [vmem:[%s289 + $0x1a8] sm:$0xff] %vm2528, %v2453
          %2583 = vst.msk [vmem:[%s289 + $0x1b0] sm:$0xff] %vm2528, %v2454
          %2584 = vst.msk [vmem:[%s289 + $0x1b8] sm:$0xff] %vm2528, %v2455
          %2585 = vst.msk [vmem:[%s289 + $0x1c0] sm:$0xff] %vm2528, %v2456
          %2586 = vst.msk [vmem:[%s289 + $0x1c8] sm:$0xff] %vm2528, %v2457
          %2587 = vst.msk [vmem:[%s289 + $0x1d0] sm:$0xff] %vm2528, %v2458
          %2588 = vst.msk [vmem:[%s289 + $0x1d8] sm:$0xff] %vm2528, %v2459
          %2589 = vst.msk [vmem:[%s289 + $0x1e0] sm:$0xff] %vm2528, %v2460
          %2590 = vst.msk [vmem:[%s289 + $0x1e8] sm:$0xff] %vm2528, %v2461
          %2591 = vst.msk [vmem:[%s289 + $0x1f0] sm:$0xff] %vm2528, %v2462
          %2592 = vst.msk [vmem:[%s289 + $0x1f8] sm:$0xff] %vm2528, %v2463
          %2593 = vst.msk [vmem:[%s289 + $0x200] sm:$0xff] %vm2528, %v2464
          %2594 = vst.msk [vmem:[%s289 + $0x208] sm:$0xff] %vm2528, %v2465
          %2595 = vst.msk [vmem:[%s289 + $0x210] sm:$0xff] %vm2528, %v2466
          %2596 = vst.msk [vmem:[%s289 + $0x218] sm:$0xff] %vm2528, %v2467
          %2597 = vst.msk [vmem:[%s289 + $0x220] sm:$0xff] %vm2528, %v2468
          %2598 = vst.msk [vmem:[%s289 + $0x228] sm:$0xff] %vm2528, %v2469
          %2599 = vst.msk [vmem:[%s289 + $0x230] sm:$0xff] %vm2528, %v2470
          %2600 = vst.msk [vmem:[%s289 + $0x238] sm:$0xff] %vm2528, %v2471
          %2601 = vst.msk [vmem:[%s289 + $0x240] sm:$0xff] %vm2528, %v2472
          %2602 = vst.msk [vmem:[%s289 + $0x248] sm:$0xff] %vm2528, %v2473
          %2603 = vst.msk [vmem:[%s289 + $0x250] sm:$0xff] %vm2528, %v2474
          %2604 = vst.msk [vmem:[%s289 + $0x258] sm:$0xff] %vm2528, %v2475
          %2605 = vst.msk [vmem:[%s289 + $0x260] sm:$0xff] %vm2528, %v2476
          %2606 = vst.msk [vmem:[%s289 + $0x268] sm:$0xff] %vm2528, %v2477
          %2607 = vst.msk [vmem:[%s289 + $0x270] sm:$0xff] %vm2528, %v2478
          %2608 = vst.msk [vmem:[%s289 + $0x278] sm:$0xff] %vm2528, %v2479
          %2609 = vst.msk [vmem:[%s289 + $0x280] sm:$0xff] %vm2528, %v2480
          %2610 = vst.msk [vmem:[%s289 + $0x288] sm:$0xff] %vm2528, %v2481
          %2611 = vst.msk [vmem:[%s289 + $0x290] sm:$0xff] %vm2528, %v2482
          %2612 = vst.msk [vmem:[%s289 + $0x298] sm:$0xff] %vm2528, %v2483
          %2613 = vst.msk [vmem:[%s289 + $0x2a0] sm:$0xff] %vm2528, %v2484
          %2614 = vst.msk [vmem:[%s289 + $0x2a8] sm:$0xff] %vm2528, %v2485
          %2615 = vst.msk [vmem:[%s289 + $0x2b0] sm:$0xff] %vm2528, %v2486
          %2616 = vst.msk [vmem:[%s289 + $0x2b8] sm:$0xff] %vm2528, %v2487
          %2617 = vst.msk [vmem:[%s289 + $0x2c0] sm:$0xff] %vm2528, %v2488
          %2618 = vst.msk [vmem:[%s289 + $0x2c8] sm:$0xff] %vm2528, %v2489
          %2619 = vst.msk [vmem:[%s289 + $0x2d0] sm:$0xff] %vm2528, %v2490
          %2620 = vst.msk [vmem:[%s289 + $0x2d8] sm:$0xff] %vm2528, %v2491
          %2621 = vst.msk [vmem:[%s289 + $0x2e0] sm:$0xff] %vm2528, %v2492
          %2622 = vst.msk [vmem:[%s289 + $0x2e8] sm:$0xff] %vm2528, %v2493
          %2623 = vst.msk [vmem:[%s289 + $0x2f0] sm:$0xff] %vm2528, %v2494
          %2624 = vst.msk [vmem:[%s289 + $0x2f8] sm:$0xff] %vm2528, %v2495
          %2625 = vst.msk [vmem:[%s289 + $0x300] sm:$0xff] %vm2528, %v2496
          %2626 = vst.msk [vmem:[%s289 + $0x308] sm:$0xff] %vm2528, %v2497
          %2627 = vst.msk [vmem:[%s289 + $0x310] sm:$0xff] %vm2528, %v2498
          %2628 = vst.msk [vmem:[%s289 + $0x318] sm:$0xff] %vm2528, %v2499
          %2629 = vst.msk [vmem:[%s289 + $0x320] sm:$0xff] %vm2528, %v2500
          %2630 = vst.msk [vmem:[%s289 + $0x328] sm:$0xff] %vm2528, %v2501
          %2631 = vst.msk [vmem:[%s289 + $0x330] sm:$0xff] %vm2528, %v2502
          %2632 = vst.msk [vmem:[%s289 + $0x338] sm:$0xff] %vm2528, %v2503
          %2633 = vst.msk [vmem:[%s289 + $0x340] sm:$0xff] %vm2528, %v2504
          %2634 = vst.msk [vmem:[%s289 + $0x348] sm:$0xff] %vm2528, %v2505
          %2635 = vst.msk [vmem:[%s289 + $0x350] sm:$0xff] %vm2528, %v2506
          %2636 = vst.msk [vmem:[%s289 + $0x358] sm:$0xff] %vm2528, %v2507
          %2637 = vst.msk [vmem:[%s289 + $0x360] sm:$0xff] %vm2528, %v2508
          %2638 = vst.msk [vmem:[%s289 + $0x368] sm:$0xff] %vm2528, %v2509
          %2639 = vst.msk [vmem:[%s289 + $0x370] sm:$0xff] %vm2528, %v2510
          %2640 = vst.msk [vmem:[%s289 + $0x378] sm:$0xff] %vm2528, %v2511
          %2641 = vst.msk [vmem:[%s289 + $0x380] sm:$0xff] %vm2528, %v2512
          %2642 = vst.msk [vmem:[%s289 + $0x388] sm:$0xff] %vm2528, %v2513
          %2643 = vst.msk [vmem:[%s289 + $0x390] sm:$0xff] %vm2528, %v2514
          %2644 = vst.msk [vmem:[%s289 + $0x398] sm:$0xff] %vm2528, %v2515
          %2645 = vst.msk [vmem:[%s289 + $0x3a0] sm:$0xff] %vm2528, %v2516
          %2646 = vst.msk [vmem:[%s289 + $0x3a8] sm:$0xff] %vm2528, %v2517
          %2647 = vst.msk [vmem:[%s289 + $0x3b0] sm:$0xff] %vm2528, %v2518
          %2648 = vst.msk [vmem:[%s289 + $0x3b8] sm:$0xff] %vm2528, %v2519
          %2649 = vst.msk [vmem:[%s289 + $0x3c0] sm:$0xff] %vm2528, %v2520
          %2650 = vst.msk [vmem:[%s289 + $0x3c8] sm:$0xff] %vm2528, %v2521
          %2651 = vst.msk [vmem:[%s289 + $0x3d0] sm:$0xff] %vm2528, %v2522
          %2652 = vst.msk [vmem:[%s289 + $0x3d8] sm:$0xff] %vm2528, %v2523
          %2653 = vst.msk [vmem:[%s289 + $0x3e0] sm:$0xff] %vm2528, %v2524
          %2654 = vst.msk [vmem:[%s289 + $0x3e8] sm:$0xff] %vm2528, %v2525
          %2655 = vst.msk [vmem:[%s289 + $0x3f0] sm:$0xff] %vm2528, %v2526
          %2656 = vst.msk [vmem:[%s289 + $0x3f8] sm:$0xff] %vm2528, %v2527
        $region56: #{stn3d_forward.2} parent=43 // pred_fallthru
          _
        %p2657 = scmp.eq.s32.totalorder %s23, 1
        // Predicated region
        $region57: #{stn3d_forward.2} parent=43 // pred_check
          %p2658 = pneg %p2657
        $region58: #{stn3d_forward.2} parent=43 // pred_check_branch
          %2660 = sbr.rel (%p2658) target = $region60
        $region59: #{stn3d_forward.2} parent=43 // pred_region
          %v2661 = vlaneseq
          %v2662 = vand.u32 %v2661, 127
          %vm2663 = vcmp.lt.s32.totalorder %v2662, 72
          %v2664 = vsel %vm2663, 1, 0
          %vm2665 = vcmp.eq.s32.totalorder %v2664, 1
          %v2666 = vsel %vm2665, %v1502, -inf
          %v2667 = vsel %vm2665, %v1505, -inf
          %v2668 = vsel %vm2665, %v1510, -inf
          %v2669 = vsel %vm2665, %v1513, -inf
          %v2670 = vsel %vm2665, %v1518, -inf
          %v2671 = vsel %vm2665, %v1521, -inf
          %v2672 = vsel %vm2665, %v1526, -inf
          %v2673 = vsel %vm2665, %v1529, -inf
          %v2674 = vsel %vm2665, %v1534, -inf
          %v2675 = vsel %vm2665, %v1537, -inf
          %v2676 = vsel %vm2665, %v1542, -inf
          %v2677 = vsel %vm2665, %v1545, -inf
          %v2678 = vsel %vm2665, %v1550, -inf
          %v2679 = vsel %vm2665, %v1553, -inf
          %v2680 = vsel %vm2665, %v1558, -inf
          %v2681 = vsel %vm2665, %v1561, -inf
          %v2682 = vsel %vm2665, %v1566, -inf
          %v2683 = vsel %vm2665, %v1569, -inf
          %v2684 = vsel %vm2665, %v1574, -inf
          %v2685 = vsel %vm2665, %v1577, -inf
          %v2686 = vsel %vm2665, %v1582, -inf
          %v2687 = vsel %vm2665, %v1585, -inf
          %v2688 = vsel %vm2665, %v1590, -inf
          %v2689 = vsel %vm2665, %v1593, -inf
          %v2690 = vsel %vm2665, %v1598, -inf
          %v2691 = vsel %vm2665, %v1601, -inf
          %v2692 = vsel %vm2665, %v1606, -inf
          %v2693 = vsel %vm2665, %v1609, -inf
          %v2694 = vsel %vm2665, %v1614, -inf
          %v2695 = vsel %vm2665, %v1617, -inf
          %v2696 = vsel %vm2665, %v1622, -inf
          %v2697 = vsel %vm2665, %v1625, -inf
          %v2698 = vsel %vm2665, %v1630, -inf
          %v2699 = vsel %vm2665, %v1633, -inf
          %v2700 = vsel %vm2665, %v1638, -inf
          %v2701 = vsel %vm2665, %v1641, -inf
          %v2702 = vsel %vm2665, %v1646, -inf
          %v2703 = vsel %vm2665, %v1649, -inf
          %v2704 = vsel %vm2665, %v1654, -inf
          %v2705 = vsel %vm2665, %v1657, -inf
          %v2706 = vsel %vm2665, %v1662, -inf
          %v2707 = vsel %vm2665, %v1665, -inf
          %v2708 = vsel %vm2665, %v1670, -inf
          %v2709 = vsel %vm2665, %v1673, -inf
          %v2710 = vsel %vm2665, %v1678, -inf
          %v2711 = vsel %vm2665, %v1681, -inf
          %v2712 = vsel %vm2665, %v1686, -inf
          %v2713 = vsel %vm2665, %v1689, -inf
          %v2714 = vsel %vm2665, %v1694, -inf
          %v2715 = vsel %vm2665, %v1697, -inf
          %v2716 = vsel %vm2665, %v1702, -inf
          %v2717 = vsel %vm2665, %v1705, -inf
          %v2718 = vsel %vm2665, %v1710, -inf
          %v2719 = vsel %vm2665, %v1713, -inf
          %v2720 = vsel %vm2665, %v1718, -inf
          %v2721 = vsel %vm2665, %v1721, -inf
          %v2722 = vsel %vm2665, %v1726, -inf
          %v2723 = vsel %vm2665, %v1729, -inf
          %v2724 = vsel %vm2665, %v1734, -inf
          %v2725 = vsel %vm2665, %v1737, -inf
          %v2726 = vsel %vm2665, %v1742, -inf
          %v2727 = vsel %vm2665, %v1745, -inf
          %v2728 = vsel %vm2665, %v1750, -inf
          %v2729 = vsel %vm2665, %v1753, -inf
          %v2730 = vsel %vm2665, %v1758, -inf
          %v2731 = vsel %vm2665, %v1761, -inf
          %v2732 = vsel %vm2665, %v1766, -inf
          %v2733 = vsel %vm2665, %v1769, -inf
          %v2734 = vsel %vm2665, %v1774, -inf
          %v2735 = vsel %vm2665, %v1777, -inf
          %v2736 = vsel %vm2665, %v1782, -inf
          %v2737 = vsel %vm2665, %v1785, -inf
          %v2738 = vsel %vm2665, %v1790, -inf
          %v2739 = vsel %vm2665, %v1793, -inf
          %v2740 = vsel %vm2665, %v1798, -inf
          %v2741 = vsel %vm2665, %v1801, -inf
          %v2742 = vsel %vm2665, %v1806, -inf
          %v2743 = vsel %vm2665, %v1809, -inf
          %v2744 = vsel %vm2665, %v1814, -inf
          %v2745 = vsel %vm2665, %v1817, -inf
          %v2746 = vsel %vm2665, %v1822, -inf
          %v2747 = vsel %vm2665, %v1825, -inf
          %v2748 = vsel %vm2665, %v1830, -inf
          %v2749 = vsel %vm2665, %v1833, -inf
          %v2750 = vsel %vm2665, %v1838, -inf
          %v2751 = vsel %vm2665, %v1841, -inf
          %v2752 = vsel %vm2665, %v1846, -inf
          %v2753 = vsel %vm2665, %v1849, -inf
          %v2754 = vsel %vm2665, %v1854, -inf
          %v2755 = vsel %vm2665, %v1857, -inf
          %v2756 = vsel %vm2665, %v1862, -inf
          %v2757 = vsel %vm2665, %v1865, -inf
          %v2758 = vsel %vm2665, %v1870, -inf
          %v2759 = vsel %vm2665, %v1873, -inf
          %v2760 = vsel %vm2665, %v1878, -inf
          %v2761 = vsel %vm2665, %v1881, -inf
          %v2762 = vsel %vm2665, %v1886, -inf
          %v2763 = vsel %vm2665, %v1889, -inf
          %v2764 = vsel %vm2665, %v1894, -inf
          %v2765 = vsel %vm2665, %v1897, -inf
          %v2766 = vsel %vm2665, %v1902, -inf
          %v2767 = vsel %vm2665, %v1905, -inf
          %v2768 = vsel %vm2665, %v1910, -inf
          %v2769 = vsel %vm2665, %v1913, -inf
          %v2770 = vsel %vm2665, %v1918, -inf
          %v2771 = vsel %vm2665, %v1921, -inf
          %v2772 = vsel %vm2665, %v1926, -inf
          %v2773 = vsel %vm2665, %v1929, -inf
          %v2774 = vsel %vm2665, %v1934, -inf
          %v2775 = vsel %vm2665, %v1937, -inf
          %v2776 = vsel %vm2665, %v1942, -inf
          %v2777 = vsel %vm2665, %v1945, -inf
          %v2778 = vsel %vm2665, %v1950, -inf
          %v2779 = vsel %vm2665, %v1953, -inf
          %v2780 = vsel %vm2665, %v1958, -inf
          %v2781 = vsel %vm2665, %v1961, -inf
          %v2782 = vsel %vm2665, %v1966, -inf
          %v2783 = vsel %vm2665, %v1969, -inf
          %v2784 = vsel %vm2665, %v1974, -inf
          %v2785 = vsel %vm2665, %v1977, -inf
          %v2786 = vsel %vm2665, %v1982, -inf
          %v2787 = vsel %vm2665, %v1985, -inf
          %v2788 = vsel %vm2665, %v1990, -inf
          %v2789 = vsel %vm2665, %v1993, -inf
          %v2790 = vsel %vm2665, %v1998, -inf
          %v2791 = vsel %vm2665, %v2001, -inf
          %v2792 = vsel %vm2665, %v2006, -inf
          %v2793 = vsel %vm2665, %v2009, -inf
          %v2794 = vld [vmem:[%s289] sm:$0xff]
          %v2795 = vld [vmem:[%s289 + $0x8] sm:$0xff]
          %v2796 = vld [vmem:[%s289 + $0x10] sm:$0xff]
          %v2797 = vld [vmem:[%s289 + $0x18] sm:$0xff]
          %v2798 = vld [vmem:[%s289 + $0x20] sm:$0xff]
          %v2799 = vld [vmem:[%s289 + $0x28] sm:$0xff]
          %v2800 = vld [vmem:[%s289 + $0x30] sm:$0xff]
          %v2801 = vld [vmem:[%s289 + $0x38] sm:$0xff]
          %v2802 = vld [vmem:[%s289 + $0x40] sm:$0xff]
          %v2803 = vld [vmem:[%s289 + $0x48] sm:$0xff]
          %v2804 = vld [vmem:[%s289 + $0x50] sm:$0xff]
          %v2805 = vld [vmem:[%s289 + $0x58] sm:$0xff]
          %v2806 = vld [vmem:[%s289 + $0x60] sm:$0xff]
          %v2807 = vld [vmem:[%s289 + $0x68] sm:$0xff]
          %v2808 = vld [vmem:[%s289 + $0x70] sm:$0xff]
          %v2809 = vld [vmem:[%s289 + $0x78] sm:$0xff]
          %v2810 = vld [vmem:[%s289 + $0x80] sm:$0xff]
          %v2811 = vld [vmem:[%s289 + $0x88] sm:$0xff]
          %v2812 = vld [vmem:[%s289 + $0x90] sm:$0xff]
          %v2813 = vld [vmem:[%s289 + $0x98] sm:$0xff]
          %v2814 = vld [vmem:[%s289 + $0xa0] sm:$0xff]
          %v2815 = vld [vmem:[%s289 + $0xa8] sm:$0xff]
          %v2816 = vld [vmem:[%s289 + $0xb0] sm:$0xff]
          %v2817 = vld [vmem:[%s289 + $0xb8] sm:$0xff]
          %v2818 = vld [vmem:[%s289 + $0xc0] sm:$0xff]
          %v2819 = vld [vmem:[%s289 + $0xc8] sm:$0xff]
          %v2820 = vld [vmem:[%s289 + $0xd0] sm:$0xff]
          %v2821 = vld [vmem:[%s289 + $0xd8] sm:$0xff]
          %v2822 = vld [vmem:[%s289 + $0xe0] sm:$0xff]
          %v2823 = vld [vmem:[%s289 + $0xe8] sm:$0xff]
          %v2824 = vld [vmem:[%s289 + $0xf0] sm:$0xff]
          %v2825 = vld [vmem:[%s289 + $0xf8] sm:$0xff]
          %v2826 = vld [vmem:[%s289 + $0x100] sm:$0xff]
          %v2827 = vld [vmem:[%s289 + $0x108] sm:$0xff]
          %v2828 = vld [vmem:[%s289 + $0x110] sm:$0xff]
          %v2829 = vld [vmem:[%s289 + $0x118] sm:$0xff]
          %v2830 = vld [vmem:[%s289 + $0x120] sm:$0xff]
          %v2831 = vld [vmem:[%s289 + $0x128] sm:$0xff]
          %v2832 = vld [vmem:[%s289 + $0x130] sm:$0xff]
          %v2833 = vld [vmem:[%s289 + $0x138] sm:$0xff]
          %v2834 = vld [vmem:[%s289 + $0x140] sm:$0xff]
          %v2835 = vld [vmem:[%s289 + $0x148] sm:$0xff]
          %v2836 = vld [vmem:[%s289 + $0x150] sm:$0xff]
          %v2837 = vld [vmem:[%s289 + $0x158] sm:$0xff]
          %v2838 = vld [vmem:[%s289 + $0x160] sm:$0xff]
          %v2839 = vld [vmem:[%s289 + $0x168] sm:$0xff]
          %v2840 = vld [vmem:[%s289 + $0x170] sm:$0xff]
          %v2841 = vld [vmem:[%s289 + $0x178] sm:$0xff]
          %v2842 = vld [vmem:[%s289 + $0x180] sm:$0xff]
          %v2843 = vld [vmem:[%s289 + $0x188] sm:$0xff]
          %v2844 = vld [vmem:[%s289 + $0x190] sm:$0xff]
          %v2845 = vld [vmem:[%s289 + $0x198] sm:$0xff]
          %v2846 = vld [vmem:[%s289 + $0x1a0] sm:$0xff]
          %v2847 = vld [vmem:[%s289 + $0x1a8] sm:$0xff]
          %v2848 = vld [vmem:[%s289 + $0x1b0] sm:$0xff]
          %v2849 = vld [vmem:[%s289 + $0x1b8] sm:$0xff]
          %v2850 = vld [vmem:[%s289 + $0x1c0] sm:$0xff]
          %v2851 = vld [vmem:[%s289 + $0x1c8] sm:$0xff]
          %v2852 = vld [vmem:[%s289 + $0x1d0] sm:$0xff]
          %v2853 = vld [vmem:[%s289 + $0x1d8] sm:$0xff]
          %v2854 = vld [vmem:[%s289 + $0x1e0] sm:$0xff]
          %v2855 = vld [vmem:[%s289 + $0x1e8] sm:$0xff]
          %v2856 = vld [vmem:[%s289 + $0x1f0] sm:$0xff]
          %v2857 = vld [vmem:[%s289 + $0x1f8] sm:$0xff]
          %v2858 = vld [vmem:[%s289 + $0x200] sm:$0xff]
          %v2859 = vld [vmem:[%s289 + $0x208] sm:$0xff]
          %v2860 = vld [vmem:[%s289 + $0x210] sm:$0xff]
          %v2861 = vld [vmem:[%s289 + $0x218] sm:$0xff]
          %v2862 = vld [vmem:[%s289 + $0x220] sm:$0xff]
          %v2863 = vld [vmem:[%s289 + $0x228] sm:$0xff]
          %v2864 = vld [vmem:[%s289 + $0x230] sm:$0xff]
          %v2865 = vld [vmem:[%s289 + $0x238] sm:$0xff]
          %v2866 = vld [vmem:[%s289 + $0x240] sm:$0xff]
          %v2867 = vld [vmem:[%s289 + $0x248] sm:$0xff]
          %v2868 = vld [vmem:[%s289 + $0x250] sm:$0xff]
          %v2869 = vld [vmem:[%s289 + $0x258] sm:$0xff]
          %v2870 = vld [vmem:[%s289 + $0x260] sm:$0xff]
          %v2871 = vld [vmem:[%s289 + $0x268] sm:$0xff]
          %v2872 = vld [vmem:[%s289 + $0x270] sm:$0xff]
          %v2873 = vld [vmem:[%s289 + $0x278] sm:$0xff]
          %v2874 = vld [vmem:[%s289 + $0x280] sm:$0xff]
          %v2875 = vld [vmem:[%s289 + $0x288] sm:$0xff]
          %v2876 = vld [vmem:[%s289 + $0x290] sm:$0xff]
          %v2877 = vld [vmem:[%s289 + $0x298] sm:$0xff]
          %v2878 = vld [vmem:[%s289 + $0x2a0] sm:$0xff]
          %v2879 = vld [vmem:[%s289 + $0x2a8] sm:$0xff]
          %v2880 = vld [vmem:[%s289 + $0x2b0] sm:$0xff]
          %v2881 = vld [vmem:[%s289 + $0x2b8] sm:$0xff]
          %v2882 = vld [vmem:[%s289 + $0x2c0] sm:$0xff]
          %v2883 = vld [vmem:[%s289 + $0x2c8] sm:$0xff]
          %v2884 = vld [vmem:[%s289 + $0x2d0] sm:$0xff]
          %v2885 = vld [vmem:[%s289 + $0x2d8] sm:$0xff]
          %v2886 = vld [vmem:[%s289 + $0x2e0] sm:$0xff]
          %v2887 = vld [vmem:[%s289 + $0x2e8] sm:$0xff]
          %v2888 = vld [vmem:[%s289 + $0x2f0] sm:$0xff]
          %v2889 = vld [vmem:[%s289 + $0x2f8] sm:$0xff]
          %v2890 = vld [vmem:[%s289 + $0x300] sm:$0xff]
          %v2891 = vld [vmem:[%s289 + $0x308] sm:$0xff]
          %v2892 = vld [vmem:[%s289 + $0x310] sm:$0xff]
          %v2893 = vld [vmem:[%s289 + $0x318] sm:$0xff]
          %v2894 = vld [vmem:[%s289 + $0x320] sm:$0xff]
          %v2895 = vld [vmem:[%s289 + $0x328] sm:$0xff]
          %v2896 = vld [vmem:[%s289 + $0x330] sm:$0xff]
          %v2897 = vld [vmem:[%s289 + $0x338] sm:$0xff]
          %v2898 = vld [vmem:[%s289 + $0x340] sm:$0xff]
          %v2899 = vld [vmem:[%s289 + $0x348] sm:$0xff]
          %v2900 = vld [vmem:[%s289 + $0x350] sm:$0xff]
          %v2901 = vld [vmem:[%s289 + $0x358] sm:$0xff]
          %v2902 = vld [vmem:[%s289 + $0x360] sm:$0xff]
          %v2903 = vld [vmem:[%s289 + $0x368] sm:$0xff]
          %v2904 = vld [vmem:[%s289 + $0x370] sm:$0xff]
          %v2905 = vld [vmem:[%s289 + $0x378] sm:$0xff]
          %v2906 = vld [vmem:[%s289 + $0x380] sm:$0xff]
          %v2907 = vld [vmem:[%s289 + $0x388] sm:$0xff]
          %v2908 = vld [vmem:[%s289 + $0x390] sm:$0xff]
          %v2909 = vld [vmem:[%s289 + $0x398] sm:$0xff]
          %v2910 = vld [vmem:[%s289 + $0x3a0] sm:$0xff]
          %v2911 = vld [vmem:[%s289 + $0x3a8] sm:$0xff]
          %v2912 = vld [vmem:[%s289 + $0x3b0] sm:$0xff]
          %v2913 = vld [vmem:[%s289 + $0x3b8] sm:$0xff]
          %v2914 = vld [vmem:[%s289 + $0x3c0] sm:$0xff]
          %v2915 = vld [vmem:[%s289 + $0x3c8] sm:$0xff]
          %v2916 = vld [vmem:[%s289 + $0x3d0] sm:$0xff]
          %v2917 = vld [vmem:[%s289 + $0x3d8] sm:$0xff]
          %v2918 = vld [vmem:[%s289 + $0x3e0] sm:$0xff]
          %v2919 = vld [vmem:[%s289 + $0x3e8] sm:$0xff]
          %v2920 = vld [vmem:[%s289 + $0x3f0] sm:$0xff]
          %v2921 = vld [vmem:[%s289 + $0x3f8] sm:$0xff]
          %2922 = vmax.xlane.f32.xlu0 %v2666
          %v2923 = vpop.xlane.xlu0 %2922
          %2924 = vmax.xlane.f32.xlu0 %v2667
          %v2925 = vpop.xlane.xlu0 %2924
          %2926 = vmax.xlane.f32.xlu0 %v2668
          %v2927 = vpop.xlane.xlu0 %2926
          %2928 = vmax.xlane.f32.xlu0 %v2669
          %v2929 = vpop.xlane.xlu0 %2928
          %2930 = vmax.xlane.f32.xlu0 %v2670
          %v2931 = vpop.xlane.xlu0 %2930
          %2932 = vmax.xlane.f32.xlu0 %v2671
          %v2933 = vpop.xlane.xlu0 %2932
          %2934 = vmax.xlane.f32.xlu0 %v2672
          %v2935 = vpop.xlane.xlu0 %2934
          %2936 = vmax.xlane.f32.xlu0 %v2673
          %v2937 = vpop.xlane.xlu0 %2936
          %2938 = vmax.xlane.f32.xlu0 %v2674
          %v2939 = vpop.xlane.xlu0 %2938
          %2940 = vmax.xlane.f32.xlu0 %v2675
          %v2941 = vpop.xlane.xlu0 %2940
          %2942 = vmax.xlane.f32.xlu0 %v2676
          %v2943 = vpop.xlane.xlu0 %2942
          %2944 = vmax.xlane.f32.xlu0 %v2677
          %v2945 = vpop.xlane.xlu0 %2944
          %2946 = vmax.xlane.f32.xlu0 %v2678
          %v2947 = vpop.xlane.xlu0 %2946
          %2948 = vmax.xlane.f32.xlu0 %v2679
          %v2949 = vpop.xlane.xlu0 %2948
          %2950 = vmax.xlane.f32.xlu0 %v2680
          %v2951 = vpop.xlane.xlu0 %2950
          %2952 = vmax.xlane.f32.xlu0 %v2681
          %v2953 = vpop.xlane.xlu0 %2952
          %2954 = vmax.xlane.f32.xlu0 %v2682
          %v2955 = vpop.xlane.xlu0 %2954
          %2956 = vmax.xlane.f32.xlu0 %v2683
          %v2957 = vpop.xlane.xlu0 %2956
          %2958 = vmax.xlane.f32.xlu0 %v2684
          %v2959 = vpop.xlane.xlu0 %2958
          %2960 = vmax.xlane.f32.xlu0 %v2685
          %v2961 = vpop.xlane.xlu0 %2960
          %2962 = vmax.xlane.f32.xlu0 %v2686
          %v2963 = vpop.xlane.xlu0 %2962
          %2964 = vmax.xlane.f32.xlu0 %v2687
          %v2965 = vpop.xlane.xlu0 %2964
          %2966 = vmax.xlane.f32.xlu0 %v2688
          %v2967 = vpop.xlane.xlu0 %2966
          %2968 = vmax.xlane.f32.xlu0 %v2689
          %v2969 = vpop.xlane.xlu0 %2968
          %2970 = vmax.xlane.f32.xlu0 %v2690
          %v2971 = vpop.xlane.xlu0 %2970
          %2972 = vmax.xlane.f32.xlu0 %v2691
          %v2973 = vpop.xlane.xlu0 %2972
          %2974 = vmax.xlane.f32.xlu0 %v2692
          %v2975 = vpop.xlane.xlu0 %2974
          %2976 = vmax.xlane.f32.xlu0 %v2693
          %v2977 = vpop.xlane.xlu0 %2976
          %2978 = vmax.xlane.f32.xlu0 %v2694
          %v2979 = vpop.xlane.xlu0 %2978
          %2980 = vmax.xlane.f32.xlu0 %v2695
          %v2981 = vpop.xlane.xlu0 %2980
          %2982 = vmax.xlane.f32.xlu0 %v2696
          %v2983 = vpop.xlane.xlu0 %2982
          %2984 = vmax.xlane.f32.xlu0 %v2697
          %v2985 = vpop.xlane.xlu0 %2984
          %2986 = vmax.xlane.f32.xlu0 %v2698
          %v2987 = vpop.xlane.xlu0 %2986
          %2988 = vmax.xlane.f32.xlu0 %v2699
          %v2989 = vpop.xlane.xlu0 %2988
          %2990 = vmax.xlane.f32.xlu0 %v2700
          %v2991 = vpop.xlane.xlu0 %2990
          %2992 = vmax.xlane.f32.xlu0 %v2701
          %v2993 = vpop.xlane.xlu0 %2992
          %2994 = vmax.xlane.f32.xlu0 %v2702
          %v2995 = vpop.xlane.xlu0 %2994
          %2996 = vmax.xlane.f32.xlu0 %v2703
          %v2997 = vpop.xlane.xlu0 %2996
          %2998 = vmax.xlane.f32.xlu0 %v2704
          %v2999 = vpop.xlane.xlu0 %2998
          %3000 = vmax.xlane.f32.xlu0 %v2705
          %v3001 = vpop.xlane.xlu0 %3000
          %3002 = vmax.xlane.f32.xlu0 %v2706
          %v3003 = vpop.xlane.xlu0 %3002
          %3004 = vmax.xlane.f32.xlu0 %v2707
          %v3005 = vpop.xlane.xlu0 %3004
          %3006 = vmax.xlane.f32.xlu0 %v2708
          %v3007 = vpop.xlane.xlu0 %3006
          %3008 = vmax.xlane.f32.xlu0 %v2709
          %v3009 = vpop.xlane.xlu0 %3008
          %3010 = vmax.xlane.f32.xlu0 %v2710
          %v3011 = vpop.xlane.xlu0 %3010
          %3012 = vmax.xlane.f32.xlu0 %v2711
          %v3013 = vpop.xlane.xlu0 %3012
          %3014 = vmax.xlane.f32.xlu0 %v2712
          %v3015 = vpop.xlane.xlu0 %3014
          %3016 = vmax.xlane.f32.xlu0 %v2713
          %v3017 = vpop.xlane.xlu0 %3016
          %3018 = vmax.xlane.f32.xlu0 %v2714
          %v3019 = vpop.xlane.xlu0 %3018
          %3020 = vmax.xlane.f32.xlu0 %v2715
          %v3021 = vpop.xlane.xlu0 %3020
          %3022 = vmax.xlane.f32.xlu0 %v2716
          %v3023 = vpop.xlane.xlu0 %3022
          %3024 = vmax.xlane.f32.xlu0 %v2717
          %v3025 = vpop.xlane.xlu0 %3024
          %3026 = vmax.xlane.f32.xlu0 %v2718
          %v3027 = vpop.xlane.xlu0 %3026
          %3028 = vmax.xlane.f32.xlu0 %v2719
          %v3029 = vpop.xlane.xlu0 %3028
          %3030 = vmax.xlane.f32.xlu0 %v2720
          %v3031 = vpop.xlane.xlu0 %3030
          %3032 = vmax.xlane.f32.xlu0 %v2721
          %v3033 = vpop.xlane.xlu0 %3032
          %3034 = vmax.xlane.f32.xlu0 %v2722
          %v3035 = vpop.xlane.xlu0 %3034
          %3036 = vmax.xlane.f32.xlu0 %v2723
          %v3037 = vpop.xlane.xlu0 %3036
          %3038 = vmax.xlane.f32.xlu0 %v2724
          %v3039 = vpop.xlane.xlu0 %3038
          %3040 = vmax.xlane.f32.xlu0 %v2725
          %v3041 = vpop.xlane.xlu0 %3040
          %3042 = vmax.xlane.f32.xlu0 %v2726
          %v3043 = vpop.xlane.xlu0 %3042
          %3044 = vmax.xlane.f32.xlu0 %v2727
          %v3045 = vpop.xlane.xlu0 %3044
          %3046 = vmax.xlane.f32.xlu0 %v2728
          %v3047 = vpop.xlane.xlu0 %3046
          %3048 = vmax.xlane.f32.xlu0 %v2729
          %v3049 = vpop.xlane.xlu0 %3048
          %3050 = vmax.xlane.f32.xlu0 %v2730
          %v3051 = vpop.xlane.xlu0 %3050
          %3052 = vmax.xlane.f32.xlu0 %v2731
          %v3053 = vpop.xlane.xlu0 %3052
          %3054 = vmax.xlane.f32.xlu0 %v2732
          %v3055 = vpop.xlane.xlu0 %3054
          %3056 = vmax.xlane.f32.xlu0 %v2733
          %v3057 = vpop.xlane.xlu0 %3056
          %3058 = vmax.xlane.f32.xlu0 %v2734
          %v3059 = vpop.xlane.xlu0 %3058
          %3060 = vmax.xlane.f32.xlu0 %v2735
          %v3061 = vpop.xlane.xlu0 %3060
          %3062 = vmax.xlane.f32.xlu0 %v2736
          %v3063 = vpop.xlane.xlu0 %3062
          %3064 = vmax.xlane.f32.xlu0 %v2737
          %v3065 = vpop.xlane.xlu0 %3064
          %3066 = vmax.xlane.f32.xlu0 %v2738
          %v3067 = vpop.xlane.xlu0 %3066
          %3068 = vmax.xlane.f32.xlu0 %v2739
          %v3069 = vpop.xlane.xlu0 %3068
          %3070 = vmax.xlane.f32.xlu0 %v2740
          %v3071 = vpop.xlane.xlu0 %3070
          %3072 = vmax.xlane.f32.xlu0 %v2741
          %v3073 = vpop.xlane.xlu0 %3072
          %3074 = vmax.xlane.f32.xlu0 %v2742
          %v3075 = vpop.xlane.xlu0 %3074
          %3076 = vmax.xlane.f32.xlu0 %v2743
          %v3077 = vpop.xlane.xlu0 %3076
          %3078 = vmax.xlane.f32.xlu0 %v2744
          %v3079 = vpop.xlane.xlu0 %3078
          %3080 = vmax.xlane.f32.xlu0 %v2745
          %v3081 = vpop.xlane.xlu0 %3080
          %3082 = vmax.xlane.f32.xlu0 %v2746
          %v3083 = vpop.xlane.xlu0 %3082
          %3084 = vmax.xlane.f32.xlu0 %v2747
          %v3085 = vpop.xlane.xlu0 %3084
          %3086 = vmax.xlane.f32.xlu0 %v2748
          %v3087 = vpop.xlane.xlu0 %3086
          %3088 = vmax.xlane.f32.xlu0 %v2749
          %v3089 = vpop.xlane.xlu0 %3088
          %3090 = vmax.xlane.f32.xlu0 %v2750
          %v3091 = vpop.xlane.xlu0 %3090
          %3092 = vmax.xlane.f32.xlu0 %v2751
          %v3093 = vpop.xlane.xlu0 %3092
          %3094 = vmax.xlane.f32.xlu0 %v2752
          %v3095 = vpop.xlane.xlu0 %3094
          %3096 = vmax.xlane.f32.xlu0 %v2753
          %v3097 = vpop.xlane.xlu0 %3096
          %3098 = vmax.xlane.f32.xlu0 %v2754
          %v3099 = vpop.xlane.xlu0 %3098
          %3100 = vmax.xlane.f32.xlu0 %v2755
          %v3101 = vpop.xlane.xlu0 %3100
          %3102 = vmax.xlane.f32.xlu0 %v2756
          %v3103 = vpop.xlane.xlu0 %3102
          %3104 = vmax.xlane.f32.xlu0 %v2757
          %v3105 = vpop.xlane.xlu0 %3104
          %3106 = vmax.xlane.f32.xlu0 %v2758
          %v3107 = vpop.xlane.xlu0 %3106
          %3108 = vmax.xlane.f32.xlu0 %v2759
          %v3109 = vpop.xlane.xlu0 %3108
          %3110 = vmax.xlane.f32.xlu0 %v2760
          %v3111 = vpop.xlane.xlu0 %3110
          %3112 = vmax.xlane.f32.xlu0 %v2761
          %v3113 = vpop.xlane.xlu0 %3112
          %3114 = vmax.xlane.f32.xlu0 %v2762
          %v3115 = vpop.xlane.xlu0 %3114
          %3116 = vmax.xlane.f32.xlu0 %v2763
          %v3117 = vpop.xlane.xlu0 %3116
          %3118 = vmax.xlane.f32.xlu0 %v2764
          %v3119 = vpop.xlane.xlu0 %3118
          %3120 = vmax.xlane.f32.xlu0 %v2765
          %v3121 = vpop.xlane.xlu0 %3120
          %3122 = vmax.xlane.f32.xlu0 %v2766
          %v3123 = vpop.xlane.xlu0 %3122
          %3124 = vmax.xlane.f32.xlu0 %v2767
          %v3125 = vpop.xlane.xlu0 %3124
          %3126 = vmax.xlane.f32.xlu0 %v2768
          %v3127 = vpop.xlane.xlu0 %3126
          %3128 = vmax.xlane.f32.xlu0 %v2769
          %v3129 = vpop.xlane.xlu0 %3128
          %3130 = vmax.xlane.f32.xlu0 %v2770
          %v3131 = vpop.xlane.xlu0 %3130
          %3132 = vmax.xlane.f32.xlu0 %v2771
          %v3133 = vpop.xlane.xlu0 %3132
          %3134 = vmax.xlane.f32.xlu0 %v2772
          %v3135 = vpop.xlane.xlu0 %3134
          %3136 = vmax.xlane.f32.xlu0 %v2773
          %v3137 = vpop.xlane.xlu0 %3136
          %3138 = vmax.xlane.f32.xlu0 %v2774
          %v3139 = vpop.xlane.xlu0 %3138
          %3140 = vmax.xlane.f32.xlu0 %v2775
          %v3141 = vpop.xlane.xlu0 %3140
          %3142 = vmax.xlane.f32.xlu0 %v2776
          %v3143 = vpop.xlane.xlu0 %3142
          %3144 = vmax.xlane.f32.xlu0 %v2777
          %v3145 = vpop.xlane.xlu0 %3144
          %3146 = vmax.xlane.f32.xlu0 %v2778
          %v3147 = vpop.xlane.xlu0 %3146
          %3148 = vmax.xlane.f32.xlu0 %v2779
          %v3149 = vpop.xlane.xlu0 %3148
          %3150 = vmax.xlane.f32.xlu0 %v2780
          %v3151 = vpop.xlane.xlu0 %3150
          %3152 = vmax.xlane.f32.xlu0 %v2781
          %v3153 = vpop.xlane.xlu0 %3152
          %3154 = vmax.xlane.f32.xlu0 %v2782
          %v3155 = vpop.xlane.xlu0 %3154
          %3156 = vmax.xlane.f32.xlu0 %v2783
          %v3157 = vpop.xlane.xlu0 %3156
          %3158 = vmax.xlane.f32.xlu0 %v2784
          %v3159 = vpop.xlane.xlu0 %3158
          %3160 = vmax.xlane.f32.xlu0 %v2785
          %v3161 = vpop.xlane.xlu0 %3160
          %3162 = vmax.xlane.f32.xlu0 %v2786
          %v3163 = vpop.xlane.xlu0 %3162
          %3164 = vmax.xlane.f32.xlu0 %v2787
          %v3165 = vpop.xlane.xlu0 %3164
          %3166 = vmax.xlane.f32.xlu0 %v2788
          %v3167 = vpop.xlane.xlu0 %3166
          %3168 = vmax.xlane.f32.xlu0 %v2789
          %v3169 = vpop.xlane.xlu0 %3168
          %3170 = vmax.xlane.f32.xlu0 %v2790
          %v3171 = vpop.xlane.xlu0 %3170
          %3172 = vmax.xlane.f32.xlu0 %v2791
          %v3173 = vpop.xlane.xlu0 %3172
          %3174 = vmax.xlane.f32.xlu0 %v2792
          %v3175 = vpop.xlane.xlu0 %3174
          %3176 = vmax.xlane.f32.xlu0 %v2793
          %v3177 = vpop.xlane.xlu0 %3176
          %v3178 = vmax.f32 %v2794, %v2923
          %v3179 = vmax.f32 %v2795, %v2925
          %v3180 = vmax.f32 %v2796, %v2927
          %v3181 = vmax.f32 %v2797, %v2929
          %v3182 = vmax.f32 %v2798, %v2931
          %v3183 = vmax.f32 %v2799, %v2933
          %v3184 = vmax.f32 %v2800, %v2935
          %v3185 = vmax.f32 %v2801, %v2937
          %v3186 = vmax.f32 %v2802, %v2939
          %v3187 = vmax.f32 %v2803, %v2941
          %v3188 = vmax.f32 %v2804, %v2943
          %v3189 = vmax.f32 %v2805, %v2945
          %v3190 = vmax.f32 %v2806, %v2947
          %v3191 = vmax.f32 %v2807, %v2949
          %v3192 = vmax.f32 %v2808, %v2951
          %v3193 = vmax.f32 %v2809, %v2953
          %v3194 = vmax.f32 %v2810, %v2955
          %v3195 = vmax.f32 %v2811, %v2957
          %v3196 = vmax.f32 %v2812, %v2959
          %v3197 = vmax.f32 %v2813, %v2961
          %v3198 = vmax.f32 %v2814, %v2963
          %v3199 = vmax.f32 %v2815, %v2965
          %v3200 = vmax.f32 %v2816, %v2967
          %v3201 = vmax.f32 %v2817, %v2969
          %v3202 = vmax.f32 %v2818, %v2971
          %v3203 = vmax.f32 %v2819, %v2973
          %v3204 = vmax.f32 %v2820, %v2975
          %v3205 = vmax.f32 %v2821, %v2977
          %v3206 = vmax.f32 %v2822, %v2979
          %v3207 = vmax.f32 %v2823, %v2981
          %v3208 = vmax.f32 %v2824, %v2983
          %v3209 = vmax.f32 %v2825, %v2985
          %v3210 = vmax.f32 %v2826, %v2987
          %v3211 = vmax.f32 %v2827, %v2989
          %v3212 = vmax.f32 %v2828, %v2991
          %v3213 = vmax.f32 %v2829, %v2993
          %v3214 = vmax.f32 %v2830, %v2995
          %v3215 = vmax.f32 %v2831, %v2997
          %v3216 = vmax.f32 %v2832, %v2999
          %v3217 = vmax.f32 %v2833, %v3001
          %v3218 = vmax.f32 %v2834, %v3003
          %v3219 = vmax.f32 %v2835, %v3005
          %v3220 = vmax.f32 %v2836, %v3007
          %v3221 = vmax.f32 %v2837, %v3009
          %v3222 = vmax.f32 %v2838, %v3011
          %v3223 = vmax.f32 %v2839, %v3013
          %v3224 = vmax.f32 %v2840, %v3015
          %v3225 = vmax.f32 %v2841, %v3017
          %v3226 = vmax.f32 %v2842, %v3019
          %v3227 = vmax.f32 %v2843, %v3021
          %v3228 = vmax.f32 %v2844, %v3023
          %v3229 = vmax.f32 %v2845, %v3025
          %v3230 = vmax.f32 %v2846, %v3027
          %v3231 = vmax.f32 %v2847, %v3029
          %v3232 = vmax.f32 %v2848, %v3031
          %v3233 = vmax.f32 %v2849, %v3033
          %v3234 = vmax.f32 %v2850, %v3035
          %v3235 = vmax.f32 %v2851, %v3037
          %v3236 = vmax.f32 %v2852, %v3039
          %v3237 = vmax.f32 %v2853, %v3041
          %v3238 = vmax.f32 %v2854, %v3043
          %v3239 = vmax.f32 %v2855, %v3045
          %v3240 = vmax.f32 %v2856, %v3047
          %v3241 = vmax.f32 %v2857, %v3049
          %v3242 = vmax.f32 %v2858, %v3051
          %v3243 = vmax.f32 %v2859, %v3053
          %v3244 = vmax.f32 %v2860, %v3055
          %v3245 = vmax.f32 %v2861, %v3057
          %v3246 = vmax.f32 %v2862, %v3059
          %v3247 = vmax.f32 %v2863, %v3061
          %v3248 = vmax.f32 %v2864, %v3063
          %v3249 = vmax.f32 %v2865, %v3065
          %v3250 = vmax.f32 %v2866, %v3067
          %v3251 = vmax.f32 %v2867, %v3069
          %v3252 = vmax.f32 %v2868, %v3071
          %v3253 = vmax.f32 %v2869, %v3073
          %v3254 = vmax.f32 %v2870, %v3075
          %v3255 = vmax.f32 %v2871, %v3077
          %v3256 = vmax.f32 %v2872, %v3079
          %v3257 = vmax.f32 %v2873, %v3081
          %v3258 = vmax.f32 %v2874, %v3083
          %v3259 = vmax.f32 %v2875, %v3085
          %v3260 = vmax.f32 %v2876, %v3087
          %v3261 = vmax.f32 %v2877, %v3089
          %v3262 = vmax.f32 %v2878, %v3091
          %v3263 = vmax.f32 %v2879, %v3093
          %v3264 = vmax.f32 %v2880, %v3095
          %v3265 = vmax.f32 %v2881, %v3097
          %v3266 = vmax.f32 %v2882, %v3099
          %v3267 = vmax.f32 %v2883, %v3101
          %v3268 = vmax.f32 %v2884, %v3103
          %v3269 = vmax.f32 %v2885, %v3105
          %v3270 = vmax.f32 %v2886, %v3107
          %v3271 = vmax.f32 %v2887, %v3109
          %v3272 = vmax.f32 %v2888, %v3111
          %v3273 = vmax.f32 %v2889, %v3113
          %v3274 = vmax.f32 %v2890, %v3115
          %v3275 = vmax.f32 %v2891, %v3117
          %v3276 = vmax.f32 %v2892, %v3119
          %v3277 = vmax.f32 %v2893, %v3121
          %v3278 = vmax.f32 %v2894, %v3123
          %v3279 = vmax.f32 %v2895, %v3125
          %v3280 = vmax.f32 %v2896, %v3127
          %v3281 = vmax.f32 %v2897, %v3129
          %v3282 = vmax.f32 %v2898, %v3131
          %v3283 = vmax.f32 %v2899, %v3133
          %v3284 = vmax.f32 %v2900, %v3135
          %v3285 = vmax.f32 %v2901, %v3137
          %v3286 = vmax.f32 %v2902, %v3139
          %v3287 = vmax.f32 %v2903, %v3141
          %v3288 = vmax.f32 %v2904, %v3143
          %v3289 = vmax.f32 %v2905, %v3145
          %v3290 = vmax.f32 %v2906, %v3147
          %v3291 = vmax.f32 %v2907, %v3149
          %v3292 = vmax.f32 %v2908, %v3151
          %v3293 = vmax.f32 %v2909, %v3153
          %v3294 = vmax.f32 %v2910, %v3155
          %v3295 = vmax.f32 %v2911, %v3157
          %v3296 = vmax.f32 %v2912, %v3159
          %v3297 = vmax.f32 %v2913, %v3161
          %v3298 = vmax.f32 %v2914, %v3163
          %v3299 = vmax.f32 %v2915, %v3165
          %v3300 = vmax.f32 %v2916, %v3167
          %v3301 = vmax.f32 %v2917, %v3169
          %v3302 = vmax.f32 %v2918, %v3171
          %v3303 = vmax.f32 %v2919, %v3173
          %v3304 = vmax.f32 %v2920, %v3175
          %v3305 = vmax.f32 %v2921, %v3177
          %vm3306 = vcmask 7168
          %3307 = vst.msk [vmem:[%s289] sm:$0xff] %vm3306, %v3178
          %3308 = vst.msk [vmem:[%s289 + $0x8] sm:$0xff] %vm3306, %v3179
          %3309 = vst.msk [vmem:[%s289 + $0x10] sm:$0xff] %vm3306, %v3180
          %3310 = vst.msk [vmem:[%s289 + $0x18] sm:$0xff] %vm3306, %v3181
          %3311 = vst.msk [vmem:[%s289 + $0x20] sm:$0xff] %vm3306, %v3182
          %3312 = vst.msk [vmem:[%s289 + $0x28] sm:$0xff] %vm3306, %v3183
          %3313 = vst.msk [vmem:[%s289 + $0x30] sm:$0xff] %vm3306, %v3184
          %3314 = vst.msk [vmem:[%s289 + $0x38] sm:$0xff] %vm3306, %v3185
          %3315 = vst.msk [vmem:[%s289 + $0x40] sm:$0xff] %vm3306, %v3186
          %3316 = vst.msk [vmem:[%s289 + $0x48] sm:$0xff] %vm3306, %v3187
          %3317 = vst.msk [vmem:[%s289 + $0x50] sm:$0xff] %vm3306, %v3188
          %3318 = vst.msk [vmem:[%s289 + $0x58] sm:$0xff] %vm3306, %v3189
          %3319 = vst.msk [vmem:[%s289 + $0x60] sm:$0xff] %vm3306, %v3190
          %3320 = vst.msk [vmem:[%s289 + $0x68] sm:$0xff] %vm3306, %v3191
          %3321 = vst.msk [vmem:[%s289 + $0x70] sm:$0xff] %vm3306, %v3192
          %3322 = vst.msk [vmem:[%s289 + $0x78] sm:$0xff] %vm3306, %v3193
          %3323 = vst.msk [vmem:[%s289 + $0x80] sm:$0xff] %vm3306, %v3194
          %3324 = vst.msk [vmem:[%s289 + $0x88] sm:$0xff] %vm3306, %v3195
          %3325 = vst.msk [vmem:[%s289 + $0x90] sm:$0xff] %vm3306, %v3196
          %3326 = vst.msk [vmem:[%s289 + $0x98] sm:$0xff] %vm3306, %v3197
          %3327 = vst.msk [vmem:[%s289 + $0xa0] sm:$0xff] %vm3306, %v3198
          %3328 = vst.msk [vmem:[%s289 + $0xa8] sm:$0xff] %vm3306, %v3199
          %3329 = vst.msk [vmem:[%s289 + $0xb0] sm:$0xff] %vm3306, %v3200
          %3330 = vst.msk [vmem:[%s289 + $0xb8] sm:$0xff] %vm3306, %v3201
          %3331 = vst.msk [vmem:[%s289 + $0xc0] sm:$0xff] %vm3306, %v3202
          %3332 = vst.msk [vmem:[%s289 + $0xc8] sm:$0xff] %vm3306, %v3203
          %3333 = vst.msk [vmem:[%s289 + $0xd0] sm:$0xff] %vm3306, %v3204
          %3334 = vst.msk [vmem:[%s289 + $0xd8] sm:$0xff] %vm3306, %v3205
          %3335 = vst.msk [vmem:[%s289 + $0xe0] sm:$0xff] %vm3306, %v3206
          %3336 = vst.msk [vmem:[%s289 + $0xe8] sm:$0xff] %vm3306, %v3207
          %3337 = vst.msk [vmem:[%s289 + $0xf0] sm:$0xff] %vm3306, %v3208
          %3338 = vst.msk [vmem:[%s289 + $0xf8] sm:$0xff] %vm3306, %v3209
          %3339 = vst.msk [vmem:[%s289 + $0x100] sm:$0xff] %vm3306, %v3210
          %3340 = vst.msk [vmem:[%s289 + $0x108] sm:$0xff] %vm3306, %v3211
          %3341 = vst.msk [vmem:[%s289 + $0x110] sm:$0xff] %vm3306, %v3212
          %3342 = vst.msk [vmem:[%s289 + $0x118] sm:$0xff] %vm3306, %v3213
          %3343 = vst.msk [vmem:[%s289 + $0x120] sm:$0xff] %vm3306, %v3214
          %3344 = vst.msk [vmem:[%s289 + $0x128] sm:$0xff] %vm3306, %v3215
          %3345 = vst.msk [vmem:[%s289 + $0x130] sm:$0xff] %vm3306, %v3216
          %3346 = vst.msk [vmem:[%s289 + $0x138] sm:$0xff] %vm3306, %v3217
          %3347 = vst.msk [vmem:[%s289 + $0x140] sm:$0xff] %vm3306, %v3218
          %3348 = vst.msk [vmem:[%s289 + $0x148] sm:$0xff] %vm3306, %v3219
          %3349 = vst.msk [vmem:[%s289 + $0x150] sm:$0xff] %vm3306, %v3220
          %3350 = vst.msk [vmem:[%s289 + $0x158] sm:$0xff] %vm3306, %v3221
          %3351 = vst.msk [vmem:[%s289 + $0x160] sm:$0xff] %vm3306, %v3222
          %3352 = vst.msk [vmem:[%s289 + $0x168] sm:$0xff] %vm3306, %v3223
          %3353 = vst.msk [vmem:[%s289 + $0x170] sm:$0xff] %vm3306, %v3224
          %3354 = vst.msk [vmem:[%s289 + $0x178] sm:$0xff] %vm3306, %v3225
          %3355 = vst.msk [vmem:[%s289 + $0x180] sm:$0xff] %vm3306, %v3226
          %3356 = vst.msk [vmem:[%s289 + $0x188] sm:$0xff] %vm3306, %v3227
          %3357 = vst.msk [vmem:[%s289 + $0x190] sm:$0xff] %vm3306, %v3228
          %3358 = vst.msk [vmem:[%s289 + $0x198] sm:$0xff] %vm3306, %v3229
          %3359 = vst.msk [vmem:[%s289 + $0x1a0] sm:$0xff] %vm3306, %v3230
          %3360 = vst.msk [vmem:[%s289 + $0x1a8] sm:$0xff] %vm3306, %v3231
          %3361 = vst.msk [vmem:[%s289 + $0x1b0] sm:$0xff] %vm3306, %v3232
          %3362 = vst.msk [vmem:[%s289 + $0x1b8] sm:$0xff] %vm3306, %v3233
          %3363 = vst.msk [vmem:[%s289 + $0x1c0] sm:$0xff] %vm3306, %v3234
          %3364 = vst.msk [vmem:[%s289 + $0x1c8] sm:$0xff] %vm3306, %v3235
          %3365 = vst.msk [vmem:[%s289 + $0x1d0] sm:$0xff] %vm3306, %v3236
          %3366 = vst.msk [vmem:[%s289 + $0x1d8] sm:$0xff] %vm3306, %v3237
          %3367 = vst.msk [vmem:[%s289 + $0x1e0] sm:$0xff] %vm3306, %v3238
          %3368 = vst.msk [vmem:[%s289 + $0x1e8] sm:$0xff] %vm3306, %v3239
          %3369 = vst.msk [vmem:[%s289 + $0x1f0] sm:$0xff] %vm3306, %v3240
          %3370 = vst.msk [vmem:[%s289 + $0x1f8] sm:$0xff] %vm3306, %v3241
          %3371 = vst.msk [vmem:[%s289 + $0x200] sm:$0xff] %vm3306, %v3242
          %3372 = vst.msk [vmem:[%s289 + $0x208] sm:$0xff] %vm3306, %v3243
          %3373 = vst.msk [vmem:[%s289 + $0x210] sm:$0xff] %vm3306, %v3244
          %3374 = vst.msk [vmem:[%s289 + $0x218] sm:$0xff] %vm3306, %v3245
          %3375 = vst.msk [vmem:[%s289 + $0x220] sm:$0xff] %vm3306, %v3246
          %3376 = vst.msk [vmem:[%s289 + $0x228] sm:$0xff] %vm3306, %v3247
          %3377 = vst.msk [vmem:[%s289 + $0x230] sm:$0xff] %vm3306, %v3248
          %3378 = vst.msk [vmem:[%s289 + $0x238] sm:$0xff] %vm3306, %v3249
          %3379 = vst.msk [vmem:[%s289 + $0x240] sm:$0xff] %vm3306, %v3250
          %3380 = vst.msk [vmem:[%s289 + $0x248] sm:$0xff] %vm3306, %v3251
          %3381 = vst.msk [vmem:[%s289 + $0x250] sm:$0xff] %vm3306, %v3252
          %3382 = vst.msk [vmem:[%s289 + $0x258] sm:$0xff] %vm3306, %v3253
          %3383 = vst.msk [vmem:[%s289 + $0x260] sm:$0xff] %vm3306, %v3254
          %3384 = vst.msk [vmem:[%s289 + $0x268] sm:$0xff] %vm3306, %v3255
          %3385 = vst.msk [vmem:[%s289 + $0x270] sm:$0xff] %vm3306, %v3256
          %3386 = vst.msk [vmem:[%s289 + $0x278] sm:$0xff] %vm3306, %v3257
          %3387 = vst.msk [vmem:[%s289 + $0x280] sm:$0xff] %vm3306, %v3258
          %3388 = vst.msk [vmem:[%s289 + $0x288] sm:$0xff] %vm3306, %v3259
          %3389 = vst.msk [vmem:[%s289 + $0x290] sm:$0xff] %vm3306, %v3260
          %3390 = vst.msk [vmem:[%s289 + $0x298] sm:$0xff] %vm3306, %v3261
          %3391 = vst.msk [vmem:[%s289 + $0x2a0] sm:$0xff] %vm3306, %v3262
          %3392 = vst.msk [vmem:[%s289 + $0x2a8] sm:$0xff] %vm3306, %v3263
          %3393 = vst.msk [vmem:[%s289 + $0x2b0] sm:$0xff] %vm3306, %v3264
          %3394 = vst.msk [vmem:[%s289 + $0x2b8] sm:$0xff] %vm3306, %v3265
          %3395 = vst.msk [vmem:[%s289 + $0x2c0] sm:$0xff] %vm3306, %v3266
          %3396 = vst.msk [vmem:[%s289 + $0x2c8] sm:$0xff] %vm3306, %v3267
          %3397 = vst.msk [vmem:[%s289 + $0x2d0] sm:$0xff] %vm3306, %v3268
          %3398 = vst.msk [vmem:[%s289 + $0x2d8] sm:$0xff] %vm3306, %v3269
          %3399 = vst.msk [vmem:[%s289 + $0x2e0] sm:$0xff] %vm3306, %v3270
          %3400 = vst.msk [vmem:[%s289 + $0x2e8] sm:$0xff] %vm3306, %v3271
          %3401 = vst.msk [vmem:[%s289 + $0x2f0] sm:$0xff] %vm3306, %v3272
          %3402 = vst.msk [vmem:[%s289 + $0x2f8] sm:$0xff] %vm3306, %v3273
          %3403 = vst.msk [vmem:[%s289 + $0x300] sm:$0xff] %vm3306, %v3274
          %3404 = vst.msk [vmem:[%s289 + $0x308] sm:$0xff] %vm3306, %v3275
          %3405 = vst.msk [vmem:[%s289 + $0x310] sm:$0xff] %vm3306, %v3276
          %3406 = vst.msk [vmem:[%s289 + $0x318] sm:$0xff] %vm3306, %v3277
          %3407 = vst.msk [vmem:[%s289 + $0x320] sm:$0xff] %vm3306, %v3278
          %3408 = vst.msk [vmem:[%s289 + $0x328] sm:$0xff] %vm3306, %v3279
          %3409 = vst.msk [vmem:[%s289 + $0x330] sm:$0xff] %vm3306, %v3280
          %3410 = vst.msk [vmem:[%s289 + $0x338] sm:$0xff] %vm3306, %v3281
          %3411 = vst.msk [vmem:[%s289 + $0x340] sm:$0xff] %vm3306, %v3282
          %3412 = vst.msk [vmem:[%s289 + $0x348] sm:$0xff] %vm3306, %v3283
          %3413 = vst.msk [vmem:[%s289 + $0x350] sm:$0xff] %vm3306, %v3284
          %3414 = vst.msk [vmem:[%s289 + $0x358] sm:$0xff] %vm3306, %v3285
          %3415 = vst.msk [vmem:[%s289 + $0x360] sm:$0xff] %vm3306, %v3286
          %3416 = vst.msk [vmem:[%s289 + $0x368] sm:$0xff] %vm3306, %v3287
          %3417 = vst.msk [vmem:[%s289 + $0x370] sm:$0xff] %vm3306, %v3288
          %3418 = vst.msk [vmem:[%s289 + $0x378] sm:$0xff] %vm3306, %v3289
          %3419 = vst.msk [vmem:[%s289 + $0x380] sm:$0xff] %vm3306, %v3290
          %3420 = vst.msk [vmem:[%s289 + $0x388] sm:$0xff] %vm3306, %v3291
          %3421 = vst.msk [vmem:[%s289 + $0x390] sm:$0xff] %vm3306, %v3292
          %3422 = vst.msk [vmem:[%s289 + $0x398] sm:$0xff] %vm3306, %v3293
          %3423 = vst.msk [vmem:[%s289 + $0x3a0] sm:$0xff] %vm3306, %v3294
          %3424 = vst.msk [vmem:[%s289 + $0x3a8] sm:$0xff] %vm3306, %v3295
          %3425 = vst.msk [vmem:[%s289 + $0x3b0] sm:$0xff] %vm3306, %v3296
          %3426 = vst.msk [vmem:[%s289 + $0x3b8] sm:$0xff] %vm3306, %v3297
          %3427 = vst.msk [vmem:[%s289 + $0x3c0] sm:$0xff] %vm3306, %v3298
          %3428 = vst.msk [vmem:[%s289 + $0x3c8] sm:$0xff] %vm3306, %v3299
          %3429 = vst.msk [vmem:[%s289 + $0x3d0] sm:$0xff] %vm3306, %v3300
          %3430 = vst.msk [vmem:[%s289 + $0x3d8] sm:$0xff] %vm3306, %v3301
          %3431 = vst.msk [vmem:[%s289 + $0x3e0] sm:$0xff] %vm3306, %v3302
          %3432 = vst.msk [vmem:[%s289 + $0x3e8] sm:$0xff] %vm3306, %v3303
          %3433 = vst.msk [vmem:[%s289 + $0x3f0] sm:$0xff] %vm3306, %v3304
          %3434 = vst.msk [vmem:[%s289 + $0x3f8] sm:$0xff] %vm3306, %v3305
        $region60: #{stn3d_forward.2} parent=43 // pred_fallthru
          _
        %p3435 = scmp.lt.s32.totalorder %s22, 1
        %s3436 = scalar_select %p3435, %s22, 1
        %s3437 = smul.addr %s3436, 128
        %s3438 = smul.addr %s3437, 8
        %s3439 = scalar_lea.vmem %s6, %s3438
        // Predicated region
        $region61: #{stn3d_forward.2} parent=43 // pred_check
          %p3440 = pneg %p181
        $region62: #{stn3d_forward.2} parent=43 // pred_check_branch
          %3442 = sbr.rel (%p3440) target = $region64
        $region63: #{stn3d_forward.2} parent=43 // pred_region
          _
        $region64: #{stn3d_forward.2} parent=43 // pred_fallthru
          _
      $region44: #{stn3d_forward.2} parent=5 // pred_fallthru
        _
      %p3443 = scmp.le.s32.totalorder 2, %s13
      // Predicated region
      $region65: #{stn3d_forward.2} parent=5 // pred_check
        %p3444 = pneg %p3443
      $region66: #{stn3d_forward.2} parent=5 // pred_check_branch
        %3446 = sbr.rel (%p3444) target = $region68
      $region67: #{stn3d_forward.2} parent=5 // pred_region
        %s3447 = ssub.s32 %s13, 2
        // Predicated region
        $region69: #{stn3d_forward.2} parent=67 // pred_check
          %p3448 = pneg %p187
        $region70: #{stn3d_forward.2} parent=67 // pred_check_branch
          %3450 = sbr.rel (%p3448) target = $region72
        $region71: #{stn3d_forward.2} parent=67 // pred_region
          %p3451 = scmp.lt.s32.totalorder %s24, 1
          %s3452 = scalar_select %p3451, %s24, 1
          %s3453 = smul.addr %s3452, 128
          %s3454 = smul.addr %s3453, 8
          %s3455 = scalar_lea.vmem %s6, %s3454
        $region72: #{stn3d_forward.2} parent=67 // pred_fallthru
          _
      $region68: #{stn3d_forward.2} parent=5 // pred_fallthru
        _
    $region6: #{stn3d_forward.2} parent=1 // loop_footer
      %s17 = sadd.s32 1, %s13
    $region7: #{stn3d_forward.2} parent=1 // loop_footer_branch
      %12 = sbr.rel target = $region3
    $region8: #{stn3d_forward.2} parent=1 // loop_exit
      _
    %3456 = vsyncpa [#allocation3], 1
    %s3457 = scalar_lea.sflag [#allocation3], 1
    %3458 = vsyncpa %s3457, 1

</llo_original>
